<compile_context>
chip_gen: v7x
topology: tpu7x:2x2x1
jax: 0.10.0
libtpu: 0.0.40
codegen_flags: <defaults>
</compile_context>

<pallas_src>
import functools
import math

import jax
import jax.numpy as jnp
import numpy as np
from jax import lax
from jax.experimental import pallas as pl
from jax.experimental.pallas import tpu as pltpu


# ----------------------------- Pallas kernels -------------------------------

def _up_kernel_batched(x_ref, aht_ref, awt_ref, o_ref, *, compute_dtype, precision):
    # x_ref:   (tb, H, W)   tile of channel maps
    # aht_ref: (H, Ho)      A_h^T   (resident)
    # awt_ref: (W, Wo)      A_w^T   (resident)
    # o_ref:   (tb, Ho, Wo)
    tb, h_in, w_in = x_ref.shape
    h_out = aht_ref.shape[1]
    w_out = awt_ref.shape[1]

    x = x_ref[...].astype(compute_dtype)

    # ---- H-axis interpolation: ONE collapsed GEMM, M = tb*W ----------------
    # Per-map minor-dim transpose runs in the XLU slot and hides under MXU work.
    xt = jnp.transpose(x, (0, 2, 1))                       # (tb, W, H)
    t = jnp.dot(xt.reshape(tb * w_in, h_in),               # free relabel (W % sub == 0)
                aht_ref[...].astype(compute_dtype),
                preferred_element_type=jnp.float32,
                precision=precision)                        # (tb*W, Ho)

    # ---- W-axis interpolation: ONE collapsed GEMM, M = tb*Ho ---------------
    tt = jnp.transpose(t.reshape(tb, w_in, h_out), (0, 2, 1))   # (tb, Ho, W)
    o = jnp.dot(tt.reshape(tb * h_out, w_in).astype(compute_dtype),
                awt_ref[...].astype(compute_dtype),
                preferred_element_type=jnp.float32,
                precision=precision)                        # (tb*Ho, Wo)

    o_ref[...] = o.reshape(tb, h_out, w_out).astype(o_ref.dtype)


def _up_kernel_single(x_ref, ah_ref, awt_ref, o_ref, *, compute_dtype, precision):
    # One map per grid step: two clean 2-D GEMMs, no reshapes / transposes.
    # x_ref: (1, H, W), ah_ref: (Ho, H), awt_ref: (W, Wo), o_ref: (1, Ho, Wo)
    x = x_ref[0].astype(compute_dtype)                      # (H, W)
    t = jnp.dot(ah_ref[...].astype(compute_dtype), x,
                preferred_element_type=jnp.float32,
                precision=precision)                        # (Ho, W)
    o = jnp.dot(t.astype(compute_dtype), awt_ref[...].astype(compute_dtype),
                preferred_element_type=jnp.float32,
                precision=precision)                        # (Ho, Wo)
    o_ref[0] = o.astype(o_ref.dtype)


# --------------------------- interpolation matrix ---------------------------

def _interp_matrix(in_size, out_size):
    """1-D bilinear (align_corners=True) interpolation matrix (out, in)."""
    if out_size > 1:
        src = np.arange(out_size, dtype=np.float64) * (in_size - 1) / (out_size - 1)
    else:
        src = np.zeros((out_size,), dtype=np.float64)
    i0 = np.clip(np.floor(src).astype(np.int64), 0, in_size - 1)
    i1 = np.minimum(i0 + 1, in_size - 1)
    frac = src - i0
    a = np.zeros((out_size, in_size), dtype=np.float64)
    rows = np.arange(out_size)
    np.add.at(a, (rows, i0), 1.0 - frac)
    np.add.at(a, (rows, i1), frac)
    return a.astype(np.float32)


# ----------------------------- tiling heuristics ----------------------------

def _vmem_bytes_estimate(tb, H, W, Ho, Wo):
    """Double-buffered I/O blocks + resident matrices + in-kernel intermediates."""
    itemsize = 4
    io = 2 * tb * H * W + 2 * tb * Ho * Wo                 # double-buffered blocks
    mats = 2 * (H * Ho + W * Wo)                           # interp matrices (dbl-buf)
    interm = tb * (2 * H * W + 2 * W * Ho + Ho * Wo)       # x, x^T, t, t^T, accumulator
    return itemsize * (io + mats + interm)


def _choose_tb(B, H, W, Ho, Wo, budget):
    """Largest exact divisor of B that fits the VMEM budget, preferring an
    even grid of >= 4 steps (balanced v7x megacore split, DMA/compute overlap)."""
    divisors = sorted({d for d in range(1, B + 1) if B % d == 0}, reverse=True)
    min_steps = min(4, B)
    for need_even in (True, False):
        for d in divisors:
            steps = B // d
            if steps < min_steps:
                continue
            if need_even and steps % 2:
                continue
            if _vmem_bytes_estimate(d, H, W, Ho, Wo) <= budget:
                return d
    return 1


# ------------------------------- glue (JAX) ---------------------------------

def up_forward(x_nchw, scale_factor, *, tb=None,
               vmem_budget_bytes=24 * 1024 * 1024,
               compute_dtype=None,
               precision=lax.Precision.HIGHEST):
    """Forward of `Up`: bilinear upsample, align_corners=True.

    x_nchw: (N, C, H, W); returns (N, C, floor(H*s), floor(W*s)) in x's dtype.
    compute_dtype: set to jnp.bfloat16 for full-rate MXU on large maps
                   (accumulation stays f32); default keeps f32 semantics.
    """
    N, C, H, W = x_nchw.shape
    Ho = int(math.floor(H * scale_factor))
    Wo = int(math.floor(W * scale_factor))
    B = N * C
    out_dtype = x_nchw.dtype
    cdt = jnp.dtype(out_dtype) if compute_dtype is None else jnp.dtype(compute_dtype)

    x3 = x_nchw.reshape(B, H, W)                     # metadata-only reshape

    a_h_np = _interp_matrix(H, Ho)                   # (Ho, H)
    a_w_np = _interp_matrix(W, Wo)                   # (Wo, W)

    # Sublane granularity for free in-kernel reshape collapses (f32: 8, bf16: 16).
    sub = max(1, 8 * 4 // cdt.itemsize)
    aligned = (W % sub == 0) and (Ho % sub == 0)

    if tb is None:
        tb = _choose_tb(B, H, W, Ho, Wo, vmem_budget_bytes) if aligned else 1
    tb = int(max(1, min(int(tb), B)))
    while B % tb:                                    # exact divisor: no pad, no slice
        tb -= 1
    steps = B // tb

    flops = 2 * B * W * Ho * (H + Wo)
    bytes_accessed = 4 * (B * H * W + B * Ho * Wo + Ho * H + W * Wo)
    cost = pl.CostEstimate(flops=flops, transcendentals=0,
                           bytes_accessed=int(bytes_accessed))

    est = _vmem_bytes_estimate(tb, H, W, Ho, Wo)
    vmem_limit = int(min(64 * 1024 * 1024, max(32 * 1024 * 1024, 2 * est)))
    cparams = pltpu.CompilerParams(
        dimension_semantics=("parallel",),
        vmem_limit_bytes=vmem_limit,
    )
    out_shape = jax.ShapeDtypeStruct((B, Ho, Wo), out_dtype)

    # TODO(synk): lane-dense packing of several maps along the output last dim
    # (k*Wo >= 128) is not expressible without changing the HBM output layout.

    if tb > 1 and aligned:
        a_h_t = jnp.asarray(a_h_np.T)                # (H, Ho)
        a_w_t = jnp.asarray(a_w_np.T)                # (W, Wo)
        batched = pl.pallas_call(
            functools.partial(_up_kernel_batched, compute_dtype=cdt,
                              precision=precision),
            out_shape=out_shape,
            grid_spec=pltpu.PrefetchScalarGridSpec(
                num_scalar_prefetch=0,
                grid=(steps,),
                in_specs=[
                    pl.BlockSpec((tb, H, W), lambda i: (i, 0, 0)),   # map tile
                    pl.BlockSpec((H, Ho), lambda i: (0, 0)),         # A_h^T (resident)
                    pl.BlockSpec((W, Wo), lambda i: (0, 0)),         # A_w^T (resident)
                ],
                out_specs=pl.BlockSpec((tb, Ho, Wo), lambda i: (i, 0, 0)),
            ),
            compiler_params=cparams,
            cost_estimate=cost,
        )
        try:
            out = batched(x3, a_h_t, a_w_t)
            return out.reshape(N, C, Ho, Wo)
        except Exception:
            # Conservative guard: if the collapsed-GEMM path fails to lower on
            # this backend, fall through to the per-map two-GEMM kernel.
            pass

    a_h = jnp.asarray(a_h_np)                        # (Ho, H)
    a_w_t = jnp.asarray(a_w_np.T)                    # (W, Wo)
    out = pl.pallas_call(
        functools.partial(_up_kernel_single, compute_dtype=cdt,
                          precision=precision),
        out_shape=out_shape,
        grid_spec=pltpu.PrefetchScalarGridSpec(
            num_scalar_prefetch=0,
            grid=(B,),
            in_specs=[
                pl.BlockSpec((1, H, W), lambda i: (i, 0, 0)),
                pl.BlockSpec((Ho, H), lambda i: (0, 0)),
                pl.BlockSpec((W, Wo), lambda i: (0, 0)),
            ],
            out_specs=pl.BlockSpec((1, Ho, Wo), lambda i: (i, 0, 0)),
        ),
        compiler_params=cparams,
        cost_estimate=cost,
    )(x3, a_h, a_w_t)
    return out.reshape(N, C, Ho, Wo)


# ------------------------------- reference ----------------------------------

def _reference_upsample(x, sf):
    """Independent gather-based bilinear align_corners=True reference (numpy)."""
    N, C, H, W = x.shape
    Ho, Wo = int(math.floor(H * sf)), int(math.floor(W * sf))
    hs = np.linspace(0.0, H - 1, Ho) if Ho > 1 else np.zeros((Ho,))
    ws = np.linspace(0.0, W - 1, Wo) if Wo > 1 else np.zeros((Wo,))
    h0 = np.floor(hs).astype(np.int64); h1 = np.minimum(h0 + 1, H - 1)
    w0 = np.floor(ws).astype(np.int64); w1 = np.minimum(w0 + 1, W - 1)
    fh = (hs - h0)[None, None, :, None]
    fw = (ws - w0)[None, None, None, :]
    v00 = x[:, :, h0][:, :, :, w0]
    v01 = x[:, :, h0][:, :, :, w1]
    v10 = x[:, :, h1][:, :, :, w0]
    v11 = x[:, :, h1][:, :, :, w1]
    top = v00 * (1.0 - fw) + v01 * fw
    bot = v10 * (1.0 - fw) + v11 * fw
    return (top * (1.0 - fh) + bot * fh).astype(np.float32)


# --------------------------------- demo -------------------------------------

if __name__ == "__main__":
    key = jax.random.PRNGKey(0)
    N, C, H, W = 2, 4, 16, 16
    scale = 2

    x = jax.random.normal(key, (N, C, H, W), dtype=jnp.float32)

    y = jax.block_until_ready(up_forward(x, scale))
    assert y.shape == (N, C, H * scale, W * scale)

    y_ref = _reference_upsample(np.asarray(x), scale)
    np.testing.assert_allclose(np.asarray(y), y_ref, rtol=1e-4, atol=1e-5)

    print("KERNEL_OK")
</pallas_src>

<mosaic_0001>
module attributes {stable_mosaic.version = 11 : i64} {
  func.func @_up_kernel_batched(%arg0: i32, %arg1: memref<2x16x16xf32, #tpu.memory_space<vmem>>, %arg2: memref<16x32xf32, #tpu.memory_space<vmem>>, %arg3: memref<16x32xf32, #tpu.memory_space<vmem>>, %arg4: memref<2x32x32xf32, #tpu.memory_space<vmem>>) attributes {dimension_semantics = [#tpu.dimension_semantics<parallel>], iteration_bounds = array<i64: 4>, scalar_prefetch = 0 : i64, scratch_operands = 0 : i64, tpu.core_type = #tpu.core_type<tc>, window_params = [{transform_indices = @transform_0, window_bounds = array<i64: 2, 16, 16>}, {pipeline_mode = #tpu.pipeline_mode<synchronous>, transform_indices = @transform_1, window_bounds = array<i64: 16, 32>}, {pipeline_mode = #tpu.pipeline_mode<synchronous>, transform_indices = @transform_2, window_bounds = array<i64: 16, 32>}, {transform_indices = @transform_3, window_bounds = array<i64: 2, 32, 32>}]} {
    %c0 = arith.constant 0 : index
    %c0_0 = arith.constant 0 : index
    %c0_1 = arith.constant 0 : index
    %0 = vector.load %arg1[%c0, %c0_0, %c0_1] : memref<2x16x16xf32, #tpu.memory_space<vmem>>, vector<2x16x16xf32>
    %1 = tpu.transpose %0, [0, 2, 1] : vector<2x16x16xf32> -> vector<2x16x16xf32>
    %2 = vector.shape_cast %1 : vector<2x16x16xf32> to vector<32x16xf32>
    %c0_2 = arith.constant 0 : index
    %c0_3 = arith.constant 0 : index
    %3 = vector.load %arg2[%c0_2, %c0_3] : memref<16x32xf32, #tpu.memory_space<vmem>>, vector<16x32xf32>
    %cst = arith.constant dense<0.000000e+00> : vector<32x32xf32>
    %4 = tpu.matmul %2, %3, %cst {dimension_numbers = #tpu.dot_dimension_numbers<[1], [0], [0], [1], [0, 0, 1, 1], [], []>, precision = #tpu.contract_precision<fp32>} : vector<32x16xf32>, vector<16x32xf32>, vector<32x32xf32> -> vector<32x32xf32>
    %5 = vector.shape_cast %4 : vector<32x32xf32> to vector<2x16x32xf32>
    %6 = tpu.transpose %5, [0, 2, 1] : vector<2x16x32xf32> -> vector<2x32x16xf32>
    %7 = vector.shape_cast %6 : vector<2x32x16xf32> to vector<64x16xf32>
    %c0_4 = arith.constant 0 : index
    %c0_5 = arith.constant 0 : index
    %8 = vector.load %arg3[%c0_4, %c0_5] : memref<16x32xf32, #tpu.memory_space<vmem>>, vector<16x32xf32>
    %cst_6 = arith.constant dense<0.000000e+00> : vector<64x32xf32>
    %9 = tpu.matmul %7, %8, %cst_6 {dimension_numbers = #tpu.dot_dimension_numbers<[1], [0], [0], [1], [0, 0, 1, 1], [], []>, precision = #tpu.contract_precision<fp32>} : vector<64x16xf32>, vector<16x32xf32>, vector<64x32xf32> -> vector<64x32xf32>
    %10 = vector.shape_cast %9 : vector<64x32xf32> to vector<2x32x32xf32>
    %c0_7 = arith.constant 0 : index
    %c0_8 = arith.constant 0 : index
    %c0_9 = arith.constant 0 : index
    %11 = vector.load %arg4[%c0_7, %c0_8, %c0_9] : memref<2x32x32xf32, #tpu.memory_space<vmem>>, vector<2x32x32xf32>
    tpu.vector_store %arg4[%c0_7, %c0_8, %c0_9], %10 {strides = array<i32>} : memref<2x32x32xf32, #tpu.memory_space<vmem>>, vector<2x32x32xf32>,
    return
  }
  func.func @transform_0(%arg0: i32) -> (i32, i32, i32) {
    %c0_i32 = arith.constant 0 : i32
    %c0_i32_0 = arith.constant 0 : i32
    %c0_i32_1 = arith.constant 0 : i32
    return %arg0, %c0_i32, %c0_i32_0 : i32, i32, i32
  }
  func.func @transform_1(%arg0: i32) -> (i32, i32) {
    %c0_i32 = arith.constant 0 : i32
    %c0_i32_0 = arith.constant 0 : i32
    %c0_i32_1 = arith.constant 0 : i32
    return %c0_i32, %c0_i32_0 : i32, i32
  }
  func.func @transform_2(%arg0: i32) -> (i32, i32) {
    %c0_i32 = arith.constant 0 : i32
    %c0_i32_0 = arith.constant 0 : i32
    %c0_i32_1 = arith.constant 0 : i32
    return %c0_i32, %c0_i32_0 : i32, i32
  }
  func.func @transform_3(%arg0: i32) -> (i32, i32, i32) {
    %c0_i32 = arith.constant 0 : i32
    %c0_i32_0 = arith.constant 0 : i32
    %c0_i32_1 = arith.constant 0 : i32
    return %arg0, %c0_i32, %c0_i32_0 : i32, i32, i32
  }
}

module attributes {stable_mosaic.version = 11 : i64} {
  func.func @_up_kernel_single(%arg0: i32, %arg1: memref<1x16x16xf32, #tpu.memory_space<vmem>>, %arg2: memref<32x16xf32, #tpu.memory_space<vmem>>, %arg3: memref<16x32xf32, #tpu.memory_space<vmem>>, %arg4: memref<1x32x32xf32, #tpu.memory_space<vmem>>) attributes {dimension_semantics = [#tpu.dimension_semantics<parallel>], iteration_bounds = array<i64: 8>, scalar_prefetch = 0 : i64, scratch_operands = 0 : i64, tpu.core_type = #tpu.core_type<tc>, window_params = [{transform_indices = @transform_0, window_bounds = array<i64: 1, 16, 16>}, {pipeline_mode = #tpu.pipeline_mode<synchronous>, transform_indices = @transform_1, window_bounds = array<i64: 32, 16>}, {pipeline_mode = #tpu.pipeline_mode<synchronous>, transform_indices = @transform_2, window_bounds = array<i64: 16, 32>}, {transform_indices = @transform_3, window_bounds = array<i64: 1, 32, 32>}]} {
    %c0 = arith.constant 0 : index
    %c0_0 = arith.constant 0 : index
    %c0_1 = arith.constant 0 : index
    %0 = vector.load %arg1[%c0, %c0_0, %c0_1] : memref<1x16x16xf32, #tpu.memory_space<vmem>>, vector<1x16x16xf32>
    %1 = vector.shape_cast %0 : vector<1x16x16xf32> to vector<16x16xf32>
    %c0_2 = arith.constant 0 : index
    %c0_3 = arith.constant 0 : index
    %2 = vector.load %arg2[%c0_2, %c0_3] : memref<32x16xf32, #tpu.memory_space<vmem>>, vector<32x16xf32>
    %cst = arith.constant dense<0.000000e+00> : vector<32x16xf32>
    %3 = tpu.matmul %2, %1, %cst {dimension_numbers = #tpu.dot_dimension_numbers<[1], [0], [0], [1], [0, 0, 1, 1], [], []>, precision = #tpu.contract_precision<fp32>} : vector<32x16xf32>, vector<16x16xf32>, vector<32x16xf32> -> vector<32x16xf32>
    %c0_4 = arith.constant 0 : index
    %c0_5 = arith.constant 0 : index
    %4 = vector.load %arg3[%c0_4, %c0_5] : memref<16x32xf32, #tpu.memory_space<vmem>>, vector<16x32xf32>
    %cst_6 = arith.constant dense<0.000000e+00> : vector<32x32xf32>
    %5 = tpu.matmul %3, %4, %cst_6 {dimension_numbers = #tpu.dot_dimension_numbers<[1], [0], [0], [1], [0, 0, 1, 1], [], []>, precision = #tpu.contract_precision<fp32>} : vector<32x16xf32>, vector<16x32xf32>, vector<32x32xf32> -> vector<32x32xf32>
    %c0_7 = arith.constant 0 : index
    %c0_8 = arith.constant 0 : index
    %c0_9 = arith.constant 0 : index
    %6 = vector.load %arg4[%c0_7, %c0_8, %c0_9] : memref<1x32x32xf32, #tpu.memory_space<vmem>>, vector<1x32x32xf32>
    %7 = vector.shape_cast %6 : vector<1x32x32xf32> to vector<32x32xf32>
    %8 = vector.shape_cast %5 : vector<32x32xf32> to vector<1x32x32xf32>
    tpu.vector_store %arg4[%c0_7, %c0_8, %c0_9], %8 {strides = array<i32>} : memref<1x32x32xf32, #tpu.memory_space<vmem>>, vector<1x32x32xf32>,
    return
  }
  func.func @transform_0(%arg0: i32) -> (i32, i32, i32) {
    %c0_i32 = arith.constant 0 : i32
    %c0_i32_0 = arith.constant 0 : i32
    %c0_i32_1 = arith.constant 0 : i32
    return %arg0, %c0_i32, %c0_i32_0 : i32, i32, i32
  }
  func.func @transform_1(%arg0: i32) -> (i32, i32) {
    %c0_i32 = arith.constant 0 : i32
    %c0_i32_0 = arith.constant 0 : i32
    %c0_i32_1 = arith.constant 0 : i32
    return %c0_i32, %c0_i32_0 : i32, i32
  }
  func.func @transform_2(%arg0: i32) -> (i32, i32) {
    %c0_i32 = arith.constant 0 : i32
    %c0_i32_0 = arith.constant 0 : i32
    %c0_i32_1 = arith.constant 0 : i32
    return %c0_i32, %c0_i32_0 : i32, i32
  }
  func.func @transform_3(%arg0: i32) -> (i32, i32, i32) {
    %c0_i32 = arith.constant 0 : i32
    %c0_i32_0 = arith.constant 0 : i32
    %c0_i32_1 = arith.constant 0 : i32
    return %arg0, %c0_i32, %c0_i32_0 : i32, i32, i32
  }
}

</mosaic_0001>

<llo_original>
// kernel: tpu_custom_call.1
$region0: #{tpu_custom_call.1}
  #allocation0 [shape = 'u32[]', space=smem, size = 0x4, offset = 0x4, fixed_abs, tag = 'smem constant byte address 0x4 - core index']
  #allocation1 [shape = 'u32[144,128]{1,0:T(1,128)}', space=vmem, size = 0x12000, scoped, tag = 'internal scratch']
  %s0 = inlined_call_operand.hbm [shape: f32[8,16,16], index: 0, kind: input, shape index: {}]
  %s1 = inlined_call_operand.hbm [shape: f32[16,32], index: 1, kind: input, shape index: {}]
  %s2 = inlined_call_operand.hbm [shape: f32[16,32], index: 2, kind: input, shape index: {}]
  %s3 = inlined_call_operand.hbm [shape: f32[8,32,32], index: 3, kind: output, shape index: {}]
  %s4 = sld [smem:[#allocation0]]
  $region57: #{tpu_custom_call.1} parent=0
    _
  %s6 = ssub.s32 1, %s4
  %s7 = scalar_select 0, %s6, %s4
  $region1: #{tpu_custom_call.1} parent=0
    #allocation2 [shape = 'u8[32768]{0}', space=vmem, size = 0x8000, scoped, tag = 'input window, operand 0']
    #allocation3 [shape = 's32[2]{0}', space=sflag, size = 0x8, scoped, tag = 'scoped memory for tpu_custom_call.1']
    #allocation4 [shape = 's32[2]{0}', space=sflag, size = 0x8, scoped, tag = 'scoped memory for tpu_custom_call.1']
    #allocation5 [shape = 'u8[8192]{0}', space=vmem, size = 0x2000, scoped, tag = 'input window, operand 1, single buffered']
    #allocation6 [shape = 's32[1]{0}', space=sflag, size = 0x4, scoped, tag = 'scoped memory for tpu_custom_call.1']
    #allocation7 [shape = 'u8[8192]{0}', space=vmem, size = 0x2000, scoped, tag = 'input window, operand 2, single buffered']
    #allocation8 [shape = 'u8[65536]{0}', space=vmem, size = 0x10000, scoped, tag = 'output window, operand 0']
    %8 = vsyncpa [#allocation3], 0
    %s9 = scalar_lea.sflag [#allocation3], 1
    %10 = vsyncpa %s9, 0
    %11 = vsyncpa [#allocation6], 0
    %12 = vsyncpa [#allocation4], 0
    %s13 = scalar_lea.sflag [#allocation4], 1
    %14 = vsyncpa %s13, 0
    loop: start=0, step=1, limit=6
    $region2: #{tpu_custom_call.1} parent=1 // loop_pre_header
      _
    $region3: #{tpu_custom_call.1} parent=1 // loop_header
      %s16 = sphi 0, %s20
      %p17 = scmp.ge.s32.totalorder %s16, 6
      %s26 = sphi 0, %s28
      %s29 = sphi 0, %s26
      %s30 = sphi 0, %s29
      %s46 = sphi 0, %s30
      %s50 = sphi 0, %s50
      %s52 = sphi 0, %s50
      %s53 = sphi 0, %s52
      %s67 = sphi 0, %s53
      %s71 = sphi 0, %s71
      %s73 = sphi 0, %s71
      %s74 = sphi 0, %s73
      %s88 = sphi 0, %s74
      %s94 = sphi 0, %s96
      %s97 = sphi 0, %s94
      %s98 = sphi 0, %s97
      %s114 = sphi 0, %s98
    $region4: #{tpu_custom_call.1} parent=1 // loop_header_branch
      %19 = sbr.rel (%p17) target = $region8
    $region5: #{tpu_custom_call.1} parent=1 // loop_body
      %s21 = ssub.s32 %s16, 1
      %s22 = ssub.s32 %s16, 2
      %s23 = sadd.s32 %s16, 1
      %s24 = ssub.s32 %s16, %s23
      %p25 = scmp.eq.s32.totalorder %s24, 0
      %s27 = sadd.s32 %s26, 1
      %s28 = scalar_select %p25, %s26, %s27
      %p31 = pneg %p25
      %p32 = scmp.eq.s32.totalorder %s16, 3
      %p33 = por %p31, %p32
      %p34 = scmp.ne.s32.totalorder %s26, %s29
      %p35 = scmp.eq.s32.totalorder %s16, 0
      %p36 = por %p34, %p35
      %p37 = scmp.ne.s32.totalorder %s26, %s29
      %p38 = scmp.eq.s32.totalorder %s21, 3
      %p39 = por %p37, %p38
      %p40 = scmp.ne.s32.totalorder %s29, %s30
      %p41 = scmp.eq.s32.totalorder %s21, 0
      %p42 = por %p40, %p41
      %p43 = scmp.ne.s32.totalorder %s29, %s30
      %p44 = scmp.eq.s32.totalorder %s22, 3
      %p45 = por %p43, %p44
      %p47 = scmp.ne.s32.totalorder %s30, %s46
      %p48 = scmp.eq.s32.totalorder %s22, 0
      %p49 = por %p47, %p48
      %s51 = sadd.s32 %s50, 1
      %p54 = scmp.eq.s32.totalorder %s16, 3
      %p55 = scmp.ne.s32.totalorder %s50, %s52
      %p56 = scmp.eq.s32.totalorder %s16, 0
      %p57 = por %p55, %p56
      %p58 = scmp.ne.s32.totalorder %s50, %s52
      %p59 = scmp.eq.s32.totalorder %s21, 3
      %p60 = por %p58, %p59
      %p61 = scmp.ne.s32.totalorder %s52, %s53
      %p62 = scmp.eq.s32.totalorder %s21, 0
      %p63 = por %p61, %p62
      %p64 = scmp.ne.s32.totalorder %s52, %s53
      %p65 = scmp.eq.s32.totalorder %s22, 3
      %p66 = por %p64, %p65
      %p68 = scmp.ne.s32.totalorder %s53, %s67
      %p69 = scmp.eq.s32.totalorder %s22, 0
      %p70 = por %p68, %p69
      %s72 = sadd.s32 %s71, 1
      %p75 = scmp.eq.s32.totalorder %s16, 3
      %p76 = scmp.ne.s32.totalorder %s71, %s73
      %p77 = scmp.eq.s32.totalorder %s16, 0
      %p78 = por %p76, %p77
      %p79 = scmp.ne.s32.totalorder %s71, %s73
      %p80 = scmp.eq.s32.totalorder %s21, 3
      %p81 = por %p79, %p80
      %p82 = scmp.ne.s32.totalorder %s73, %s74
      %p83 = scmp.eq.s32.totalorder %s21, 0
      %p84 = por %p82, %p83
      %p85 = scmp.ne.s32.totalorder %s73, %s74
      %p86 = scmp.eq.s32.totalorder %s22, 3
      %p87 = por %p85, %p86
      %p89 = scmp.ne.s32.totalorder %s74, %s88
      %p90 = scmp.eq.s32.totalorder %s22, 0
      %p91 = por %p89, %p90
      %s92 = ssub.s32 %s16, %s23
      %p93 = scmp.eq.s32.totalorder %s92, 0
      %s95 = sadd.s32 %s94, 1
      %s96 = scalar_select %p93, %s94, %s95
      %p99 = pneg %p93
      %p100 = scmp.eq.s32.totalorder %s16, 3
      %p101 = por %p99, %p100
      %p102 = scmp.ne.s32.totalorder %s94, %s97
      %p103 = scmp.eq.s32.totalorder %s16, 0
      %p104 = por %p102, %p103
      %p105 = scmp.ne.s32.totalorder %s94, %s97
      %p106 = scmp.eq.s32.totalorder %s21, 3
      %p107 = por %p105, %p106
      %p108 = scmp.ne.s32.totalorder %s97, %s98
      %p109 = scmp.eq.s32.totalorder %s21, 0
      %p110 = por %p108, %p109
      %p111 = scmp.ne.s32.totalorder %s97, %s98
      %p112 = scmp.eq.s32.totalorder %s22, 3
      %p113 = por %p111, %p112
      %p115 = scmp.ne.s32.totalorder %s98, %s114
      %p116 = scmp.eq.s32.totalorder %s22, 0
      %p117 = por %p115, %p116
      %p118 = scmp.le.s32.totalorder 1, %s16
      %p119 = scmp.lt.s32.totalorder %s16, 5
      %p120 = pnand %p118, %p119
      %p121 = pneg %p120
      // Predicated region
      $region9: #{tpu_custom_call.1} parent=5 // pred_check
        _
      $region10: #{tpu_custom_call.1} parent=5 // pred_check_branch
        %123 = sbr.rel (%p120) target = $region12
      $region11: #{tpu_custom_call.1} parent=5 // pred_region
        %s124 = ssub.s32 %s16, 1
        // Predicated region
        $region13: #{tpu_custom_call.1} parent=11 // pred_check
          %p125 = pneg %p63
        $region14: #{tpu_custom_call.1} parent=11 // pred_check_branch
          %127 = sbr.rel (%p125) target = $region16
        $region15: #{tpu_custom_call.1} parent=11 // pred_region
          %s129 = ssub.s32 256, 256
          %130 = vsyncadd [#allocation6], %s129
          %s131 = sshll.u32 [#allocation5], 4
          %s132 = int_to_ptr.vmem [resolvable:$true] %s131
          %137 = dma.hbm_to_vmem [thread:$0]  %s1, 256, %s132, [#allocation6], 128, 128, 8
        $region16: #{tpu_custom_call.1} parent=11 // pred_fallthru
          _
        // Predicated region
        $region17: #{tpu_custom_call.1} parent=11 // pred_check
          %p138 = pneg %p84
        $region18: #{tpu_custom_call.1} parent=11 // pred_check_branch
          %140 = sbr.rel (%p138) target = $region20
        $region19: #{tpu_custom_call.1} parent=11 // pred_region
          %s142 = ssub.s32 256, 256
          %143 = vsyncadd [#allocation6], %s142
          %s144 = sshll.u32 [#allocation7], 4
          %s145 = int_to_ptr.vmem [resolvable:$true] %s144
          %150 = dma.hbm_to_vmem [thread:$0]  %s2, 256, %s145, [#allocation6], 128, 128, 8
        $region20: #{tpu_custom_call.1} parent=11 // pred_fallthru
          _
      $region12: #{tpu_custom_call.1} parent=5 // pred_fallthru
        _
      %p151 = scmp.lt.s32.totalorder %s16, 4
      // Predicated region
      $region21: #{tpu_custom_call.1} parent=5 // pred_check
        %p152 = pneg %p151
      $region22: #{tpu_custom_call.1} parent=5 // pred_check_branch
        %154 = sbr.rel (%p152) target = $region24
      $region23: #{tpu_custom_call.1} parent=5 // pred_region
        // Predicated region
        $region25: #{tpu_custom_call.1} parent=23 // pred_check
          %p155 = pneg %p36
        $region26: #{tpu_custom_call.1} parent=23 // pred_check_branch
          %157 = sbr.rel (%p155) target = $region28
        $region27: #{tpu_custom_call.1} parent=23 // pred_region
          %s158 = sand.u32 %s26, 1
          %s159 = scalar_lea.sflag [#allocation3], %s158
          %s160 = sand.u32 %s26, 1
          %s161 = smul.addr %s160, 32
          %s162 = scalar_lea.vmem [#allocation2], %s161
          %s163 = smul.u32 2, %s16
          %s165 = ssub.s32 512, 512
          %166 = vsyncadd %s159, %s165
          %s167 = smul.addr %s163, 2
          %s168 = smul.addr %s167, 128
          %s169 = scalar_lea.hbm %s0, %s168
          %s170 = sshll.u32 %s162, 4
          %s171 = int_to_ptr.vmem [resolvable:$true] %s170
          %176 = dma.hbm_to_vmem [thread:$0]  %s169, 512, %s171, %s159, 128, 128, 8
        $region28: #{tpu_custom_call.1} parent=23 // pred_fallthru
          _
      $region24: #{tpu_custom_call.1} parent=5 // pred_fallthru
        _
      %p177 = scmp.le.s32.totalorder 1, %s16
      %p178 = scmp.lt.s32.totalorder %s16, 5
      %p179 = pnand %p177, %p178
      %p180 = pneg %p179
      // Predicated region
      $region29: #{tpu_custom_call.1} parent=5 // pred_check
        _
      $region30: #{tpu_custom_call.1} parent=5 // pred_check_branch
        %182 = sbr.rel (%p179) target = $region32
      $region31: #{tpu_custom_call.1} parent=5 // pred_region
        %s183 = ssub.s32 %s16, 1
        %s184 = sand.u32 %s29, 1
        %s185 = scalar_lea.sflag [#allocation3], %s184
        %s186 = sand.u32 %s29, 1
        %s187 = smul.addr %s186, 32
        %s188 = scalar_lea.vmem [#allocation2], %s187
        // Predicated region
        $region33: #{tpu_custom_call.1} parent=31 // pred_check
          %p189 = pneg %p42
        $region34: #{tpu_custom_call.1} parent=31 // pred_check_branch
          %191 = sbr.rel (%p189) target = $region36
        $region35: #{tpu_custom_call.1} parent=31 // pred_region
          %192 = dma.done %s185, 512
        $region36: #{tpu_custom_call.1} parent=31 // pred_fallthru
          _
        // Predicated region
        $region37: #{tpu_custom_call.1} parent=31 // pred_check
          %p193 = pneg %p63
        $region38: #{tpu_custom_call.1} parent=31 // pred_check_branch
          %195 = sbr.rel (%p193) target = $region40
        $region39: #{tpu_custom_call.1} parent=31 // pred_region
          %196 = dma.done [#allocation6], 256
        $region40: #{tpu_custom_call.1} parent=31 // pred_fallthru
          _
        // Predicated region
        $region41: #{tpu_custom_call.1} parent=31 // pred_check
          %p197 = pneg %p84
        $region42: #{tpu_custom_call.1} parent=31 // pred_check_branch
          %199 = sbr.rel (%p197) target = $region44
        $region43: #{tpu_custom_call.1} parent=31 // pred_region
          %200 = dma.done [#allocation6], 256
        $region44: #{tpu_custom_call.1} parent=31 // pred_fallthru
          _
        %s201 = sand.u32 %s29, 1
        %s202 = scalar_lea.sflag [#allocation3], %s201
        %s203 = sand.u32 %s29, 1
        %s204 = smul.addr %s203, 32
        %s205 = scalar_lea.vmem [#allocation2], %s204
        %p206 = pneg %p42
        %p207 = pneg %p39
        %p208 = pneg %p63
        %p209 = pneg %p60
        %p210 = pneg %p84
        %p211 = pneg %p81
        %p212 = pneg %p110
        %p213 = pneg %p107
        %s214 = sand.u32 %s97, 1
        %s215 = scalar_lea.sflag [#allocation4], %s214
        %s216 = sand.u32 %s97, 1
        %s217 = smul.addr %s216, 64
        %s218 = scalar_lea.vmem [#allocation8], %s217
        %s219 = smul.u32 2, %s21
        %s220 = smul.u32 2, %s21
        %v221 = vld [vmem:[%s188] sm:$0xff]
        %v222 = vld [vmem:[%s188 + $0x8] sm:$0xff]
        %v223 = vld [vmem:[%s188 + $0x10] sm:$0xff]
        %v224 = vld [vmem:[%s188 + $0x18] sm:$0xff]
        %225 = vxpose.xlu0.b32.start [1/16] %v221, 128
        %226 = vxpose.xlu0.b32.cont [2/16] %v222, 128
        %227 = vxpose.xlu0.b32.cont [3/16] 0.0, 128
        %228 = vxpose.xlu0.b32.cont [4/16] 0.0, 128
        %229 = vxpose.xlu0.b32.cont [5/16] 0.0, 128
        %230 = vxpose.xlu0.b32.cont [6/16] 0.0, 128
        %231 = vxpose.xlu0.b32.cont [7/16] 0.0, 128
        %232 = vxpose.xlu0.b32.cont [8/16] 0.0, 128
        %233 = vxpose.xlu0.b32.cont [9/16] 0.0, 128
        %234 = vxpose.xlu0.b32.cont [10/16] 0.0, 128
        %235 = vxpose.xlu0.b32.cont [11/16] 0.0, 128
        %236 = vxpose.xlu0.b32.cont [12/16] 0.0, 128
        %237 = vxpose.xlu0.b32.cont [13/16] 0.0, 128
        %238 = vxpose.xlu0.b32.cont [14/16] 0.0, 128
        %239 = vxpose.xlu0.b32.cont [15/16] 0.0, 128
        %240 = vxpose.xlu0.b32.end [16/16] 0.0, 128
        %v241 = vpop.trf.xlu0
        %v242 = vpop.trf.xlu0
        %v243 = vpop.trf.xlu0
        %v244 = vpop.trf.xlu0
        %v245 = vpop.trf.xlu0
        %v246 = vpop.trf.xlu0
        %v247 = vpop.trf.xlu0
        %v248 = vpop.trf.xlu0
        %v249 = vpop.trf.xlu0
        %v250 = vpop.trf.xlu0
        %v251 = vpop.trf.xlu0
        %v252 = vpop.trf.xlu0
        %v253 = vpop.trf.xlu0
        %v254 = vpop.trf.xlu0
        %v255 = vpop.trf.xlu0
        %v256 = vpop.trf.xlu0
        %257 = vxpose.xlu0.b32.start [1/16] %v223, 128
        %258 = vxpose.xlu0.b32.cont [2/16] %v224, 128
        %259 = vxpose.xlu0.b32.cont [3/16] 0.0, 128
        %260 = vxpose.xlu0.b32.cont [4/16] 0.0, 128
        %261 = vxpose.xlu0.b32.cont [5/16] 0.0, 128
        %262 = vxpose.xlu0.b32.cont [6/16] 0.0, 128
        %263 = vxpose.xlu0.b32.cont [7/16] 0.0, 128
        %264 = vxpose.xlu0.b32.cont [8/16] 0.0, 128
        %265 = vxpose.xlu0.b32.cont [9/16] 0.0, 128
        %266 = vxpose.xlu0.b32.cont [10/16] 0.0, 128
        %267 = vxpose.xlu0.b32.cont [11/16] 0.0, 128
        %268 = vxpose.xlu0.b32.cont [12/16] 0.0, 128
        %269 = vxpose.xlu0.b32.cont [13/16] 0.0, 128
        %270 = vxpose.xlu0.b32.cont [14/16] 0.0, 128
        %271 = vxpose.xlu0.b32.cont [15/16] 0.0, 128
        %272 = vxpose.xlu0.b32.end [16/16] 0.0, 128
        %v273 = vpop.trf.xlu0
        %v274 = vpop.trf.xlu0
        %v275 = vpop.trf.xlu0
        %v276 = vpop.trf.xlu0
        %v277 = vpop.trf.xlu0
        %v278 = vpop.trf.xlu0
        %v279 = vpop.trf.xlu0
        %v280 = vpop.trf.xlu0
        %v281 = vpop.trf.xlu0
        %v282 = vpop.trf.xlu0
        %v283 = vpop.trf.xlu0
        %v284 = vpop.trf.xlu0
        %v285 = vpop.trf.xlu0
        %v286 = vpop.trf.xlu0
        %v287 = vpop.trf.xlu0
        %v288 = vpop.trf.xlu0
        %v289 = vld [vmem:[#allocation5] sm:$0xff]
        %v290 = vld [vmem:[#allocation5 + $0x8] sm:$0xff]
        %vm291 = vcmask 130048
        %v293 = vsel %vm291, %v241, 0
        %v296 = vsel %vm291, %v242, 0
        %v299 = vsel %vm291, %v273, 0
        %v302 = vsel %vm291, %v274, 0
        %304 = vmatprep.subr.mxu0 0.0
        %v305 = vand.u32 %v289, 4294901760
        %306 = vmatpush1.msra.mxu0 %v305
        %307 = vmatprep.subr.mxu0 0.0
        %v308 = vand.u32 %v290, 4294901760
        %309 = vmatpush1.msra.mxu0 %v308
        %310 = vmatprep.subr.mxu0 0.0
        %311 = vmatpush1.msra.mxu0 0.0
        %312 = vmatprep.subr.mxu0 0.0
        %313 = vmatpush1.msra.mxu0 0.0
        %314 = vmatprep.subr.mxu0 0.0
        %315 = vmatpush1.msra.mxu0 0.0
        %316 = vmatprep.subr.mxu0 0.0
        %317 = vmatpush1.msra.mxu0 0.0
        %318 = vmatprep.subr.mxu0 0.0
        %319 = vmatpush1.msra.mxu0 0.0
        %320 = vmatprep.subr.mxu0 0.0
        %321 = vmatpush1.msra.mxu0 0.0
        %322 = vmatprep.subr.mxu0 0.0
        %323 = vmatpush1.msra.mxu0 0.0
        %324 = vmatprep.subr.mxu0 0.0
        %325 = vmatpush1.msra.mxu0 0.0
        %326 = vmatprep.subr.mxu0 0.0
        %327 = vmatpush1.msra.mxu0 0.0
        %328 = vmatprep.subr.mxu0 0.0
        %329 = vmatpush1.msra.mxu0 0.0
        %330 = vmatprep.subr.mxu0 0.0
        %331 = vmatpush1.msra.mxu0 0.0
        %332 = vmatprep.subr.mxu0 0.0
        %333 = vmatpush1.msra.mxu0 0.0
        %334 = vmatprep.subr.mxu0 0.0
        %335 = vmatpush1.msra.mxu0 0.0
        %336 = vmatprep.subr.mxu0 0.0
        %337 = vmatpush1.msra.mxu0 0.0
        %338 = vmatprep.subr.mxu0 0.0
        %339 = vmatpush1.msra.mxu0 0.0
        %340 = vmatprep.subr.mxu0 0.0
        %341 = vmatpush1.msra.mxu0 0.0
        %342 = vmatprep.subr.mxu0 0.0
        %343 = vmatpush1.msra.mxu0 0.0
        %344 = vmatprep.subr.mxu0 0.0
        %345 = vmatpush1.msra.mxu0 0.0
        %346 = vmatprep.subr.mxu0 0.0
        %347 = vmatpush1.msra.mxu0 0.0
        %348 = vmatprep.subr.mxu0 0.0
        %349 = vmatpush1.msra.mxu0 0.0
        %350 = vmatprep.subr.mxu0 0.0
        %351 = vmatpush1.msra.mxu0 0.0
        %352 = vmatprep.subr.mxu0 0.0
        %353 = vmatpush1.msra.mxu0 0.0
        %354 = vmatprep.subr.mxu0 0.0
        %355 = vmatpush1.msra.mxu0 0.0
        %356 = vmatprep.subr.mxu0 0.0
        %357 = vmatpush1.msra.mxu0 0.0
        %358 = vmatprep.subr.mxu0 0.0
        %359 = vmatpush1.msra.mxu0 0.0
        %360 = vmatprep.subr.mxu0 0.0
        %361 = vmatpush1.msra.mxu0 0.0
        %362 = vmatprep.subr.mxu0 0.0
        %363 = vmatpush1.msra.mxu0 0.0
        %364 = vmatprep.subr.mxu0 0.0
        %365 = vmatpush1.msra.mxu0 0.0
        %366 = vmatprep.subr.mxu0 0.0
        %367 = vmatpush1.msra.mxu0 0.0
        %368 = vmatprep.subr.mxu0 0.0
        %369 = vmatpush1.msra.mxu0 0.0
        %370 = vmatprep.mubr.f32.mxu0 0.0
        %v371 = vand.u32 %v293, 4294901760
        %v372 = vsub.f32 %v293, %v371
        %v373 = vand.u32 %v372, 4294901760
        %v374 = vsub.f32 %v372, %v373
        %v375 = vand.u32 %v374, 4294901760
        %376 = vmatmul.mubr.f32.gmra.mrb[0].mxu0 %v375
        %v377 = vpop.f32.mrb[0].mxu0
        %v378 = vadd.f32 0.0, %v377
        %v379 = vpop.f32.mrb[0].mxu0
        %380 = vmatprep.mubr.f32.mxu0 0.0
        %v381 = vand.u32 %v296, 4294901760
        %v382 = vsub.f32 %v296, %v381
        %v383 = vand.u32 %v382, 4294901760
        %v384 = vsub.f32 %v382, %v383
        %v385 = vand.u32 %v384, 4294901760
        %386 = vmatmul.mubr.f32.gmra.mrb[0].mxu0 %v385
        %v387 = vpop.f32.mrb[0].mxu0
        %v388 = vadd.f32 0.0, %v387
        %v389 = vpop.f32.mrb[0].mxu0
        %390 = vmatprep.mubr.f32.mxu0 0.0
        %v391 = vand.u32 %v299, 4294901760
        %v392 = vsub.f32 %v299, %v391
        %v393 = vand.u32 %v392, 4294901760
        %v394 = vsub.f32 %v392, %v393
        %v395 = vand.u32 %v394, 4294901760
        %396 = vmatmul.mubr.f32.gmra.mrb[0].mxu0 %v395
        %v397 = vpop.f32.mrb[0].mxu0
        %v398 = vadd.f32 0.0, %v397
        %v399 = vpop.f32.mrb[0].mxu0
        %400 = vmatprep.mubr.f32.mxu0 0.0
        %v401 = vand.u32 %v302, 4294901760
        %v402 = vsub.f32 %v302, %v401
        %v403 = vand.u32 %v402, 4294901760
        %v404 = vsub.f32 %v402, %v403
        %v405 = vand.u32 %v404, 4294901760
        %406 = vmatmul.mubr.f32.gmra.mrb[0].mxu0 %v405
        %v407 = vpop.f32.mrb[0].mxu0
        %v408 = vadd.f32 0.0, %v407
        %v409 = vpop.f32.mrb[0].mxu0
        %410 = vdwg.mxu0
        %411 = vmatprep.subr.mxu0 0.0
        %v412 = vand.u32 %v289, 4294901760
        %v413 = vsub.f32 %v289, %v412
        %v414 = vand.u32 %v413, 4294901760
        %v415 = vsub.f32 %v413, %v414
        %v416 = vand.u32 %v415, 4294901760
        %417 = vmatpush1.msra.mxu0 %v416
        %418 = vmatprep.subr.mxu0 0.0
        %v419 = vand.u32 %v290, 4294901760
        %v420 = vsub.f32 %v290, %v419
        %v421 = vand.u32 %v420, 4294901760
        %v422 = vsub.f32 %v420, %v421
        %v423 = vand.u32 %v422, 4294901760
        %424 = vmatpush1.msra.mxu0 %v423
        %425 = vmatprep.subr.mxu0 0.0
        %426 = vmatpush1.msra.mxu0 0.0
        %427 = vmatprep.subr.mxu0 0.0
        %428 = vmatpush1.msra.mxu0 0.0
        %429 = vmatprep.subr.mxu0 0.0
        %430 = vmatpush1.msra.mxu0 0.0
        %431 = vmatprep.subr.mxu0 0.0
        %432 = vmatpush1.msra.mxu0 0.0
        %433 = vmatprep.subr.mxu0 0.0
        %434 = vmatpush1.msra.mxu0 0.0
        %435 = vmatprep.subr.mxu0 0.0
        %436 = vmatpush1.msra.mxu0 0.0
        %437 = vmatprep.subr.mxu0 0.0
        %438 = vmatpush1.msra.mxu0 0.0
        %439 = vmatprep.subr.mxu0 0.0
        %440 = vmatpush1.msra.mxu0 0.0
        %441 = vmatprep.subr.mxu0 0.0
        %442 = vmatpush1.msra.mxu0 0.0
        %443 = vmatprep.subr.mxu0 0.0
        %444 = vmatpush1.msra.mxu0 0.0
        %445 = vmatprep.subr.mxu0 0.0
        %446 = vmatpush1.msra.mxu0 0.0
        %447 = vmatprep.subr.mxu0 0.0
        %448 = vmatpush1.msra.mxu0 0.0
        %449 = vmatprep.subr.mxu0 0.0
        %450 = vmatpush1.msra.mxu0 0.0
        %451 = vmatprep.subr.mxu0 0.0
        %452 = vmatpush1.msra.mxu0 0.0
        %453 = vmatprep.subr.mxu0 0.0
        %454 = vmatpush1.msra.mxu0 0.0
        %455 = vmatprep.subr.mxu0 0.0
        %456 = vmatpush1.msra.mxu0 0.0
        %457 = vmatprep.subr.mxu0 0.0
        %458 = vmatpush1.msra.mxu0 0.0
        %459 = vmatprep.subr.mxu0 0.0
        %460 = vmatpush1.msra.mxu0 0.0
        %461 = vmatprep.subr.mxu0 0.0
        %462 = vmatpush1.msra.mxu0 0.0
        %463 = vmatprep.subr.mxu0 0.0
        %464 = vmatpush1.msra.mxu0 0.0
        %465 = vmatprep.subr.mxu0 0.0
        %466 = vmatpush1.msra.mxu0 0.0
        %467 = vmatprep.subr.mxu0 0.0
        %468 = vmatpush1.msra.mxu0 0.0
        %469 = vmatprep.subr.mxu0 0.0
        %470 = vmatpush1.msra.mxu0 0.0
        %471 = vmatprep.subr.mxu0 0.0
        %472 = vmatpush1.msra.mxu0 0.0
        %473 = vmatprep.subr.mxu0 0.0
        %474 = vmatpush1.msra.mxu0 0.0
        %475 = vmatprep.subr.mxu0 0.0
        %476 = vmatpush1.msra.mxu0 0.0
        %477 = vmatprep.subr.mxu0 0.0
        %478 = vmatpush1.msra.mxu0 0.0
        %479 = vmatprep.subr.mxu0 0.0
        %480 = vmatpush1.msra.mxu0 0.0
        %481 = vmatprep.subr.mxu0 0.0
        %482 = vmatpush1.msra.mxu0 0.0
        %483 = vmatprep.subr.mxu0 0.0
        %484 = vmatpush1.msra.mxu0 0.0
        %485 = vmatprep.mubr.f32.mxu0 0.0
        %v486 = vand.u32 %v293, 4294901760
        %487 = vmatmul.mubr.f32.gmra.mrb[0].mxu0 %v486
        %v488 = vpop.f32.mrb[0].mxu0
        %v489 = vadd.f32 %v378, %v488
        %v490 = vpop.f32.mrb[0].mxu0
        %491 = vmatprep.mubr.f32.mxu0 0.0
        %v492 = vand.u32 %v296, 4294901760
        %493 = vmatmul.mubr.f32.gmra.mrb[0].mxu0 %v492
        %v494 = vpop.f32.mrb[0].mxu0
        %v495 = vadd.f32 %v388, %v494
        %v496 = vpop.f32.mrb[0].mxu0
        %497 = vmatprep.mubr.f32.mxu0 0.0
        %v498 = vand.u32 %v299, 4294901760
        %499 = vmatmul.mubr.f32.gmra.mrb[0].mxu0 %v498
        %v500 = vpop.f32.mrb[0].mxu0
        %v501 = vadd.f32 %v398, %v500
        %v502 = vpop.f32.mrb[0].mxu0
        %503 = vmatprep.mubr.f32.mxu0 0.0
        %v504 = vand.u32 %v302, 4294901760
        %505 = vmatmul.mubr.f32.gmra.mrb[0].mxu0 %v504
        %v506 = vpop.f32.mrb[0].mxu0
        %v507 = vadd.f32 %v408, %v506
        %v508 = vpop.f32.mrb[0].mxu0
        %509 = vdwg.mxu0
        %510 = vmatprep.subr.mxu0 0.0
        %v511 = vand.u32 %v289, 4294901760
        %v512 = vsub.f32 %v289, %v511
        %513 = vmatpush1.msra.mxu0 %v512
        %514 = vmatprep.subr.mxu0 0.0
        %v515 = vand.u32 %v290, 4294901760
        %v516 = vsub.f32 %v290, %v515
        %517 = vmatpush1.msra.mxu0 %v516
        %518 = vmatprep.subr.mxu0 0.0
        %519 = vmatpush1.msra.mxu0 0.0
        %520 = vmatprep.subr.mxu0 0.0
        %521 = vmatpush1.msra.mxu0 0.0
        %522 = vmatprep.subr.mxu0 0.0
        %523 = vmatpush1.msra.mxu0 0.0
        %524 = vmatprep.subr.mxu0 0.0
        %525 = vmatpush1.msra.mxu0 0.0
        %526 = vmatprep.subr.mxu0 0.0
        %527 = vmatpush1.msra.mxu0 0.0
        %528 = vmatprep.subr.mxu0 0.0
        %529 = vmatpush1.msra.mxu0 0.0
        %530 = vmatprep.subr.mxu0 0.0
        %531 = vmatpush1.msra.mxu0 0.0
        %532 = vmatprep.subr.mxu0 0.0
        %533 = vmatpush1.msra.mxu0 0.0
        %534 = vmatprep.subr.mxu0 0.0
        %535 = vmatpush1.msra.mxu0 0.0
        %536 = vmatprep.subr.mxu0 0.0
        %537 = vmatpush1.msra.mxu0 0.0
        %538 = vmatprep.subr.mxu0 0.0
        %539 = vmatpush1.msra.mxu0 0.0
        %540 = vmatprep.subr.mxu0 0.0
        %541 = vmatpush1.msra.mxu0 0.0
        %542 = vmatprep.subr.mxu0 0.0
        %543 = vmatpush1.msra.mxu0 0.0
        %544 = vmatprep.subr.mxu0 0.0
        %545 = vmatpush1.msra.mxu0 0.0
        %546 = vmatprep.subr.mxu0 0.0
        %547 = vmatpush1.msra.mxu0 0.0
        %548 = vmatprep.subr.mxu0 0.0
        %549 = vmatpush1.msra.mxu0 0.0
        %550 = vmatprep.subr.mxu0 0.0
        %551 = vmatpush1.msra.mxu0 0.0
        %552 = vmatprep.subr.mxu0 0.0
        %553 = vmatpush1.msra.mxu0 0.0
        %554 = vmatprep.subr.mxu0 0.0
        %555 = vmatpush1.msra.mxu0 0.0
        %556 = vmatprep.subr.mxu0 0.0
        %557 = vmatpush1.msra.mxu0 0.0
        %558 = vmatprep.subr.mxu0 0.0
        %559 = vmatpush1.msra.mxu0 0.0
        %560 = vmatprep.subr.mxu0 0.0
        %561 = vmatpush1.msra.mxu0 0.0
        %562 = vmatprep.subr.mxu0 0.0
        %563 = vmatpush1.msra.mxu0 0.0
        %564 = vmatprep.subr.mxu0 0.0
        %565 = vmatpush1.msra.mxu0 0.0
        %566 = vmatprep.subr.mxu0 0.0
        %567 = vmatpush1.msra.mxu0 0.0
        %568 = vmatprep.subr.mxu0 0.0
        %569 = vmatpush1.msra.mxu0 0.0
        %570 = vmatprep.subr.mxu0 0.0
        %571 = vmatpush1.msra.mxu0 0.0
        %572 = vmatprep.subr.mxu0 0.0
        %573 = vmatpush1.msra.mxu0 0.0
        %574 = vmatprep.subr.mxu0 0.0
        %575 = vmatpush1.msra.mxu0 0.0
        %576 = vmatprep.subr.mxu0 0.0
        %577 = vmatpush1.msra.mxu0 0.0
        %578 = vmatprep.mubr.f32.mxu0 0.0
        %v579 = vand.u32 %v293, 4294901760
        %v580 = vsub.f32 %v293, %v579
        %581 = vmatmul.mubr.f32.gmra.mrb[0].mxu0 %v580
        %v582 = vpop.f32.mrb[0].mxu0
        %v583 = vadd.f32 %v489, %v582
        %v584 = vpop.f32.mrb[0].mxu0
        %585 = vmatprep.mubr.f32.mxu0 0.0
        %v586 = vand.u32 %v296, 4294901760
        %v587 = vsub.f32 %v296, %v586
        %588 = vmatmul.mubr.f32.gmra.mrb[0].mxu0 %v587
        %v589 = vpop.f32.mrb[0].mxu0
        %v590 = vadd.f32 %v495, %v589
        %v591 = vpop.f32.mrb[0].mxu0
        %592 = vmatprep.mubr.f32.mxu0 0.0
        %v593 = vand.u32 %v299, 4294901760
        %v594 = vsub.f32 %v299, %v593
        %595 = vmatmul.mubr.f32.gmra.mrb[0].mxu0 %v594
        %v596 = vpop.f32.mrb[0].mxu0
        %v597 = vadd.f32 %v501, %v596
        %v598 = vpop.f32.mrb[0].mxu0
        %599 = vmatprep.mubr.f32.mxu0 0.0
        %v600 = vand.u32 %v302, 4294901760
        %v601 = vsub.f32 %v302, %v600
        %602 = vmatmul.mubr.f32.gmra.mrb[0].mxu0 %v601
        %v603 = vpop.f32.mrb[0].mxu0
        %v604 = vadd.f32 %v507, %v603
        %v605 = vpop.f32.mrb[0].mxu0
        %606 = vdwg.mxu0
        %607 = vmatprep.subr.mxu0 0.0
        %v608 = vand.u32 %v289, 4294901760
        %609 = vmatpush1.msra.mxu0 %v608
        %610 = vmatprep.subr.mxu0 0.0
        %v611 = vand.u32 %v290, 4294901760
        %612 = vmatpush1.msra.mxu0 %v611
        %613 = vmatprep.subr.mxu0 0.0
        %614 = vmatpush1.msra.mxu0 0.0
        %615 = vmatprep.subr.mxu0 0.0
        %616 = vmatpush1.msra.mxu0 0.0
        %617 = vmatprep.subr.mxu0 0.0
        %618 = vmatpush1.msra.mxu0 0.0
        %619 = vmatprep.subr.mxu0 0.0
        %620 = vmatpush1.msra.mxu0 0.0
        %621 = vmatprep.subr.mxu0 0.0
        %622 = vmatpush1.msra.mxu0 0.0
        %623 = vmatprep.subr.mxu0 0.0
        %624 = vmatpush1.msra.mxu0 0.0
        %625 = vmatprep.subr.mxu0 0.0
        %626 = vmatpush1.msra.mxu0 0.0
        %627 = vmatprep.subr.mxu0 0.0
        %628 = vmatpush1.msra.mxu0 0.0
        %629 = vmatprep.subr.mxu0 0.0
        %630 = vmatpush1.msra.mxu0 0.0
        %631 = vmatprep.subr.mxu0 0.0
        %632 = vmatpush1.msra.mxu0 0.0
        %633 = vmatprep.subr.mxu0 0.0
        %634 = vmatpush1.msra.mxu0 0.0
        %635 = vmatprep.subr.mxu0 0.0
        %636 = vmatpush1.msra.mxu0 0.0
        %637 = vmatprep.subr.mxu0 0.0
        %638 = vmatpush1.msra.mxu0 0.0
        %639 = vmatprep.subr.mxu0 0.0
        %640 = vmatpush1.msra.mxu0 0.0
        %641 = vmatprep.subr.mxu0 0.0
        %642 = vmatpush1.msra.mxu0 0.0
        %643 = vmatprep.subr.mxu0 0.0
        %644 = vmatpush1.msra.mxu0 0.0
        %645 = vmatprep.subr.mxu0 0.0
        %646 = vmatpush1.msra.mxu0 0.0
        %647 = vmatprep.subr.mxu0 0.0
        %648 = vmatpush1.msra.mxu0 0.0
        %649 = vmatprep.subr.mxu0 0.0
        %650 = vmatpush1.msra.mxu0 0.0
        %651 = vmatprep.subr.mxu0 0.0
        %652 = vmatpush1.msra.mxu0 0.0
        %653 = vmatprep.subr.mxu0 0.0
        %654 = vmatpush1.msra.mxu0 0.0
        %655 = vmatprep.subr.mxu0 0.0
        %656 = vmatpush1.msra.mxu0 0.0
        %657 = vmatprep.subr.mxu0 0.0
        %658 = vmatpush1.msra.mxu0 0.0
        %659 = vmatprep.subr.mxu0 0.0
        %660 = vmatpush1.msra.mxu0 0.0
        %661 = vmatprep.subr.mxu0 0.0
        %662 = vmatpush1.msra.mxu0 0.0
        %663 = vmatprep.subr.mxu0 0.0
        %664 = vmatpush1.msra.mxu0 0.0
        %665 = vmatprep.subr.mxu0 0.0
        %666 = vmatpush1.msra.mxu0 0.0
        %667 = vmatprep.subr.mxu0 0.0
        %668 = vmatpush1.msra.mxu0 0.0
        %669 = vmatprep.subr.mxu0 0.0
        %670 = vmatpush1.msra.mxu0 0.0
        %671 = vmatprep.subr.mxu0 0.0
        %672 = vmatpush1.msra.mxu0 0.0
        %673 = vmatprep.mubr.f32.mxu0 0.0
        %v674 = vand.u32 %v293, 4294901760
        %v675 = vsub.f32 %v293, %v674
        %v676 = vand.u32 %v675, 4294901760
        %677 = vmatmul.mubr.f32.gmra.mrb[0].mxu0 %v676
        %v678 = vpop.f32.mrb[0].mxu0
        %v679 = vadd.f32 %v583, %v678
        %v680 = vpop.f32.mrb[0].mxu0
        %681 = vmatprep.mubr.f32.mxu0 0.0
        %v682 = vand.u32 %v296, 4294901760
        %v683 = vsub.f32 %v296, %v682
        %v684 = vand.u32 %v683, 4294901760
        %685 = vmatmul.mubr.f32.gmra.mrb[0].mxu0 %v684
        %v686 = vpop.f32.mrb[0].mxu0
        %v687 = vadd.f32 %v590, %v686
        %v688 = vpop.f32.mrb[0].mxu0
        %689 = vmatprep.mubr.f32.mxu0 0.0
        %v690 = vand.u32 %v299, 4294901760
        %v691 = vsub.f32 %v299, %v690
        %v692 = vand.u32 %v691, 4294901760
        %693 = vmatmul.mubr.f32.gmra.mrb[0].mxu0 %v692
        %v694 = vpop.f32.mrb[0].mxu0
        %v695 = vadd.f32 %v597, %v694
        %v696 = vpop.f32.mrb[0].mxu0
        %697 = vmatprep.mubr.f32.mxu0 0.0
        %v698 = vand.u32 %v302, 4294901760
        %v699 = vsub.f32 %v302, %v698
        %v700 = vand.u32 %v699, 4294901760
        %701 = vmatmul.mubr.f32.gmra.mrb[0].mxu0 %v700
        %v702 = vpop.f32.mrb[0].mxu0
        %v703 = vadd.f32 %v604, %v702
        %v704 = vpop.f32.mrb[0].mxu0
        %705 = vdwg.mxu0
        %706 = vmatprep.subr.mxu0 0.0
        %v707 = vand.u32 %v289, 4294901760
        %v708 = vsub.f32 %v289, %v707
        %v709 = vand.u32 %v708, 4294901760
        %710 = vmatpush1.msra.mxu0 %v709
        %711 = vmatprep.subr.mxu0 0.0
        %v712 = vand.u32 %v290, 4294901760
        %v713 = vsub.f32 %v290, %v712
        %v714 = vand.u32 %v713, 4294901760
        %715 = vmatpush1.msra.mxu0 %v714
        %716 = vmatprep.subr.mxu0 0.0
        %717 = vmatpush1.msra.mxu0 0.0
        %718 = vmatprep.subr.mxu0 0.0
        %719 = vmatpush1.msra.mxu0 0.0
        %720 = vmatprep.subr.mxu0 0.0
        %721 = vmatpush1.msra.mxu0 0.0
        %722 = vmatprep.subr.mxu0 0.0
        %723 = vmatpush1.msra.mxu0 0.0
        %724 = vmatprep.subr.mxu0 0.0
        %725 = vmatpush1.msra.mxu0 0.0
        %726 = vmatprep.subr.mxu0 0.0
        %727 = vmatpush1.msra.mxu0 0.0
        %728 = vmatprep.subr.mxu0 0.0
        %729 = vmatpush1.msra.mxu0 0.0
        %730 = vmatprep.subr.mxu0 0.0
        %731 = vmatpush1.msra.mxu0 0.0
        %732 = vmatprep.subr.mxu0 0.0
        %733 = vmatpush1.msra.mxu0 0.0
        %734 = vmatprep.subr.mxu0 0.0
        %735 = vmatpush1.msra.mxu0 0.0
        %736 = vmatprep.subr.mxu0 0.0
        %737 = vmatpush1.msra.mxu0 0.0
        %738 = vmatprep.subr.mxu0 0.0
        %739 = vmatpush1.msra.mxu0 0.0
        %740 = vmatprep.subr.mxu0 0.0
        %741 = vmatpush1.msra.mxu0 0.0
        %742 = vmatprep.subr.mxu0 0.0
        %743 = vmatpush1.msra.mxu0 0.0
        %744 = vmatprep.subr.mxu0 0.0
        %745 = vmatpush1.msra.mxu0 0.0
        %746 = vmatprep.subr.mxu0 0.0
        %747 = vmatpush1.msra.mxu0 0.0
        %748 = vmatprep.subr.mxu0 0.0
        %749 = vmatpush1.msra.mxu0 0.0
        %750 = vmatprep.subr.mxu0 0.0
        %751 = vmatpush1.msra.mxu0 0.0
        %752 = vmatprep.subr.mxu0 0.0
        %753 = vmatpush1.msra.mxu0 0.0
        %754 = vmatprep.subr.mxu0 0.0
        %755 = vmatpush1.msra.mxu0 0.0
        %756 = vmatprep.subr.mxu0 0.0
        %757 = vmatpush1.msra.mxu0 0.0
        %758 = vmatprep.subr.mxu0 0.0
        %759 = vmatpush1.msra.mxu0 0.0
        %760 = vmatprep.subr.mxu0 0.0
        %761 = vmatpush1.msra.mxu0 0.0
        %762 = vmatprep.subr.mxu0 0.0
        %763 = vmatpush1.msra.mxu0 0.0
        %764 = vmatprep.subr.mxu0 0.0
        %765 = vmatpush1.msra.mxu0 0.0
        %766 = vmatprep.subr.mxu0 0.0
        %767 = vmatpush1.msra.mxu0 0.0
        %768 = vmatprep.subr.mxu0 0.0
        %769 = vmatpush1.msra.mxu0 0.0
        %770 = vmatprep.subr.mxu0 0.0
        %771 = vmatpush1.msra.mxu0 0.0
        %772 = vmatprep.subr.mxu0 0.0
        %773 = vmatpush1.msra.mxu0 0.0
        %774 = vmatprep.subr.mxu0 0.0
        %775 = vmatpush1.msra.mxu0 0.0
        %776 = vmatprep.mubr.f32.mxu0 0.0
        %v777 = vand.u32 %v293, 4294901760
        %778 = vmatmul.mubr.f32.gmra.mrb[0].mxu0 %v777
        %v779 = vpop.f32.mrb[0].mxu0
        %v780 = vadd.f32 %v679, %v779
        %v781 = vpop.f32.mrb[0].mxu0
        %782 = vmatprep.mubr.f32.mxu0 0.0
        %v783 = vand.u32 %v296, 4294901760
        %784 = vmatmul.mubr.f32.gmra.mrb[0].mxu0 %v783
        %v785 = vpop.f32.mrb[0].mxu0
        %v786 = vadd.f32 %v687, %v785
        %v787 = vpop.f32.mrb[0].mxu0
        %788 = vmatprep.mubr.f32.mxu0 0.0
        %v789 = vand.u32 %v299, 4294901760
        %790 = vmatmul.mubr.f32.gmra.mrb[0].mxu0 %v789
        %v791 = vpop.f32.mrb[0].mxu0
        %v792 = vadd.f32 %v695, %v791
        %v793 = vpop.f32.mrb[0].mxu0
        %794 = vmatprep.mubr.f32.mxu0 0.0
        %v795 = vand.u32 %v302, 4294901760
        %796 = vmatmul.mubr.f32.gmra.mrb[0].mxu0 %v795
        %v797 = vpop.f32.mrb[0].mxu0
        %v798 = vadd.f32 %v703, %v797
        %v799 = vpop.f32.mrb[0].mxu0
        %800 = vdwg.mxu0
        %801 = vmatprep.subr.mxu0 0.0
        %v802 = vand.u32 %v289, 4294901760
        %803 = vmatpush1.msra.mxu0 %v802
        %804 = vmatprep.subr.mxu0 0.0
        %v805 = vand.u32 %v290, 4294901760
        %806 = vmatpush1.msra.mxu0 %v805
        %807 = vmatprep.subr.mxu0 0.0
        %808 = vmatpush1.msra.mxu0 0.0
        %809 = vmatprep.subr.mxu0 0.0
        %810 = vmatpush1.msra.mxu0 0.0
        %811 = vmatprep.subr.mxu0 0.0
        %812 = vmatpush1.msra.mxu0 0.0
        %813 = vmatprep.subr.mxu0 0.0
        %814 = vmatpush1.msra.mxu0 0.0
        %815 = vmatprep.subr.mxu0 0.0
        %816 = vmatpush1.msra.mxu0 0.0
        %817 = vmatprep.subr.mxu0 0.0
        %818 = vmatpush1.msra.mxu0 0.0
        %819 = vmatprep.subr.mxu0 0.0
        %820 = vmatpush1.msra.mxu0 0.0
        %821 = vmatprep.subr.mxu0 0.0
        %822 = vmatpush1.msra.mxu0 0.0
        %823 = vmatprep.subr.mxu0 0.0
        %824 = vmatpush1.msra.mxu0 0.0
        %825 = vmatprep.subr.mxu0 0.0
        %826 = vmatpush1.msra.mxu0 0.0
        %827 = vmatprep.subr.mxu0 0.0
        %828 = vmatpush1.msra.mxu0 0.0
        %829 = vmatprep.subr.mxu0 0.0
        %830 = vmatpush1.msra.mxu0 0.0
        %831 = vmatprep.subr.mxu0 0.0
        %832 = vmatpush1.msra.mxu0 0.0
        %833 = vmatprep.subr.mxu0 0.0
        %834 = vmatpush1.msra.mxu0 0.0
        %835 = vmatprep.subr.mxu0 0.0
        %836 = vmatpush1.msra.mxu0 0.0
        %837 = vmatprep.subr.mxu0 0.0
        %838 = vmatpush1.msra.mxu0 0.0
        %839 = vmatprep.subr.mxu0 0.0
        %840 = vmatpush1.msra.mxu0 0.0
        %841 = vmatprep.subr.mxu0 0.0
        %842 = vmatpush1.msra.mxu0 0.0
        %843 = vmatprep.subr.mxu0 0.0
        %844 = vmatpush1.msra.mxu0 0.0
        %845 = vmatprep.subr.mxu0 0.0
        %846 = vmatpush1.msra.mxu0 0.0
        %847 = vmatprep.subr.mxu0 0.0
        %848 = vmatpush1.msra.mxu0 0.0
        %849 = vmatprep.subr.mxu0 0.0
        %850 = vmatpush1.msra.mxu0 0.0
        %851 = vmatprep.subr.mxu0 0.0
        %852 = vmatpush1.msra.mxu0 0.0
        %853 = vmatprep.subr.mxu0 0.0
        %854 = vmatpush1.msra.mxu0 0.0
        %855 = vmatprep.subr.mxu0 0.0
        %856 = vmatpush1.msra.mxu0 0.0
        %857 = vmatprep.subr.mxu0 0.0
        %858 = vmatpush1.msra.mxu0 0.0
        %859 = vmatprep.subr.mxu0 0.0
        %860 = vmatpush1.msra.mxu0 0.0
        %861 = vmatprep.subr.mxu0 0.0
        %862 = vmatpush1.msra.mxu0 0.0
        %863 = vmatprep.subr.mxu0 0.0
        %864 = vmatpush1.msra.mxu0 0.0
        %865 = vmatprep.subr.mxu0 0.0
        %866 = vmatpush1.msra.mxu0 0.0
        %867 = vmatprep.mubr.f32.mxu0 0.0
        %v868 = vand.u32 %v293, 4294901760
        %869 = vmatmul.mubr.f32.gmra.mrb[0].mxu0 %v868
        %v870 = vpop.f32.mrb[0].mxu0
        %v871 = vadd.f32 %v780, %v870
        %v872 = vpop.f32.mrb[0].mxu0
        %873 = vmatprep.mubr.f32.mxu0 0.0
        %v874 = vand.u32 %v296, 4294901760
        %875 = vmatmul.mubr.f32.gmra.mrb[0].mxu0 %v874
        %v876 = vpop.f32.mrb[0].mxu0
        %v877 = vadd.f32 %v786, %v876
        %v878 = vpop.f32.mrb[0].mxu0
        %879 = vmatprep.mubr.f32.mxu0 0.0
        %v880 = vand.u32 %v299, 4294901760
        %881 = vmatmul.mubr.f32.gmra.mrb[0].mxu0 %v880
        %v882 = vpop.f32.mrb[0].mxu0
        %v883 = vadd.f32 %v792, %v882
        %v884 = vpop.f32.mrb[0].mxu0
        %885 = vmatprep.mubr.f32.mxu0 0.0
        %v886 = vand.u32 %v302, 4294901760
        %887 = vmatmul.mubr.f32.gmra.mrb[0].mxu0 %v886
        %v888 = vpop.f32.mrb[0].mxu0
        %v889 = vadd.f32 %v798, %v888
        %v890 = vpop.f32.mrb[0].mxu0
        %891 = vdwg.mxu0
        %892 = vxpose.xlu0.b32.start [1/16] %v871, 128
        %893 = vxpose.xlu0.b32.cont [2/16] %v877, 128
        %894 = vxpose.xlu0.b32.cont [3/16] 0.0, 128
        %895 = vxpose.xlu0.b32.cont [4/16] 0.0, 128
        %896 = vxpose.xlu0.b32.cont [5/16] 0.0, 128
        %897 = vxpose.xlu0.b32.cont [6/16] 0.0, 128
        %898 = vxpose.xlu0.b32.cont [7/16] 0.0, 128
        %899 = vxpose.xlu0.b32.cont [8/16] 0.0, 128
        %900 = vxpose.xlu0.b32.cont [9/16] 0.0, 128
        %901 = vxpose.xlu0.b32.cont [10/16] 0.0, 128
        %902 = vxpose.xlu0.b32.cont [11/16] 0.0, 128
        %903 = vxpose.xlu0.b32.cont [12/16] 0.0, 128
        %904 = vxpose.xlu0.b32.cont [13/16] 0.0, 128
        %905 = vxpose.xlu0.b32.cont [14/16] 0.0, 128
        %906 = vxpose.xlu0.b32.cont [15/16] 0.0, 128
        %907 = vxpose.xlu0.b32.end [16/16] 0.0, 128
        %v908 = vpop.trf.xlu0
        %v909 = vpop.trf.xlu0
        %v910 = vpop.trf.xlu0
        %v911 = vpop.trf.xlu0
        %v912 = vpop.trf.xlu0
        %v913 = vpop.trf.xlu0
        %v914 = vpop.trf.xlu0
        %v915 = vpop.trf.xlu0
        %v916 = vpop.trf.xlu0
        %v917 = vpop.trf.xlu0
        %v918 = vpop.trf.xlu0
        %v919 = vpop.trf.xlu0
        %v920 = vpop.trf.xlu0
        %v921 = vpop.trf.xlu0
        %v922 = vpop.trf.xlu0
        %v923 = vpop.trf.xlu0
        %924 = vxpose.xlu0.b32.start [1/16] %v883, 128
        %925 = vxpose.xlu0.b32.cont [2/16] %v889, 128
        %926 = vxpose.xlu0.b32.cont [3/16] 0.0, 128
        %927 = vxpose.xlu0.b32.cont [4/16] 0.0, 128
        %928 = vxpose.xlu0.b32.cont [5/16] 0.0, 128
        %929 = vxpose.xlu0.b32.cont [6/16] 0.0, 128
        %930 = vxpose.xlu0.b32.cont [7/16] 0.0, 128
        %931 = vxpose.xlu0.b32.cont [8/16] 0.0, 128
        %932 = vxpose.xlu0.b32.cont [9/16] 0.0, 128
        %933 = vxpose.xlu0.b32.cont [10/16] 0.0, 128
        %934 = vxpose.xlu0.b32.cont [11/16] 0.0, 128
        %935 = vxpose.xlu0.b32.cont [12/16] 0.0, 128
        %936 = vxpose.xlu0.b32.cont [13/16] 0.0, 128
        %937 = vxpose.xlu0.b32.cont [14/16] 0.0, 128
        %938 = vxpose.xlu0.b32.cont [15/16] 0.0, 128
        %939 = vxpose.xlu0.b32.end [16/16] 0.0, 128
        %v940 = vpop.trf.xlu0
        %v941 = vpop.trf.xlu0
        %v942 = vpop.trf.xlu0
        %v943 = vpop.trf.xlu0
        %v944 = vpop.trf.xlu0
        %v945 = vpop.trf.xlu0
        %v946 = vpop.trf.xlu0
        %v947 = vpop.trf.xlu0
        %v948 = vpop.trf.xlu0
        %v949 = vpop.trf.xlu0
        %v950 = vpop.trf.xlu0
        %v951 = vpop.trf.xlu0
        %v952 = vpop.trf.xlu0
        %v953 = vpop.trf.xlu0
        %v954 = vpop.trf.xlu0
        %v955 = vpop.trf.xlu0
        %v956 = vld [vmem:[#allocation7] sm:$0xff]
        %v957 = vld [vmem:[#allocation7 + $0x8] sm:$0xff]
        %v959 = vsel %vm291, %v908, 0
        %v962 = vsel %vm291, %v909, 0
        %v965 = vsel %vm291, %v910, 0
        %v968 = vsel %vm291, %v911, 0
        %v971 = vsel %vm291, %v940, 0
        %v974 = vsel %vm291, %v941, 0
        %v977 = vsel %vm291, %v942, 0
        %v980 = vsel %vm291, %v943, 0
        %982 = vmatprep.subr.mxu0 0.0
        %v983 = vand.u32 %v956, 4294901760
        %984 = vmatpush1.msra.mxu0 %v983
        %985 = vmatprep.subr.mxu0 0.0
        %v986 = vand.u32 %v957, 4294901760
        %987 = vmatpush1.msra.mxu0 %v986
        %988 = vmatprep.subr.mxu0 0.0
        %989 = vmatpush1.msra.mxu0 0.0
        %990 = vmatprep.subr.mxu0 0.0
        %991 = vmatpush1.msra.mxu0 0.0
        %992 = vmatprep.subr.mxu0 0.0
        %993 = vmatpush1.msra.mxu0 0.0
        %994 = vmatprep.subr.mxu0 0.0
        %995 = vmatpush1.msra.mxu0 0.0
        %996 = vmatprep.subr.mxu0 0.0
        %997 = vmatpush1.msra.mxu0 0.0
        %998 = vmatprep.subr.mxu0 0.0
        %999 = vmatpush1.msra.mxu0 0.0
        %1000 = vmatprep.subr.mxu0 0.0
        %1001 = vmatpush1.msra.mxu0 0.0
        %1002 = vmatprep.subr.mxu0 0.0
        %1003 = vmatpush1.msra.mxu0 0.0
        %1004 = vmatprep.subr.mxu0 0.0
        %1005 = vmatpush1.msra.mxu0 0.0
        %1006 = vmatprep.subr.mxu0 0.0
        %1007 = vmatpush1.msra.mxu0 0.0
        %1008 = vmatprep.subr.mxu0 0.0
        %1009 = vmatpush1.msra.mxu0 0.0
        %1010 = vmatprep.subr.mxu0 0.0
        %1011 = vmatpush1.msra.mxu0 0.0
        %1012 = vmatprep.subr.mxu0 0.0
        %1013 = vmatpush1.msra.mxu0 0.0
        %1014 = vmatprep.subr.mxu0 0.0
        %1015 = vmatpush1.msra.mxu0 0.0
        %1016 = vmatprep.subr.mxu0 0.0
        %1017 = vmatpush1.msra.mxu0 0.0
        %1018 = vmatprep.subr.mxu0 0.0
        %1019 = vmatpush1.msra.mxu0 0.0
        %1020 = vmatprep.subr.mxu0 0.0
        %1021 = vmatpush1.msra.mxu0 0.0
        %1022 = vmatprep.subr.mxu0 0.0
        %1023 = vmatpush1.msra.mxu0 0.0
        %1024 = vmatprep.subr.mxu0 0.0
        %1025 = vmatpush1.msra.mxu0 0.0
        %1026 = vmatprep.subr.mxu0 0.0
        %1027 = vmatpush1.msra.mxu0 0.0
        %1028 = vmatprep.subr.mxu0 0.0
        %1029 = vmatpush1.msra.mxu0 0.0
        %1030 = vmatprep.subr.mxu0 0.0
        %1031 = vmatpush1.msra.mxu0 0.0
        %1032 = vmatprep.subr.mxu0 0.0
        %1033 = vmatpush1.msra.mxu0 0.0
        %1034 = vmatprep.subr.mxu0 0.0
        %1035 = vmatpush1.msra.mxu0 0.0
        %1036 = vmatprep.subr.mxu0 0.0
        %1037 = vmatpush1.msra.mxu0 0.0
        %1038 = vmatprep.subr.mxu0 0.0
        %1039 = vmatpush1.msra.mxu0 0.0
        %1040 = vmatprep.subr.mxu0 0.0
        %1041 = vmatpush1.msra.mxu0 0.0
        %1042 = vmatprep.subr.mxu0 0.0
        %1043 = vmatpush1.msra.mxu0 0.0
        %1044 = vmatprep.subr.mxu0 0.0
        %1045 = vmatpush1.msra.mxu0 0.0
        %1046 = vmatprep.subr.mxu0 0.0
        %1047 = vmatpush1.msra.mxu0 0.0
        %1048 = vmatprep.mubr.f32.mxu0 0.0
        %v1049 = vand.u32 %v959, 4294901760
        %v1050 = vsub.f32 %v959, %v1049
        %v1051 = vand.u32 %v1050, 4294901760
        %v1052 = vsub.f32 %v1050, %v1051
        %v1053 = vand.u32 %v1052, 4294901760
        %1054 = vmatmul.mubr.f32.gmra.mrb[0].mxu0 %v1053
        %v1055 = vpop.f32.mrb[0].mxu0
        %v1056 = vadd.f32 0.0, %v1055
        %v1057 = vpop.f32.mrb[0].mxu0
        %1058 = vmatprep.mubr.f32.mxu0 0.0
        %v1059 = vand.u32 %v962, 4294901760
        %v1060 = vsub.f32 %v962, %v1059
        %v1061 = vand.u32 %v1060, 4294901760
        %v1062 = vsub.f32 %v1060, %v1061
        %v1063 = vand.u32 %v1062, 4294901760
        %1064 = vmatmul.mubr.f32.gmra.mrb[0].mxu0 %v1063
        %v1065 = vpop.f32.mrb[0].mxu0
        %v1066 = vadd.f32 0.0, %v1065
        %v1067 = vpop.f32.mrb[0].mxu0
        %1068 = vmatprep.mubr.f32.mxu0 0.0
        %v1069 = vand.u32 %v965, 4294901760
        %v1070 = vsub.f32 %v965, %v1069
        %v1071 = vand.u32 %v1070, 4294901760
        %v1072 = vsub.f32 %v1070, %v1071
        %v1073 = vand.u32 %v1072, 4294901760
        %1074 = vmatmul.mubr.f32.gmra.mrb[0].mxu0 %v1073
        %v1075 = vpop.f32.mrb[0].mxu0
        %v1076 = vadd.f32 0.0, %v1075
        %v1077 = vpop.f32.mrb[0].mxu0
        %1078 = vmatprep.mubr.f32.mxu0 0.0
        %v1079 = vand.u32 %v968, 4294901760
        %v1080 = vsub.f32 %v968, %v1079
        %v1081 = vand.u32 %v1080, 4294901760
        %v1082 = vsub.f32 %v1080, %v1081
        %v1083 = vand.u32 %v1082, 4294901760
        %1084 = vmatmul.mubr.f32.gmra.mrb[0].mxu0 %v1083
        %v1085 = vpop.f32.mrb[0].mxu0
        %v1086 = vadd.f32 0.0, %v1085
        %v1087 = vpop.f32.mrb[0].mxu0
        %1088 = vmatprep.mubr.f32.mxu0 0.0
        %v1089 = vand.u32 %v971, 4294901760
        %v1090 = vsub.f32 %v971, %v1089
        %v1091 = vand.u32 %v1090, 4294901760
        %v1092 = vsub.f32 %v1090, %v1091
        %v1093 = vand.u32 %v1092, 4294901760
        %1094 = vmatmul.mubr.f32.gmra.mrb[0].mxu0 %v1093
        %v1095 = vpop.f32.mrb[0].mxu0
        %v1096 = vadd.f32 0.0, %v1095
        %v1097 = vpop.f32.mrb[0].mxu0
        %1098 = vmatprep.mubr.f32.mxu0 0.0
        %v1099 = vand.u32 %v974, 4294901760
        %v1100 = vsub.f32 %v974, %v1099
        %v1101 = vand.u32 %v1100, 4294901760
        %v1102 = vsub.f32 %v1100, %v1101
        %v1103 = vand.u32 %v1102, 4294901760
        %1104 = vmatmul.mubr.f32.gmra.mrb[0].mxu0 %v1103
        %v1105 = vpop.f32.mrb[0].mxu0
        %v1106 = vadd.f32 0.0, %v1105
        %v1107 = vpop.f32.mrb[0].mxu0
        %1108 = vmatprep.mubr.f32.mxu0 0.0
        %v1109 = vand.u32 %v977, 4294901760
        %v1110 = vsub.f32 %v977, %v1109
        %v1111 = vand.u32 %v1110, 4294901760
        %v1112 = vsub.f32 %v1110, %v1111
        %v1113 = vand.u32 %v1112, 4294901760
        %1114 = vmatmul.mubr.f32.gmra.mrb[0].mxu0 %v1113
        %v1115 = vpop.f32.mrb[0].mxu0
        %v1116 = vadd.f32 0.0, %v1115
        %v1117 = vpop.f32.mrb[0].mxu0
        %1118 = vmatprep.mubr.f32.mxu0 0.0
        %v1119 = vand.u32 %v980, 4294901760
        %v1120 = vsub.f32 %v980, %v1119
        %v1121 = vand.u32 %v1120, 4294901760
        %v1122 = vsub.f32 %v1120, %v1121
        %v1123 = vand.u32 %v1122, 4294901760
        %1124 = vmatmul.mubr.f32.gmra.mrb[0].mxu0 %v1123
        %v1125 = vpop.f32.mrb[0].mxu0
        %v1126 = vadd.f32 0.0, %v1125
        %v1127 = vpop.f32.mrb[0].mxu0
        %1128 = vdwg.mxu0
        %1129 = vmatprep.subr.mxu0 0.0
        %v1130 = vand.u32 %v956, 4294901760
        %v1131 = vsub.f32 %v956, %v1130
        %v1132 = vand.u32 %v1131, 4294901760
        %v1133 = vsub.f32 %v1131, %v1132
        %v1134 = vand.u32 %v1133, 4294901760
        %1135 = vmatpush1.msra.mxu0 %v1134
        %1136 = vmatprep.subr.mxu0 0.0
        %v1137 = vand.u32 %v957, 4294901760
        %v1138 = vsub.f32 %v957, %v1137
        %v1139 = vand.u32 %v1138, 4294901760
        %v1140 = vsub.f32 %v1138, %v1139
        %v1141 = vand.u32 %v1140, 4294901760
        %1142 = vmatpush1.msra.mxu0 %v1141
        %1143 = vmatprep.subr.mxu0 0.0
        %1144 = vmatpush1.msra.mxu0 0.0
        %1145 = vmatprep.subr.mxu0 0.0
        %1146 = vmatpush1.msra.mxu0 0.0
        %1147 = vmatprep.subr.mxu0 0.0
        %1148 = vmatpush1.msra.mxu0 0.0
        %1149 = vmatprep.subr.mxu0 0.0
        %1150 = vmatpush1.msra.mxu0 0.0
        %1151 = vmatprep.subr.mxu0 0.0
        %1152 = vmatpush1.msra.mxu0 0.0
        %1153 = vmatprep.subr.mxu0 0.0
        %1154 = vmatpush1.msra.mxu0 0.0
        %1155 = vmatprep.subr.mxu0 0.0
        %1156 = vmatpush1.msra.mxu0 0.0
        %1157 = vmatprep.subr.mxu0 0.0
        %1158 = vmatpush1.msra.mxu0 0.0
        %1159 = vmatprep.subr.mxu0 0.0
        %1160 = vmatpush1.msra.mxu0 0.0
        %1161 = vmatprep.subr.mxu0 0.0
        %1162 = vmatpush1.msra.mxu0 0.0
        %1163 = vmatprep.subr.mxu0 0.0
        %1164 = vmatpush1.msra.mxu0 0.0
        %1165 = vmatprep.subr.mxu0 0.0
        %1166 = vmatpush1.msra.mxu0 0.0
        %1167 = vmatprep.subr.mxu0 0.0
        %1168 = vmatpush1.msra.mxu0 0.0
        %1169 = vmatprep.subr.mxu0 0.0
        %1170 = vmatpush1.msra.mxu0 0.0
        %1171 = vmatprep.subr.mxu0 0.0
        %1172 = vmatpush1.msra.mxu0 0.0
        %1173 = vmatprep.subr.mxu0 0.0
        %1174 = vmatpush1.msra.mxu0 0.0
        %1175 = vmatprep.subr.mxu0 0.0
        %1176 = vmatpush1.msra.mxu0 0.0
        %1177 = vmatprep.subr.mxu0 0.0
        %1178 = vmatpush1.msra.mxu0 0.0
        %1179 = vmatprep.subr.mxu0 0.0
        %1180 = vmatpush1.msra.mxu0 0.0
        %1181 = vmatprep.subr.mxu0 0.0
        %1182 = vmatpush1.msra.mxu0 0.0
        %1183 = vmatprep.subr.mxu0 0.0
        %1184 = vmatpush1.msra.mxu0 0.0
        %1185 = vmatprep.subr.mxu0 0.0
        %1186 = vmatpush1.msra.mxu0 0.0
        %1187 = vmatprep.subr.mxu0 0.0
        %1188 = vmatpush1.msra.mxu0 0.0
        %1189 = vmatprep.subr.mxu0 0.0
        %1190 = vmatpush1.msra.mxu0 0.0
        %1191 = vmatprep.subr.mxu0 0.0
        %1192 = vmatpush1.msra.mxu0 0.0
        %1193 = vmatprep.subr.mxu0 0.0
        %1194 = vmatpush1.msra.mxu0 0.0
        %1195 = vmatprep.subr.mxu0 0.0
        %1196 = vmatpush1.msra.mxu0 0.0
        %1197 = vmatprep.subr.mxu0 0.0
        %1198 = vmatpush1.msra.mxu0 0.0
        %1199 = vmatprep.subr.mxu0 0.0
        %1200 = vmatpush1.msra.mxu0 0.0
        %1201 = vmatprep.subr.mxu0 0.0
        %1202 = vmatpush1.msra.mxu0 0.0
        %1203 = vmatprep.mubr.f32.mxu0 0.0
        %v1204 = vand.u32 %v959, 4294901760
        %1205 = vmatmul.mubr.f32.gmra.mrb[0].mxu0 %v1204
        %v1206 = vpop.f32.mrb[0].mxu0
        %v1207 = vadd.f32 %v1056, %v1206
        %v1208 = vpop.f32.mrb[0].mxu0
        %1209 = vmatprep.mubr.f32.mxu0 0.0
        %v1210 = vand.u32 %v962, 4294901760
        %1211 = vmatmul.mubr.f32.gmra.mrb[0].mxu0 %v1210
        %v1212 = vpop.f32.mrb[0].mxu0
        %v1213 = vadd.f32 %v1066, %v1212
        %v1214 = vpop.f32.mrb[0].mxu0
        %1215 = vmatprep.mubr.f32.mxu0 0.0
        %v1216 = vand.u32 %v965, 4294901760
        %1217 = vmatmul.mubr.f32.gmra.mrb[0].mxu0 %v1216
        %v1218 = vpop.f32.mrb[0].mxu0
        %v1219 = vadd.f32 %v1076, %v1218
        %v1220 = vpop.f32.mrb[0].mxu0
        %1221 = vmatprep.mubr.f32.mxu0 0.0
        %v1222 = vand.u32 %v968, 4294901760
        %1223 = vmatmul.mubr.f32.gmra.mrb[0].mxu0 %v1222
        %v1224 = vpop.f32.mrb[0].mxu0
        %v1225 = vadd.f32 %v1086, %v1224
        %v1226 = vpop.f32.mrb[0].mxu0
        %1227 = vmatprep.mubr.f32.mxu0 0.0
        %v1228 = vand.u32 %v971, 4294901760
        %1229 = vmatmul.mubr.f32.gmra.mrb[0].mxu0 %v1228
        %v1230 = vpop.f32.mrb[0].mxu0
        %v1231 = vadd.f32 %v1096, %v1230
        %v1232 = vpop.f32.mrb[0].mxu0
        %1233 = vmatprep.mubr.f32.mxu0 0.0
        %v1234 = vand.u32 %v974, 4294901760
        %1235 = vmatmul.mubr.f32.gmra.mrb[0].mxu0 %v1234
        %v1236 = vpop.f32.mrb[0].mxu0
        %v1237 = vadd.f32 %v1106, %v1236
        %v1238 = vpop.f32.mrb[0].mxu0
        %1239 = vmatprep.mubr.f32.mxu0 0.0
        %v1240 = vand.u32 %v977, 4294901760
        %1241 = vmatmul.mubr.f32.gmra.mrb[0].mxu0 %v1240
        %v1242 = vpop.f32.mrb[0].mxu0
        %v1243 = vadd.f32 %v1116, %v1242
        %v1244 = vpop.f32.mrb[0].mxu0
        %1245 = vmatprep.mubr.f32.mxu0 0.0
        %v1246 = vand.u32 %v980, 4294901760
        %1247 = vmatmul.mubr.f32.gmra.mrb[0].mxu0 %v1246
        %v1248 = vpop.f32.mrb[0].mxu0
        %v1249 = vadd.f32 %v1126, %v1248
        %v1250 = vpop.f32.mrb[0].mxu0
        %1251 = vdwg.mxu0
        %1252 = vmatprep.subr.mxu0 0.0
        %v1253 = vand.u32 %v956, 4294901760
        %v1254 = vsub.f32 %v956, %v1253
        %1255 = vmatpush1.msra.mxu0 %v1254
        %1256 = vmatprep.subr.mxu0 0.0
        %v1257 = vand.u32 %v957, 4294901760
        %v1258 = vsub.f32 %v957, %v1257
        %1259 = vmatpush1.msra.mxu0 %v1258
        %1260 = vmatprep.subr.mxu0 0.0
        %1261 = vmatpush1.msra.mxu0 0.0
        %1262 = vmatprep.subr.mxu0 0.0
        %1263 = vmatpush1.msra.mxu0 0.0
        %1264 = vmatprep.subr.mxu0 0.0
        %1265 = vmatpush1.msra.mxu0 0.0
        %1266 = vmatprep.subr.mxu0 0.0
        %1267 = vmatpush1.msra.mxu0 0.0
        %1268 = vmatprep.subr.mxu0 0.0
        %1269 = vmatpush1.msra.mxu0 0.0
        %1270 = vmatprep.subr.mxu0 0.0
        %1271 = vmatpush1.msra.mxu0 0.0
        %1272 = vmatprep.subr.mxu0 0.0
        %1273 = vmatpush1.msra.mxu0 0.0
        %1274 = vmatprep.subr.mxu0 0.0
        %1275 = vmatpush1.msra.mxu0 0.0
        %1276 = vmatprep.subr.mxu0 0.0
        %1277 = vmatpush1.msra.mxu0 0.0
        %1278 = vmatprep.subr.mxu0 0.0
        %1279 = vmatpush1.msra.mxu0 0.0
        %1280 = vmatprep.subr.mxu0 0.0
        %1281 = vmatpush1.msra.mxu0 0.0
        %1282 = vmatprep.subr.mxu0 0.0
        %1283 = vmatpush1.msra.mxu0 0.0
        %1284 = vmatprep.subr.mxu0 0.0
        %1285 = vmatpush1.msra.mxu0 0.0
        %1286 = vmatprep.subr.mxu0 0.0
        %1287 = vmatpush1.msra.mxu0 0.0
        %1288 = vmatprep.subr.mxu0 0.0
        %1289 = vmatpush1.msra.mxu0 0.0
        %1290 = vmatprep.subr.mxu0 0.0
        %1291 = vmatpush1.msra.mxu0 0.0
        %1292 = vmatprep.subr.mxu0 0.0
        %1293 = vmatpush1.msra.mxu0 0.0
        %1294 = vmatprep.subr.mxu0 0.0
        %1295 = vmatpush1.msra.mxu0 0.0
        %1296 = vmatprep.subr.mxu0 0.0
        %1297 = vmatpush1.msra.mxu0 0.0
        %1298 = vmatprep.subr.mxu0 0.0
        %1299 = vmatpush1.msra.mxu0 0.0
        %1300 = vmatprep.subr.mxu0 0.0
        %1301 = vmatpush1.msra.mxu0 0.0
        %1302 = vmatprep.subr.mxu0 0.0
        %1303 = vmatpush1.msra.mxu0 0.0
        %1304 = vmatprep.subr.mxu0 0.0
        %1305 = vmatpush1.msra.mxu0 0.0
        %1306 = vmatprep.subr.mxu0 0.0
        %1307 = vmatpush1.msra.mxu0 0.0
        %1308 = vmatprep.subr.mxu0 0.0
        %1309 = vmatpush1.msra.mxu0 0.0
        %1310 = vmatprep.subr.mxu0 0.0
        %1311 = vmatpush1.msra.mxu0 0.0
        %1312 = vmatprep.subr.mxu0 0.0
        %1313 = vmatpush1.msra.mxu0 0.0
        %1314 = vmatprep.subr.mxu0 0.0
        %1315 = vmatpush1.msra.mxu0 0.0
        %1316 = vmatprep.subr.mxu0 0.0
        %1317 = vmatpush1.msra.mxu0 0.0
        %1318 = vmatprep.subr.mxu0 0.0
        %1319 = vmatpush1.msra.mxu0 0.0
        %1320 = vmatprep.mubr.f32.mxu0 0.0
        %v1321 = vand.u32 %v959, 4294901760
        %v1322 = vsub.f32 %v959, %v1321
        %1323 = vmatmul.mubr.f32.gmra.mrb[0].mxu0 %v1322
        %v1324 = vpop.f32.mrb[0].mxu0
        %v1325 = vadd.f32 %v1207, %v1324
        %v1326 = vpop.f32.mrb[0].mxu0
        %1327 = vmatprep.mubr.f32.mxu0 0.0
        %v1328 = vand.u32 %v962, 4294901760
        %v1329 = vsub.f32 %v962, %v1328
        %1330 = vmatmul.mubr.f32.gmra.mrb[0].mxu0 %v1329
        %v1331 = vpop.f32.mrb[0].mxu0
        %v1332 = vadd.f32 %v1213, %v1331
        %v1333 = vpop.f32.mrb[0].mxu0
        %1334 = vmatprep.mubr.f32.mxu0 0.0
        %v1335 = vand.u32 %v965, 4294901760
        %v1336 = vsub.f32 %v965, %v1335
        %1337 = vmatmul.mubr.f32.gmra.mrb[0].mxu0 %v1336
        %v1338 = vpop.f32.mrb[0].mxu0
        %v1339 = vadd.f32 %v1219, %v1338
        %v1340 = vpop.f32.mrb[0].mxu0
        %1341 = vmatprep.mubr.f32.mxu0 0.0
        %v1342 = vand.u32 %v968, 4294901760
        %v1343 = vsub.f32 %v968, %v1342
        %1344 = vmatmul.mubr.f32.gmra.mrb[0].mxu0 %v1343
        %v1345 = vpop.f32.mrb[0].mxu0
        %v1346 = vadd.f32 %v1225, %v1345
        %v1347 = vpop.f32.mrb[0].mxu0
        %1348 = vmatprep.mubr.f32.mxu0 0.0
        %v1349 = vand.u32 %v971, 4294901760
        %v1350 = vsub.f32 %v971, %v1349
        %1351 = vmatmul.mubr.f32.gmra.mrb[0].mxu0 %v1350
        %v1352 = vpop.f32.mrb[0].mxu0
        %v1353 = vadd.f32 %v1231, %v1352
        %v1354 = vpop.f32.mrb[0].mxu0
        %1355 = vmatprep.mubr.f32.mxu0 0.0
        %v1356 = vand.u32 %v974, 4294901760
        %v1357 = vsub.f32 %v974, %v1356
        %1358 = vmatmul.mubr.f32.gmra.mrb[0].mxu0 %v1357
        %v1359 = vpop.f32.mrb[0].mxu0
        %v1360 = vadd.f32 %v1237, %v1359
        %v1361 = vpop.f32.mrb[0].mxu0
        %1362 = vmatprep.mubr.f32.mxu0 0.0
        %v1363 = vand.u32 %v977, 4294901760
        %v1364 = vsub.f32 %v977, %v1363
        %1365 = vmatmul.mubr.f32.gmra.mrb[0].mxu0 %v1364
        %v1366 = vpop.f32.mrb[0].mxu0
        %v1367 = vadd.f32 %v1243, %v1366
        %v1368 = vpop.f32.mrb[0].mxu0
        %1369 = vmatprep.mubr.f32.mxu0 0.0
        %v1370 = vand.u32 %v980, 4294901760
        %v1371 = vsub.f32 %v980, %v1370
        %1372 = vmatmul.mubr.f32.gmra.mrb[0].mxu0 %v1371
        %v1373 = vpop.f32.mrb[0].mxu0
        %v1374 = vadd.f32 %v1249, %v1373
        %v1375 = vpop.f32.mrb[0].mxu0
        %1376 = vdwg.mxu0
        %1377 = vmatprep.subr.mxu0 0.0
        %v1378 = vand.u32 %v956, 4294901760
        %1379 = vmatpush1.msra.mxu0 %v1378
        %1380 = vmatprep.subr.mxu0 0.0
        %v1381 = vand.u32 %v957, 4294901760
        %1382 = vmatpush1.msra.mxu0 %v1381
        %1383 = vmatprep.subr.mxu0 0.0
        %1384 = vmatpush1.msra.mxu0 0.0
        %1385 = vmatprep.subr.mxu0 0.0
        %1386 = vmatpush1.msra.mxu0 0.0
        %1387 = vmatprep.subr.mxu0 0.0
        %1388 = vmatpush1.msra.mxu0 0.0
        %1389 = vmatprep.subr.mxu0 0.0
        %1390 = vmatpush1.msra.mxu0 0.0
        %1391 = vmatprep.subr.mxu0 0.0
        %1392 = vmatpush1.msra.mxu0 0.0
        %1393 = vmatprep.subr.mxu0 0.0
        %1394 = vmatpush1.msra.mxu0 0.0
        %1395 = vmatprep.subr.mxu0 0.0
        %1396 = vmatpush1.msra.mxu0 0.0
        %1397 = vmatprep.subr.mxu0 0.0
        %1398 = vmatpush1.msra.mxu0 0.0
        %1399 = vmatprep.subr.mxu0 0.0
        %1400 = vmatpush1.msra.mxu0 0.0
        %1401 = vmatprep.subr.mxu0 0.0
        %1402 = vmatpush1.msra.mxu0 0.0
        %1403 = vmatprep.subr.mxu0 0.0
        %1404 = vmatpush1.msra.mxu0 0.0
        %1405 = vmatprep.subr.mxu0 0.0
        %1406 = vmatpush1.msra.mxu0 0.0
        %1407 = vmatprep.subr.mxu0 0.0
        %1408 = vmatpush1.msra.mxu0 0.0
        %1409 = vmatprep.subr.mxu0 0.0
        %1410 = vmatpush1.msra.mxu0 0.0
        %1411 = vmatprep.subr.mxu0 0.0
        %1412 = vmatpush1.msra.mxu0 0.0
        %1413 = vmatprep.subr.mxu0 0.0
        %1414 = vmatpush1.msra.mxu0 0.0
        %1415 = vmatprep.subr.mxu0 0.0
        %1416 = vmatpush1.msra.mxu0 0.0
        %1417 = vmatprep.subr.mxu0 0.0
        %1418 = vmatpush1.msra.mxu0 0.0
        %1419 = vmatprep.subr.mxu0 0.0
        %1420 = vmatpush1.msra.mxu0 0.0
        %1421 = vmatprep.subr.mxu0 0.0
        %1422 = vmatpush1.msra.mxu0 0.0
        %1423 = vmatprep.subr.mxu0 0.0
        %1424 = vmatpush1.msra.mxu0 0.0
        %1425 = vmatprep.subr.mxu0 0.0
        %1426 = vmatpush1.msra.mxu0 0.0
        %1427 = vmatprep.subr.mxu0 0.0
        %1428 = vmatpush1.msra.mxu0 0.0
        %1429 = vmatprep.subr.mxu0 0.0
        %1430 = vmatpush1.msra.mxu0 0.0
        %1431 = vmatprep.subr.mxu0 0.0
        %1432 = vmatpush1.msra.mxu0 0.0
        %1433 = vmatprep.subr.mxu0 0.0
        %1434 = vmatpush1.msra.mxu0 0.0
        %1435 = vmatprep.subr.mxu0 0.0
        %1436 = vmatpush1.msra.mxu0 0.0
        %1437 = vmatprep.subr.mxu0 0.0
        %1438 = vmatpush1.msra.mxu0 0.0
        %1439 = vmatprep.subr.mxu0 0.0
        %1440 = vmatpush1.msra.mxu0 0.0
        %1441 = vmatprep.subr.mxu0 0.0
        %1442 = vmatpush1.msra.mxu0 0.0
        %1443 = vmatprep.mubr.f32.mxu0 0.0
        %v1444 = vand.u32 %v959, 4294901760
        %v1445 = vsub.f32 %v959, %v1444
        %v1446 = vand.u32 %v1445, 4294901760
        %1447 = vmatmul.mubr.f32.gmra.mrb[0].mxu0 %v1446
        %v1448 = vpop.f32.mrb[0].mxu0
        %v1449 = vadd.f32 %v1325, %v1448
        %v1450 = vpop.f32.mrb[0].mxu0
        %1451 = vmatprep.mubr.f32.mxu0 0.0
        %v1452 = vand.u32 %v962, 4294901760
        %v1453 = vsub.f32 %v962, %v1452
        %v1454 = vand.u32 %v1453, 4294901760
        %1455 = vmatmul.mubr.f32.gmra.mrb[0].mxu0 %v1454
        %v1456 = vpop.f32.mrb[0].mxu0
        %v1457 = vadd.f32 %v1332, %v1456
        %v1458 = vpop.f32.mrb[0].mxu0
        %1459 = vmatprep.mubr.f32.mxu0 0.0
        %v1460 = vand.u32 %v965, 4294901760
        %v1461 = vsub.f32 %v965, %v1460
        %v1462 = vand.u32 %v1461, 4294901760
        %1463 = vmatmul.mubr.f32.gmra.mrb[0].mxu0 %v1462
        %v1464 = vpop.f32.mrb[0].mxu0
        %v1465 = vadd.f32 %v1339, %v1464
        %v1466 = vpop.f32.mrb[0].mxu0
        %1467 = vmatprep.mubr.f32.mxu0 0.0
        %v1468 = vand.u32 %v968, 4294901760
        %v1469 = vsub.f32 %v968, %v1468
        %v1470 = vand.u32 %v1469, 4294901760
        %1471 = vmatmul.mubr.f32.gmra.mrb[0].mxu0 %v1470
        %v1472 = vpop.f32.mrb[0].mxu0
        %v1473 = vadd.f32 %v1346, %v1472
        %v1474 = vpop.f32.mrb[0].mxu0
        %1475 = vmatprep.mubr.f32.mxu0 0.0
        %v1476 = vand.u32 %v971, 4294901760
        %v1477 = vsub.f32 %v971, %v1476
        %v1478 = vand.u32 %v1477, 4294901760
        %1479 = vmatmul.mubr.f32.gmra.mrb[0].mxu0 %v1478
        %v1480 = vpop.f32.mrb[0].mxu0
        %v1481 = vadd.f32 %v1353, %v1480
        %v1482 = vpop.f32.mrb[0].mxu0
        %1483 = vmatprep.mubr.f32.mxu0 0.0
        %v1484 = vand.u32 %v974, 4294901760
        %v1485 = vsub.f32 %v974, %v1484
        %v1486 = vand.u32 %v1485, 4294901760
        %1487 = vmatmul.mubr.f32.gmra.mrb[0].mxu0 %v1486
        %v1488 = vpop.f32.mrb[0].mxu0
        %v1489 = vadd.f32 %v1360, %v1488
        %v1490 = vpop.f32.mrb[0].mxu0
        %1491 = vmatprep.mubr.f32.mxu0 0.0
        %v1492 = vand.u32 %v977, 4294901760
        %v1493 = vsub.f32 %v977, %v1492
        %v1494 = vand.u32 %v1493, 4294901760
        %1495 = vmatmul.mubr.f32.gmra.mrb[0].mxu0 %v1494
        %v1496 = vpop.f32.mrb[0].mxu0
        %v1497 = vadd.f32 %v1367, %v1496
        %v1498 = vpop.f32.mrb[0].mxu0
        %1499 = vmatprep.mubr.f32.mxu0 0.0
        %v1500 = vand.u32 %v980, 4294901760
        %v1501 = vsub.f32 %v980, %v1500
        %v1502 = vand.u32 %v1501, 4294901760
        %1503 = vmatmul.mubr.f32.gmra.mrb[0].mxu0 %v1502
        %v1504 = vpop.f32.mrb[0].mxu0
        %v1505 = vadd.f32 %v1374, %v1504
        %v1506 = vpop.f32.mrb[0].mxu0
        %1507 = vdwg.mxu0
        %1508 = vmatprep.subr.mxu0 0.0
        %v1509 = vand.u32 %v956, 4294901760
        %v1510 = vsub.f32 %v956, %v1509
        %v1511 = vand.u32 %v1510, 4294901760
        %1512 = vmatpush1.msra.mxu0 %v1511
        %1513 = vmatprep.subr.mxu0 0.0
        %v1514 = vand.u32 %v957, 4294901760
        %v1515 = vsub.f32 %v957, %v1514
        %v1516 = vand.u32 %v1515, 4294901760
        %1517 = vmatpush1.msra.mxu0 %v1516
        %1518 = vmatprep.subr.mxu0 0.0
        %1519 = vmatpush1.msra.mxu0 0.0
        %1520 = vmatprep.subr.mxu0 0.0
        %1521 = vmatpush1.msra.mxu0 0.0
        %1522 = vmatprep.subr.mxu0 0.0
        %1523 = vmatpush1.msra.mxu0 0.0
        %1524 = vmatprep.subr.mxu0 0.0
        %1525 = vmatpush1.msra.mxu0 0.0
        %1526 = vmatprep.subr.mxu0 0.0
        %1527 = vmatpush1.msra.mxu0 0.0
        %1528 = vmatprep.subr.mxu0 0.0
        %1529 = vmatpush1.msra.mxu0 0.0
        %1530 = vmatprep.subr.mxu0 0.0
        %1531 = vmatpush1.msra.mxu0 0.0
        %1532 = vmatprep.subr.mxu0 0.0
        %1533 = vmatpush1.msra.mxu0 0.0
        %1534 = vmatprep.subr.mxu0 0.0
        %1535 = vmatpush1.msra.mxu0 0.0
        %1536 = vmatprep.subr.mxu0 0.0
        %1537 = vmatpush1.msra.mxu0 0.0
        %1538 = vmatprep.subr.mxu0 0.0
        %1539 = vmatpush1.msra.mxu0 0.0
        %1540 = vmatprep.subr.mxu0 0.0
        %1541 = vmatpush1.msra.mxu0 0.0
        %1542 = vmatprep.subr.mxu0 0.0
        %1543 = vmatpush1.msra.mxu0 0.0
        %1544 = vmatprep.subr.mxu0 0.0
        %1545 = vmatpush1.msra.mxu0 0.0
        %1546 = vmatprep.subr.mxu0 0.0
        %1547 = vmatpush1.msra.mxu0 0.0
        %1548 = vmatprep.subr.mxu0 0.0
        %1549 = vmatpush1.msra.mxu0 0.0
        %1550 = vmatprep.subr.mxu0 0.0
        %1551 = vmatpush1.msra.mxu0 0.0
        %1552 = vmatprep.subr.mxu0 0.0
        %1553 = vmatpush1.msra.mxu0 0.0
        %1554 = vmatprep.subr.mxu0 0.0
        %1555 = vmatpush1.msra.mxu0 0.0
        %1556 = vmatprep.subr.mxu0 0.0
        %1557 = vmatpush1.msra.mxu0 0.0
        %1558 = vmatprep.subr.mxu0 0.0
        %1559 = vmatpush1.msra.mxu0 0.0
        %1560 = vmatprep.subr.mxu0 0.0
        %1561 = vmatpush1.msra.mxu0 0.0
        %1562 = vmatprep.subr.mxu0 0.0
        %1563 = vmatpush1.msra.mxu0 0.0
        %1564 = vmatprep.subr.mxu0 0.0
        %1565 = vmatpush1.msra.mxu0 0.0
        %1566 = vmatprep.subr.mxu0 0.0
        %1567 = vmatpush1.msra.mxu0 0.0
        %1568 = vmatprep.subr.mxu0 0.0
        %1569 = vmatpush1.msra.mxu0 0.0
        %1570 = vmatprep.subr.mxu0 0.0
        %1571 = vmatpush1.msra.mxu0 0.0
        %1572 = vmatprep.subr.mxu0 0.0
        %1573 = vmatpush1.msra.mxu0 0.0
        %1574 = vmatprep.subr.mxu0 0.0
        %1575 = vmatpush1.msra.mxu0 0.0
        %1576 = vmatprep.subr.mxu0 0.0
        %1577 = vmatpush1.msra.mxu0 0.0
        %1578 = vmatprep.mubr.f32.mxu0 0.0
        %v1579 = vand.u32 %v959, 4294901760
        %1580 = vmatmul.mubr.f32.gmra.mrb[0].mxu0 %v1579
        %v1581 = vpop.f32.mrb[0].mxu0
        %v1582 = vadd.f32 %v1449, %v1581
        %v1583 = vpop.f32.mrb[0].mxu0
        %1584 = vmatprep.mubr.f32.mxu0 0.0
        %v1585 = vand.u32 %v962, 4294901760
        %1586 = vmatmul.mubr.f32.gmra.mrb[0].mxu0 %v1585
        %v1587 = vpop.f32.mrb[0].mxu0
        %v1588 = vadd.f32 %v1457, %v1587
        %v1589 = vpop.f32.mrb[0].mxu0
        %1590 = vmatprep.mubr.f32.mxu0 0.0
        %v1591 = vand.u32 %v965, 4294901760
        %1592 = vmatmul.mubr.f32.gmra.mrb[0].mxu0 %v1591
        %v1593 = vpop.f32.mrb[0].mxu0
        %v1594 = vadd.f32 %v1465, %v1593
        %v1595 = vpop.f32.mrb[0].mxu0
        %1596 = vmatprep.mubr.f32.mxu0 0.0
        %v1597 = vand.u32 %v968, 4294901760
        %1598 = vmatmul.mubr.f32.gmra.mrb[0].mxu0 %v1597
        %v1599 = vpop.f32.mrb[0].mxu0
        %v1600 = vadd.f32 %v1473, %v1599
        %v1601 = vpop.f32.mrb[0].mxu0
        %1602 = vmatprep.mubr.f32.mxu0 0.0
        %v1603 = vand.u32 %v971, 4294901760
        %1604 = vmatmul.mubr.f32.gmra.mrb[0].mxu0 %v1603
        %v1605 = vpop.f32.mrb[0].mxu0
        %v1606 = vadd.f32 %v1481, %v1605
        %v1607 = vpop.f32.mrb[0].mxu0
        %1608 = vmatprep.mubr.f32.mxu0 0.0
        %v1609 = vand.u32 %v974, 4294901760
        %1610 = vmatmul.mubr.f32.gmra.mrb[0].mxu0 %v1609
        %v1611 = vpop.f32.mrb[0].mxu0
        %v1612 = vadd.f32 %v1489, %v1611
        %v1613 = vpop.f32.mrb[0].mxu0
        %1614 = vmatprep.mubr.f32.mxu0 0.0
        %v1615 = vand.u32 %v977, 4294901760
        %1616 = vmatmul.mubr.f32.gmra.mrb[0].mxu0 %v1615
        %v1617 = vpop.f32.mrb[0].mxu0
        %v1618 = vadd.f32 %v1497, %v1617
        %v1619 = vpop.f32.mrb[0].mxu0
        %1620 = vmatprep.mubr.f32.mxu0 0.0
        %v1621 = vand.u32 %v980, 4294901760
        %1622 = vmatmul.mubr.f32.gmra.mrb[0].mxu0 %v1621
        %v1623 = vpop.f32.mrb[0].mxu0
        %v1624 = vadd.f32 %v1505, %v1623
        %v1625 = vpop.f32.mrb[0].mxu0
        %1626 = vdwg.mxu0
        %1627 = vmatprep.subr.mxu0 0.0
        %v1628 = vand.u32 %v956, 4294901760
        %1629 = vmatpush1.msra.mxu0 %v1628
        %1630 = vmatprep.subr.mxu0 0.0
        %v1631 = vand.u32 %v957, 4294901760
        %1632 = vmatpush1.msra.mxu0 %v1631
        %1633 = vmatprep.subr.mxu0 0.0
        %1634 = vmatpush1.msra.mxu0 0.0
        %1635 = vmatprep.subr.mxu0 0.0
        %1636 = vmatpush1.msra.mxu0 0.0
        %1637 = vmatprep.subr.mxu0 0.0
        %1638 = vmatpush1.msra.mxu0 0.0
        %1639 = vmatprep.subr.mxu0 0.0
        %1640 = vmatpush1.msra.mxu0 0.0
        %1641 = vmatprep.subr.mxu0 0.0
        %1642 = vmatpush1.msra.mxu0 0.0
        %1643 = vmatprep.subr.mxu0 0.0
        %1644 = vmatpush1.msra.mxu0 0.0
        %1645 = vmatprep.subr.mxu0 0.0
        %1646 = vmatpush1.msra.mxu0 0.0
        %1647 = vmatprep.subr.mxu0 0.0
        %1648 = vmatpush1.msra.mxu0 0.0
        %1649 = vmatprep.subr.mxu0 0.0
        %1650 = vmatpush1.msra.mxu0 0.0
        %1651 = vmatprep.subr.mxu0 0.0
        %1652 = vmatpush1.msra.mxu0 0.0
        %1653 = vmatprep.subr.mxu0 0.0
        %1654 = vmatpush1.msra.mxu0 0.0
        %1655 = vmatprep.subr.mxu0 0.0
        %1656 = vmatpush1.msra.mxu0 0.0
        %1657 = vmatprep.subr.mxu0 0.0
        %1658 = vmatpush1.msra.mxu0 0.0
        %1659 = vmatprep.subr.mxu0 0.0
        %1660 = vmatpush1.msra.mxu0 0.0
        %1661 = vmatprep.subr.mxu0 0.0
        %1662 = vmatpush1.msra.mxu0 0.0
        %1663 = vmatprep.subr.mxu0 0.0
        %1664 = vmatpush1.msra.mxu0 0.0
        %1665 = vmatprep.subr.mxu0 0.0
        %1666 = vmatpush1.msra.mxu0 0.0
        %1667 = vmatprep.subr.mxu0 0.0
        %1668 = vmatpush1.msra.mxu0 0.0
        %1669 = vmatprep.subr.mxu0 0.0
        %1670 = vmatpush1.msra.mxu0 0.0
        %1671 = vmatprep.subr.mxu0 0.0
        %1672 = vmatpush1.msra.mxu0 0.0
        %1673 = vmatprep.subr.mxu0 0.0
        %1674 = vmatpush1.msra.mxu0 0.0
        %1675 = vmatprep.subr.mxu0 0.0
        %1676 = vmatpush1.msra.mxu0 0.0
        %1677 = vmatprep.subr.mxu0 0.0
        %1678 = vmatpush1.msra.mxu0 0.0
        %1679 = vmatprep.subr.mxu0 0.0
        %1680 = vmatpush1.msra.mxu0 0.0
        %1681 = vmatprep.subr.mxu0 0.0
        %1682 = vmatpush1.msra.mxu0 0.0
        %1683 = vmatprep.subr.mxu0 0.0
        %1684 = vmatpush1.msra.mxu0 0.0
        %1685 = vmatprep.subr.mxu0 0.0
        %1686 = vmatpush1.msra.mxu0 0.0
        %1687 = vmatprep.subr.mxu0 0.0
        %1688 = vmatpush1.msra.mxu0 0.0
        %1689 = vmatprep.subr.mxu0 0.0
        %1690 = vmatpush1.msra.mxu0 0.0
        %1691 = vmatprep.subr.mxu0 0.0
        %1692 = vmatpush1.msra.mxu0 0.0
        %1693 = vmatprep.mubr.f32.mxu0 0.0
        %v1694 = vand.u32 %v959, 4294901760
        %1695 = vmatmul.mubr.f32.gmra.mrb[0].mxu0 %v1694
        %v1696 = vpop.f32.mrb[0].mxu0
        %v1697 = vadd.f32 %v1582, %v1696
        %v1698 = vpop.f32.mrb[0].mxu0
        %1699 = vmatprep.mubr.f32.mxu0 0.0
        %v1700 = vand.u32 %v962, 4294901760
        %1701 = vmatmul.mubr.f32.gmra.mrb[0].mxu0 %v1700
        %v1702 = vpop.f32.mrb[0].mxu0
        %v1703 = vadd.f32 %v1588, %v1702
        %v1704 = vpop.f32.mrb[0].mxu0
        %1705 = vmatprep.mubr.f32.mxu0 0.0
        %v1706 = vand.u32 %v965, 4294901760
        %1707 = vmatmul.mubr.f32.gmra.mrb[0].mxu0 %v1706
        %v1708 = vpop.f32.mrb[0].mxu0
        %v1709 = vadd.f32 %v1594, %v1708
        %v1710 = vpop.f32.mrb[0].mxu0
        %1711 = vmatprep.mubr.f32.mxu0 0.0
        %v1712 = vand.u32 %v968, 4294901760
        %1713 = vmatmul.mubr.f32.gmra.mrb[0].mxu0 %v1712
        %v1714 = vpop.f32.mrb[0].mxu0
        %v1715 = vadd.f32 %v1600, %v1714
        %v1716 = vpop.f32.mrb[0].mxu0
        %1717 = vmatprep.mubr.f32.mxu0 0.0
        %v1718 = vand.u32 %v971, 4294901760
        %1719 = vmatmul.mubr.f32.gmra.mrb[0].mxu0 %v1718
        %v1720 = vpop.f32.mrb[0].mxu0
        %v1721 = vadd.f32 %v1606, %v1720
        %v1722 = vpop.f32.mrb[0].mxu0
        %1723 = vmatprep.mubr.f32.mxu0 0.0
        %v1724 = vand.u32 %v974, 4294901760
        %1725 = vmatmul.mubr.f32.gmra.mrb[0].mxu0 %v1724
        %v1726 = vpop.f32.mrb[0].mxu0
        %v1727 = vadd.f32 %v1612, %v1726
        %v1728 = vpop.f32.mrb[0].mxu0
        %1729 = vmatprep.mubr.f32.mxu0 0.0
        %v1730 = vand.u32 %v977, 4294901760
        %1731 = vmatmul.mubr.f32.gmra.mrb[0].mxu0 %v1730
        %v1732 = vpop.f32.mrb[0].mxu0
        %v1733 = vadd.f32 %v1618, %v1732
        %v1734 = vpop.f32.mrb[0].mxu0
        %1735 = vmatprep.mubr.f32.mxu0 0.0
        %v1736 = vand.u32 %v980, 4294901760
        %1737 = vmatmul.mubr.f32.gmra.mrb[0].mxu0 %v1736
        %v1738 = vpop.f32.mrb[0].mxu0
        %v1739 = vadd.f32 %v1624, %v1738
        %v1740 = vpop.f32.mrb[0].mxu0
        %1741 = vdwg.mxu0
        %vm1742 = vcmask 261120
        %1743 = vst.msk [vmem:[%s218] sm:$0xff] %vm1742, %v1697
        %1744 = vst.msk [vmem:[%s218 + $0x8] sm:$0xff] %vm1742, %v1703
        %1745 = vst.msk [vmem:[%s218 + $0x10] sm:$0xff] %vm1742, %v1709
        %1746 = vst.msk [vmem:[%s218 + $0x18] sm:$0xff] %vm1742, %v1715
        %1747 = vst.msk [vmem:[%s218 + $0x20] sm:$0xff] %vm1742, %v1721
        %1748 = vst.msk [vmem:[%s218 + $0x28] sm:$0xff] %vm1742, %v1727
        %1749 = vst.msk [vmem:[%s218 + $0x30] sm:$0xff] %vm1742, %v1733
        %1750 = vst.msk [vmem:[%s218 + $0x38] sm:$0xff] %vm1742, %v1739
        %s1751 = sand.u32 %s97, 1
        %s1752 = scalar_lea.sflag [#allocation4], %s1751
        %s1753 = sand.u32 %s97, 1
        %s1754 = smul.addr %s1753, 64
        %s1755 = scalar_lea.vmem [#allocation8], %s1754
        // Predicated region
        $region45: #{tpu_custom_call.1} parent=31 // pred_check
          %p1756 = pneg %p107
        $region46: #{tpu_custom_call.1} parent=31 // pred_check_branch
          %1758 = sbr.rel (%p1756) target = $region48
        $region47: #{tpu_custom_call.1} parent=31 // pred_region
          %s1759 = smul.u32 2, %s21
          %s1761 = ssub.s32 1024, 1024
          %1762 = vsyncadd %s1752, %s1761
          %s1763 = smul.addr %s1759, 4
          %s1764 = smul.addr %s1763, 128
          %s1765 = scalar_lea.hbm %s3, %s1764
          %s1766 = sshll.u32 %s1755, 4
          %s1767 = int_to_ptr.vmem [resolvable:$true] %s1766
          %1772 = dma.vmem_to_hbm [thread:$0]  %s1767, 1024, %s1765, %s1752, 128, 128, 8
        $region48: #{tpu_custom_call.1} parent=31 // pred_fallthru
          _
      $region32: #{tpu_custom_call.1} parent=5 // pred_fallthru
        _
      %p1773 = scmp.le.s32.totalorder 2, %s16
      // Predicated region
      $region49: #{tpu_custom_call.1} parent=5 // pred_check
        %p1774 = pneg %p1773
      $region50: #{tpu_custom_call.1} parent=5 // pred_check_branch
        %1776 = sbr.rel (%p1774) target = $region52
      $region51: #{tpu_custom_call.1} parent=5 // pred_region
        %s1777 = ssub.s32 %s16, 2
        // Predicated region
        $region53: #{tpu_custom_call.1} parent=51 // pred_check
          %p1778 = pneg %p113
        $region54: #{tpu_custom_call.1} parent=51 // pred_check_branch
          %1780 = sbr.rel (%p1778) target = $region56
        $region55: #{tpu_custom_call.1} parent=51 // pred_region
          %s1781 = sand.u32 %s98, 1
          %s1782 = scalar_lea.sflag [#allocation4], %s1781
          %s1783 = sand.u32 %s98, 1
          %s1784 = smul.addr %s1783, 64
          %s1785 = scalar_lea.vmem [#allocation8], %s1784
          %1786 = dma.done %s1782, 1024
        $region56: #{tpu_custom_call.1} parent=51 // pred_fallthru
          _
      $region52: #{tpu_custom_call.1} parent=5 // pred_fallthru
        _
    $region6: #{tpu_custom_call.1} parent=1 // loop_footer
      %s20 = sadd.s32 1, %s16
    $region7: #{tpu_custom_call.1} parent=1 // loop_footer_branch
      %15 = sbr.rel target = $region3
    $region8: #{tpu_custom_call.1} parent=1 // loop_exit
      _
    %1787 = vsyncpa [#allocation3], 1
    %s1788 = scalar_lea.sflag [#allocation3], 1
    %1789 = vsyncpa %s1788, 1
    %1790 = vsyncpa [#allocation6], 1
    %1791 = vsyncpa [#allocation4], 1
    %s1792 = scalar_lea.sflag [#allocation4], 1
    %1793 = vsyncpa %s1792, 1

// kernel: tpu_custom_call.1
$region0: #{tpu_custom_call.1}
  #allocation0 [shape = 'u32[]', space=smem, size = 0x4, offset = 0x4, fixed_abs, tag = 'smem constant byte address 0x4 - core index']
  #allocation1 [shape = 'u32[144,128]{1,0:T(1,128)}', space=vmem, size = 0x12000, scoped, tag = 'internal scratch']
  %s0 = inlined_call_operand.hbm [shape: f32[8,16,16], index: 0, kind: input, shape index: {}]
  %s1 = inlined_call_operand.vmem [shape: f32[32,16], index: 1, kind: input, shape index: {}]
  %s2 = inlined_call_operand.vmem [shape: f32[16,32], index: 2, kind: input, shape index: {}]
  %s3 = inlined_call_operand.hbm [shape: f32[8,32,32], index: 3, kind: output, shape index: {}]
  %s4 = sld [smem:[#allocation0]]
  $region49: #{tpu_custom_call.1} parent=0
    _
  %s6 = ssub.s32 1, %s4
  %s7 = scalar_select 0, %s6, %s4
  $region1: #{tpu_custom_call.1} parent=0
    #allocation2 [shape = 'u8[16384]{0}', space=vmem, size = 0x4000, scoped, tag = 'input window, operand 0']
    #allocation3 [shape = 's32[2]{0}', space=sflag, size = 0x8, scoped, tag = 'scoped memory for tpu_custom_call.1']
    #allocation4 [shape = 's32[2]{0}', space=sflag, size = 0x8, scoped, tag = 'scoped memory for tpu_custom_call.1']
    #allocation5 [shape = 'u8[32768]{0}', space=vmem, size = 0x8000, scoped, tag = 'output window, operand 0']
    %8 = vsyncpa [#allocation3], 0
    %s9 = scalar_lea.sflag [#allocation3], 1
    %10 = vsyncpa %s9, 0
    %11 = vsyncpa [#allocation4], 0
    %s12 = scalar_lea.sflag [#allocation4], 1
    %13 = vsyncpa %s12, 0
    loop: start=0, step=1, limit=10
    $region2: #{tpu_custom_call.1} parent=1 // loop_pre_header
      _
    $region3: #{tpu_custom_call.1} parent=1 // loop_header
      %s15 = sphi 0, %s19
      %p16 = scmp.ge.s32.totalorder %s15, 10
      %s25 = sphi 0, %s27
      %s28 = sphi 0, %s25
      %s29 = sphi 0, %s28
      %s45 = sphi 0, %s29
      %s49 = sphi 0, %s49
      %s51 = sphi 0, %s49
      %s52 = sphi 0, %s51
      %s66 = sphi 0, %s52
      %s70 = sphi 0, %s70
      %s72 = sphi 0, %s70
      %s73 = sphi 0, %s72
      %s87 = sphi 0, %s73
      %s93 = sphi 0, %s95
      %s96 = sphi 0, %s93
      %s97 = sphi 0, %s96
      %s113 = sphi 0, %s97
    $region4: #{tpu_custom_call.1} parent=1 // loop_header_branch
      %18 = sbr.rel (%p16) target = $region8
    $region5: #{tpu_custom_call.1} parent=1 // loop_body
      %s20 = ssub.s32 %s15, 1
      %s21 = ssub.s32 %s15, 2
      %s22 = sadd.s32 %s15, 1
      %s23 = ssub.s32 %s15, %s22
      %p24 = scmp.eq.s32.totalorder %s23, 0
      %s26 = sadd.s32 %s25, 1
      %s27 = scalar_select %p24, %s25, %s26
      %p30 = pneg %p24
      %p31 = scmp.eq.s32.totalorder %s15, 7
      %p32 = por %p30, %p31
      %p33 = scmp.ne.s32.totalorder %s25, %s28
      %p34 = scmp.eq.s32.totalorder %s15, 0
      %p35 = por %p33, %p34
      %p36 = scmp.ne.s32.totalorder %s25, %s28
      %p37 = scmp.eq.s32.totalorder %s20, 7
      %p38 = por %p36, %p37
      %p39 = scmp.ne.s32.totalorder %s28, %s29
      %p40 = scmp.eq.s32.totalorder %s20, 0
      %p41 = por %p39, %p40
      %p42 = scmp.ne.s32.totalorder %s28, %s29
      %p43 = scmp.eq.s32.totalorder %s21, 7
      %p44 = por %p42, %p43
      %p46 = scmp.ne.s32.totalorder %s29, %s45
      %p47 = scmp.eq.s32.totalorder %s21, 0
      %p48 = por %p46, %p47
      %s50 = sadd.s32 %s49, 1
      %p53 = scmp.eq.s32.totalorder %s15, 7
      %p54 = scmp.ne.s32.totalorder %s49, %s51
      %p55 = scmp.eq.s32.totalorder %s15, 0
      %p56 = por %p54, %p55
      %p57 = scmp.ne.s32.totalorder %s49, %s51
      %p58 = scmp.eq.s32.totalorder %s20, 7
      %p59 = por %p57, %p58
      %p60 = scmp.ne.s32.totalorder %s51, %s52
      %p61 = scmp.eq.s32.totalorder %s20, 0
      %p62 = por %p60, %p61
      %p63 = scmp.ne.s32.totalorder %s51, %s52
      %p64 = scmp.eq.s32.totalorder %s21, 7
      %p65 = por %p63, %p64
      %p67 = scmp.ne.s32.totalorder %s52, %s66
      %p68 = scmp.eq.s32.totalorder %s21, 0
      %p69 = por %p67, %p68
      %s71 = sadd.s32 %s70, 1
      %p74 = scmp.eq.s32.totalorder %s15, 7
      %p75 = scmp.ne.s32.totalorder %s70, %s72
      %p76 = scmp.eq.s32.totalorder %s15, 0
      %p77 = por %p75, %p76
      %p78 = scmp.ne.s32.totalorder %s70, %s72
      %p79 = scmp.eq.s32.totalorder %s20, 7
      %p80 = por %p78, %p79
      %p81 = scmp.ne.s32.totalorder %s72, %s73
      %p82 = scmp.eq.s32.totalorder %s20, 0
      %p83 = por %p81, %p82
      %p84 = scmp.ne.s32.totalorder %s72, %s73
      %p85 = scmp.eq.s32.totalorder %s21, 7
      %p86 = por %p84, %p85
      %p88 = scmp.ne.s32.totalorder %s73, %s87
      %p89 = scmp.eq.s32.totalorder %s21, 0
      %p90 = por %p88, %p89
      %s91 = ssub.s32 %s15, %s22
      %p92 = scmp.eq.s32.totalorder %s91, 0
      %s94 = sadd.s32 %s93, 1
      %s95 = scalar_select %p92, %s93, %s94
      %p98 = pneg %p92
      %p99 = scmp.eq.s32.totalorder %s15, 7
      %p100 = por %p98, %p99
      %p101 = scmp.ne.s32.totalorder %s93, %s96
      %p102 = scmp.eq.s32.totalorder %s15, 0
      %p103 = por %p101, %p102
      %p104 = scmp.ne.s32.totalorder %s93, %s96
      %p105 = scmp.eq.s32.totalorder %s20, 7
      %p106 = por %p104, %p105
      %p107 = scmp.ne.s32.totalorder %s96, %s97
      %p108 = scmp.eq.s32.totalorder %s20, 0
      %p109 = por %p107, %p108
      %p110 = scmp.ne.s32.totalorder %s96, %s97
      %p111 = scmp.eq.s32.totalorder %s21, 7
      %p112 = por %p110, %p111
      %p114 = scmp.ne.s32.totalorder %s97, %s113
      %p115 = scmp.eq.s32.totalorder %s21, 0
      %p116 = por %p114, %p115
      %p117 = scmp.le.s32.totalorder 1, %s15
      %p118 = scmp.lt.s32.totalorder %s15, 9
      %p119 = pnand %p117, %p118
      %p120 = pneg %p119
      // Predicated region
      $region9: #{tpu_custom_call.1} parent=5 // pred_check
        _
      $region10: #{tpu_custom_call.1} parent=5 // pred_check_branch
        %122 = sbr.rel (%p119) target = $region12
      $region11: #{tpu_custom_call.1} parent=5 // pred_region
        %s123 = ssub.s32 %s15, 1
        // Predicated region
        $region13: #{tpu_custom_call.1} parent=11 // pred_check
          %p124 = pneg %p62
        $region14: #{tpu_custom_call.1} parent=11 // pred_check_branch
          %126 = sbr.rel (%p124) target = $region16
        $region15: #{tpu_custom_call.1} parent=11 // pred_region
          _
        $region16: #{tpu_custom_call.1} parent=11 // pred_fallthru
          _
        // Predicated region
        $region17: #{tpu_custom_call.1} parent=11 // pred_check
          %p127 = pneg %p83
        $region18: #{tpu_custom_call.1} parent=11 // pred_check_branch
          %129 = sbr.rel (%p127) target = $region20
        $region19: #{tpu_custom_call.1} parent=11 // pred_region
          _
        $region20: #{tpu_custom_call.1} parent=11 // pred_fallthru
          _
      $region12: #{tpu_custom_call.1} parent=5 // pred_fallthru
        _
      %p130 = scmp.lt.s32.totalorder %s15, 8
      // Predicated region
      $region21: #{tpu_custom_call.1} parent=5 // pred_check
        %p131 = pneg %p130
      $region22: #{tpu_custom_call.1} parent=5 // pred_check_branch
        %133 = sbr.rel (%p131) target = $region24
      $region23: #{tpu_custom_call.1} parent=5 // pred_region
        // Predicated region
        $region25: #{tpu_custom_call.1} parent=23 // pred_check
          %p134 = pneg %p35
        $region26: #{tpu_custom_call.1} parent=23 // pred_check_branch
          %136 = sbr.rel (%p134) target = $region28
        $region27: #{tpu_custom_call.1} parent=23 // pred_region
          %s137 = sand.u32 %s25, 1
          %s138 = scalar_lea.sflag [#allocation3], %s137
          %s139 = sand.u32 %s25, 1
          %s140 = smul.addr %s139, 16
          %s141 = scalar_lea.vmem [#allocation2], %s140
          %s143 = ssub.s32 256, 256
          %144 = vsyncadd %s138, %s143
          %s145 = smul.addr %s15, 2
          %s146 = smul.addr %s145, 128
          %s147 = scalar_lea.hbm %s0, %s146
          %s148 = sshll.u32 %s141, 4
          %s149 = int_to_ptr.vmem [resolvable:$true] %s148
          %154 = dma.hbm_to_vmem [thread:$0]  %s147, 256, %s149, %s138, 128, 128, 8
        $region28: #{tpu_custom_call.1} parent=23 // pred_fallthru
          _
      $region24: #{tpu_custom_call.1} parent=5 // pred_fallthru
        _
      %p155 = scmp.le.s32.totalorder 1, %s15
      %p156 = scmp.lt.s32.totalorder %s15, 9
      %p157 = pnand %p155, %p156
      %p158 = pneg %p157
      // Predicated region
      $region29: #{tpu_custom_call.1} parent=5 // pred_check
        _
      $region30: #{tpu_custom_call.1} parent=5 // pred_check_branch
        %160 = sbr.rel (%p157) target = $region32
      $region31: #{tpu_custom_call.1} parent=5 // pred_region
        %s161 = ssub.s32 %s15, 1
        %s162 = sand.u32 %s28, 1
        %s163 = scalar_lea.sflag [#allocation3], %s162
        %s164 = sand.u32 %s28, 1
        %s165 = smul.addr %s164, 16
        %s166 = scalar_lea.vmem [#allocation2], %s165
        // Predicated region
        $region33: #{tpu_custom_call.1} parent=31 // pred_check
          %p167 = pneg %p41
        $region34: #{tpu_custom_call.1} parent=31 // pred_check_branch
          %169 = sbr.rel (%p167) target = $region36
        $region35: #{tpu_custom_call.1} parent=31 // pred_region
          %170 = dma.done %s163, 256
        $region36: #{tpu_custom_call.1} parent=31 // pred_fallthru
          _
        %s171 = sand.u32 %s28, 1
        %s172 = scalar_lea.sflag [#allocation3], %s171
        %s173 = sand.u32 %s28, 1
        %s174 = smul.addr %s173, 16
        %s175 = scalar_lea.vmem [#allocation2], %s174
        %p176 = pneg %p41
        %p177 = pneg %p38
        %p178 = pneg %p62
        %p179 = pneg %p59
        %p180 = pneg %p83
        %p181 = pneg %p80
        %p182 = pneg %p109
        %p183 = pneg %p106
        %s184 = sand.u32 %s96, 1
        %s185 = scalar_lea.sflag [#allocation4], %s184
        %s186 = sand.u32 %s96, 1
        %s187 = smul.addr %s186, 32
        %s188 = scalar_lea.vmem [#allocation5], %s187
        %v189 = vld [vmem:[%s166] sm:$0xff]
        %v190 = vld [vmem:[%s166 + $0x8] sm:$0xff]
        %v191 = vld [vmem:[%s1] sm:$0xff]
        %v192 = vld [vmem:[%s1 + $0x8] sm:$0xff]
        %v193 = vld [vmem:[%s1 + $0x10] sm:$0xff]
        %v194 = vld [vmem:[%s1 + $0x18] sm:$0xff]
        %vm195 = vcmask 130048
        %v197 = vsel %vm195, %v191, 0
        %v200 = vsel %vm195, %v192, 0
        %v203 = vsel %vm195, %v193, 0
        %v206 = vsel %vm195, %v194, 0
        %208 = vmatprep.subr.mxu0 0.0
        %v209 = vand.u32 %v189, 4294901760
        %210 = vmatpush1.msra.mxu0 %v209
        %211 = vmatprep.subr.mxu0 0.0
        %v212 = vand.u32 %v190, 4294901760
        %213 = vmatpush1.msra.mxu0 %v212
        %214 = vmatprep.subr.mxu0 0.0
        %215 = vmatpush1.msra.mxu0 0.0
        %216 = vmatprep.subr.mxu0 0.0
        %217 = vmatpush1.msra.mxu0 0.0
        %218 = vmatprep.subr.mxu0 0.0
        %219 = vmatpush1.msra.mxu0 0.0
        %220 = vmatprep.subr.mxu0 0.0
        %221 = vmatpush1.msra.mxu0 0.0
        %222 = vmatprep.subr.mxu0 0.0
        %223 = vmatpush1.msra.mxu0 0.0
        %224 = vmatprep.subr.mxu0 0.0
        %225 = vmatpush1.msra.mxu0 0.0
        %226 = vmatprep.subr.mxu0 0.0
        %227 = vmatpush1.msra.mxu0 0.0
        %228 = vmatprep.subr.mxu0 0.0
        %229 = vmatpush1.msra.mxu0 0.0
        %230 = vmatprep.subr.mxu0 0.0
        %231 = vmatpush1.msra.mxu0 0.0
        %232 = vmatprep.subr.mxu0 0.0
        %233 = vmatpush1.msra.mxu0 0.0
        %234 = vmatprep.subr.mxu0 0.0
        %235 = vmatpush1.msra.mxu0 0.0
        %236 = vmatprep.subr.mxu0 0.0
        %237 = vmatpush1.msra.mxu0 0.0
        %238 = vmatprep.subr.mxu0 0.0
        %239 = vmatpush1.msra.mxu0 0.0
        %240 = vmatprep.subr.mxu0 0.0
        %241 = vmatpush1.msra.mxu0 0.0
        %242 = vmatprep.subr.mxu0 0.0
        %243 = vmatpush1.msra.mxu0 0.0
        %244 = vmatprep.subr.mxu0 0.0
        %245 = vmatpush1.msra.mxu0 0.0
        %246 = vmatprep.subr.mxu0 0.0
        %247 = vmatpush1.msra.mxu0 0.0
        %248 = vmatprep.subr.mxu0 0.0
        %249 = vmatpush1.msra.mxu0 0.0
        %250 = vmatprep.subr.mxu0 0.0
        %251 = vmatpush1.msra.mxu0 0.0
        %252 = vmatprep.subr.mxu0 0.0
        %253 = vmatpush1.msra.mxu0 0.0
        %254 = vmatprep.subr.mxu0 0.0
        %255 = vmatpush1.msra.mxu0 0.0
        %256 = vmatprep.subr.mxu0 0.0
        %257 = vmatpush1.msra.mxu0 0.0
        %258 = vmatprep.subr.mxu0 0.0
        %259 = vmatpush1.msra.mxu0 0.0
        %260 = vmatprep.subr.mxu0 0.0
        %261 = vmatpush1.msra.mxu0 0.0
        %262 = vmatprep.subr.mxu0 0.0
        %263 = vmatpush1.msra.mxu0 0.0
        %264 = vmatprep.subr.mxu0 0.0
        %265 = vmatpush1.msra.mxu0 0.0
        %266 = vmatprep.subr.mxu0 0.0
        %267 = vmatpush1.msra.mxu0 0.0
        %268 = vmatprep.subr.mxu0 0.0
        %269 = vmatpush1.msra.mxu0 0.0
        %270 = vmatprep.subr.mxu0 0.0
        %271 = vmatpush1.msra.mxu0 0.0
        %272 = vmatprep.subr.mxu0 0.0
        %273 = vmatpush1.msra.mxu0 0.0
        %274 = vmatprep.mubr.f32.mxu0 0.0
        %v275 = vand.u32 %v197, 4294901760
        %v276 = vsub.f32 %v197, %v275
        %v277 = vand.u32 %v276, 4294901760
        %v278 = vsub.f32 %v276, %v277
        %v279 = vand.u32 %v278, 4294901760
        %280 = vmatmul.mubr.f32.gmra.mrb[0].mxu0 %v279
        %v281 = vpop.f32.mrb[0].mxu0
        %v282 = vadd.f32 0.0, %v281
        %v283 = vpop.f32.mrb[0].mxu0
        %284 = vmatprep.mubr.f32.mxu0 0.0
        %v285 = vand.u32 %v200, 4294901760
        %v286 = vsub.f32 %v200, %v285
        %v287 = vand.u32 %v286, 4294901760
        %v288 = vsub.f32 %v286, %v287
        %v289 = vand.u32 %v288, 4294901760
        %290 = vmatmul.mubr.f32.gmra.mrb[0].mxu0 %v289
        %v291 = vpop.f32.mrb[0].mxu0
        %v292 = vadd.f32 0.0, %v291
        %v293 = vpop.f32.mrb[0].mxu0
        %294 = vmatprep.mubr.f32.mxu0 0.0
        %v295 = vand.u32 %v203, 4294901760
        %v296 = vsub.f32 %v203, %v295
        %v297 = vand.u32 %v296, 4294901760
        %v298 = vsub.f32 %v296, %v297
        %v299 = vand.u32 %v298, 4294901760
        %300 = vmatmul.mubr.f32.gmra.mrb[0].mxu0 %v299
        %v301 = vpop.f32.mrb[0].mxu0
        %v302 = vadd.f32 0.0, %v301
        %v303 = vpop.f32.mrb[0].mxu0
        %304 = vmatprep.mubr.f32.mxu0 0.0
        %v305 = vand.u32 %v206, 4294901760
        %v306 = vsub.f32 %v206, %v305
        %v307 = vand.u32 %v306, 4294901760
        %v308 = vsub.f32 %v306, %v307
        %v309 = vand.u32 %v308, 4294901760
        %310 = vmatmul.mubr.f32.gmra.mrb[0].mxu0 %v309
        %v311 = vpop.f32.mrb[0].mxu0
        %v312 = vadd.f32 0.0, %v311
        %v313 = vpop.f32.mrb[0].mxu0
        %314 = vdwg.mxu0
        %315 = vmatprep.subr.mxu0 0.0
        %v316 = vand.u32 %v189, 4294901760
        %v317 = vsub.f32 %v189, %v316
        %v318 = vand.u32 %v317, 4294901760
        %v319 = vsub.f32 %v317, %v318
        %v320 = vand.u32 %v319, 4294901760
        %321 = vmatpush1.msra.mxu0 %v320
        %322 = vmatprep.subr.mxu0 0.0
        %v323 = vand.u32 %v190, 4294901760
        %v324 = vsub.f32 %v190, %v323
        %v325 = vand.u32 %v324, 4294901760
        %v326 = vsub.f32 %v324, %v325
        %v327 = vand.u32 %v326, 4294901760
        %328 = vmatpush1.msra.mxu0 %v327
        %329 = vmatprep.subr.mxu0 0.0
        %330 = vmatpush1.msra.mxu0 0.0
        %331 = vmatprep.subr.mxu0 0.0
        %332 = vmatpush1.msra.mxu0 0.0
        %333 = vmatprep.subr.mxu0 0.0
        %334 = vmatpush1.msra.mxu0 0.0
        %335 = vmatprep.subr.mxu0 0.0
        %336 = vmatpush1.msra.mxu0 0.0
        %337 = vmatprep.subr.mxu0 0.0
        %338 = vmatpush1.msra.mxu0 0.0
        %339 = vmatprep.subr.mxu0 0.0
        %340 = vmatpush1.msra.mxu0 0.0
        %341 = vmatprep.subr.mxu0 0.0
        %342 = vmatpush1.msra.mxu0 0.0
        %343 = vmatprep.subr.mxu0 0.0
        %344 = vmatpush1.msra.mxu0 0.0
        %345 = vmatprep.subr.mxu0 0.0
        %346 = vmatpush1.msra.mxu0 0.0
        %347 = vmatprep.subr.mxu0 0.0
        %348 = vmatpush1.msra.mxu0 0.0
        %349 = vmatprep.subr.mxu0 0.0
        %350 = vmatpush1.msra.mxu0 0.0
        %351 = vmatprep.subr.mxu0 0.0
        %352 = vmatpush1.msra.mxu0 0.0
        %353 = vmatprep.subr.mxu0 0.0
        %354 = vmatpush1.msra.mxu0 0.0
        %355 = vmatprep.subr.mxu0 0.0
        %356 = vmatpush1.msra.mxu0 0.0
        %357 = vmatprep.subr.mxu0 0.0
        %358 = vmatpush1.msra.mxu0 0.0
        %359 = vmatprep.subr.mxu0 0.0
        %360 = vmatpush1.msra.mxu0 0.0
        %361 = vmatprep.subr.mxu0 0.0
        %362 = vmatpush1.msra.mxu0 0.0
        %363 = vmatprep.subr.mxu0 0.0
        %364 = vmatpush1.msra.mxu0 0.0
        %365 = vmatprep.subr.mxu0 0.0
        %366 = vmatpush1.msra.mxu0 0.0
        %367 = vmatprep.subr.mxu0 0.0
        %368 = vmatpush1.msra.mxu0 0.0
        %369 = vmatprep.subr.mxu0 0.0
        %370 = vmatpush1.msra.mxu0 0.0
        %371 = vmatprep.subr.mxu0 0.0
        %372 = vmatpush1.msra.mxu0 0.0
        %373 = vmatprep.subr.mxu0 0.0
        %374 = vmatpush1.msra.mxu0 0.0
        %375 = vmatprep.subr.mxu0 0.0
        %376 = vmatpush1.msra.mxu0 0.0
        %377 = vmatprep.subr.mxu0 0.0
        %378 = vmatpush1.msra.mxu0 0.0
        %379 = vmatprep.subr.mxu0 0.0
        %380 = vmatpush1.msra.mxu0 0.0
        %381 = vmatprep.subr.mxu0 0.0
        %382 = vmatpush1.msra.mxu0 0.0
        %383 = vmatprep.subr.mxu0 0.0
        %384 = vmatpush1.msra.mxu0 0.0
        %385 = vmatprep.subr.mxu0 0.0
        %386 = vmatpush1.msra.mxu0 0.0
        %387 = vmatprep.subr.mxu0 0.0
        %388 = vmatpush1.msra.mxu0 0.0
        %389 = vmatprep.mubr.f32.mxu0 0.0
        %v390 = vand.u32 %v197, 4294901760
        %391 = vmatmul.mubr.f32.gmra.mrb[0].mxu0 %v390
        %v392 = vpop.f32.mrb[0].mxu0
        %v393 = vadd.f32 %v282, %v392
        %v394 = vpop.f32.mrb[0].mxu0
        %395 = vmatprep.mubr.f32.mxu0 0.0
        %v396 = vand.u32 %v200, 4294901760
        %397 = vmatmul.mubr.f32.gmra.mrb[0].mxu0 %v396
        %v398 = vpop.f32.mrb[0].mxu0
        %v399 = vadd.f32 %v292, %v398
        %v400 = vpop.f32.mrb[0].mxu0
        %401 = vmatprep.mubr.f32.mxu0 0.0
        %v402 = vand.u32 %v203, 4294901760
        %403 = vmatmul.mubr.f32.gmra.mrb[0].mxu0 %v402
        %v404 = vpop.f32.mrb[0].mxu0
        %v405 = vadd.f32 %v302, %v404
        %v406 = vpop.f32.mrb[0].mxu0
        %407 = vmatprep.mubr.f32.mxu0 0.0
        %v408 = vand.u32 %v206, 4294901760
        %409 = vmatmul.mubr.f32.gmra.mrb[0].mxu0 %v408
        %v410 = vpop.f32.mrb[0].mxu0
        %v411 = vadd.f32 %v312, %v410
        %v412 = vpop.f32.mrb[0].mxu0
        %413 = vdwg.mxu0
        %414 = vmatprep.subr.mxu0 0.0
        %v415 = vand.u32 %v189, 4294901760
        %v416 = vsub.f32 %v189, %v415
        %417 = vmatpush1.msra.mxu0 %v416
        %418 = vmatprep.subr.mxu0 0.0
        %v419 = vand.u32 %v190, 4294901760
        %v420 = vsub.f32 %v190, %v419
        %421 = vmatpush1.msra.mxu0 %v420
        %422 = vmatprep.subr.mxu0 0.0
        %423 = vmatpush1.msra.mxu0 0.0
        %424 = vmatprep.subr.mxu0 0.0
        %425 = vmatpush1.msra.mxu0 0.0
        %426 = vmatprep.subr.mxu0 0.0
        %427 = vmatpush1.msra.mxu0 0.0
        %428 = vmatprep.subr.mxu0 0.0
        %429 = vmatpush1.msra.mxu0 0.0
        %430 = vmatprep.subr.mxu0 0.0
        %431 = vmatpush1.msra.mxu0 0.0
        %432 = vmatprep.subr.mxu0 0.0
        %433 = vmatpush1.msra.mxu0 0.0
        %434 = vmatprep.subr.mxu0 0.0
        %435 = vmatpush1.msra.mxu0 0.0
        %436 = vmatprep.subr.mxu0 0.0
        %437 = vmatpush1.msra.mxu0 0.0
        %438 = vmatprep.subr.mxu0 0.0
        %439 = vmatpush1.msra.mxu0 0.0
        %440 = vmatprep.subr.mxu0 0.0
        %441 = vmatpush1.msra.mxu0 0.0
        %442 = vmatprep.subr.mxu0 0.0
        %443 = vmatpush1.msra.mxu0 0.0
        %444 = vmatprep.subr.mxu0 0.0
        %445 = vmatpush1.msra.mxu0 0.0
        %446 = vmatprep.subr.mxu0 0.0
        %447 = vmatpush1.msra.mxu0 0.0
        %448 = vmatprep.subr.mxu0 0.0
        %449 = vmatpush1.msra.mxu0 0.0
        %450 = vmatprep.subr.mxu0 0.0
        %451 = vmatpush1.msra.mxu0 0.0
        %452 = vmatprep.subr.mxu0 0.0
        %453 = vmatpush1.msra.mxu0 0.0
        %454 = vmatprep.subr.mxu0 0.0
        %455 = vmatpush1.msra.mxu0 0.0
        %456 = vmatprep.subr.mxu0 0.0
        %457 = vmatpush1.msra.mxu0 0.0
        %458 = vmatprep.subr.mxu0 0.0
        %459 = vmatpush1.msra.mxu0 0.0
        %460 = vmatprep.subr.mxu0 0.0
        %461 = vmatpush1.msra.mxu0 0.0
        %462 = vmatprep.subr.mxu0 0.0
        %463 = vmatpush1.msra.mxu0 0.0
        %464 = vmatprep.subr.mxu0 0.0
        %465 = vmatpush1.msra.mxu0 0.0
        %466 = vmatprep.subr.mxu0 0.0
        %467 = vmatpush1.msra.mxu0 0.0
        %468 = vmatprep.subr.mxu0 0.0
        %469 = vmatpush1.msra.mxu0 0.0
        %470 = vmatprep.subr.mxu0 0.0
        %471 = vmatpush1.msra.mxu0 0.0
        %472 = vmatprep.subr.mxu0 0.0
        %473 = vmatpush1.msra.mxu0 0.0
        %474 = vmatprep.subr.mxu0 0.0
        %475 = vmatpush1.msra.mxu0 0.0
        %476 = vmatprep.subr.mxu0 0.0
        %477 = vmatpush1.msra.mxu0 0.0
        %478 = vmatprep.subr.mxu0 0.0
        %479 = vmatpush1.msra.mxu0 0.0
        %480 = vmatprep.subr.mxu0 0.0
        %481 = vmatpush1.msra.mxu0 0.0
        %482 = vmatprep.mubr.f32.mxu0 0.0
        %v483 = vand.u32 %v197, 4294901760
        %v484 = vsub.f32 %v197, %v483
        %485 = vmatmul.mubr.f32.gmra.mrb[0].mxu0 %v484
        %v486 = vpop.f32.mrb[0].mxu0
        %v487 = vadd.f32 %v393, %v486
        %v488 = vpop.f32.mrb[0].mxu0
        %489 = vmatprep.mubr.f32.mxu0 0.0
        %v490 = vand.u32 %v200, 4294901760
        %v491 = vsub.f32 %v200, %v490
        %492 = vmatmul.mubr.f32.gmra.mrb[0].mxu0 %v491
        %v493 = vpop.f32.mrb[0].mxu0
        %v494 = vadd.f32 %v399, %v493
        %v495 = vpop.f32.mrb[0].mxu0
        %496 = vmatprep.mubr.f32.mxu0 0.0
        %v497 = vand.u32 %v203, 4294901760
        %v498 = vsub.f32 %v203, %v497
        %499 = vmatmul.mubr.f32.gmra.mrb[0].mxu0 %v498
        %v500 = vpop.f32.mrb[0].mxu0
        %v501 = vadd.f32 %v405, %v500
        %v502 = vpop.f32.mrb[0].mxu0
        %503 = vmatprep.mubr.f32.mxu0 0.0
        %v504 = vand.u32 %v206, 4294901760
        %v505 = vsub.f32 %v206, %v504
        %506 = vmatmul.mubr.f32.gmra.mrb[0].mxu0 %v505
        %v507 = vpop.f32.mrb[0].mxu0
        %v508 = vadd.f32 %v411, %v507
        %v509 = vpop.f32.mrb[0].mxu0
        %510 = vdwg.mxu0
        %511 = vmatprep.subr.mxu0 0.0
        %v512 = vand.u32 %v189, 4294901760
        %513 = vmatpush1.msra.mxu0 %v512
        %514 = vmatprep.subr.mxu0 0.0
        %v515 = vand.u32 %v190, 4294901760
        %516 = vmatpush1.msra.mxu0 %v515
        %517 = vmatprep.subr.mxu0 0.0
        %518 = vmatpush1.msra.mxu0 0.0
        %519 = vmatprep.subr.mxu0 0.0
        %520 = vmatpush1.msra.mxu0 0.0
        %521 = vmatprep.subr.mxu0 0.0
        %522 = vmatpush1.msra.mxu0 0.0
        %523 = vmatprep.subr.mxu0 0.0
        %524 = vmatpush1.msra.mxu0 0.0
        %525 = vmatprep.subr.mxu0 0.0
        %526 = vmatpush1.msra.mxu0 0.0
        %527 = vmatprep.subr.mxu0 0.0
        %528 = vmatpush1.msra.mxu0 0.0
        %529 = vmatprep.subr.mxu0 0.0
        %530 = vmatpush1.msra.mxu0 0.0
        %531 = vmatprep.subr.mxu0 0.0
        %532 = vmatpush1.msra.mxu0 0.0
        %533 = vmatprep.subr.mxu0 0.0
        %534 = vmatpush1.msra.mxu0 0.0
        %535 = vmatprep.subr.mxu0 0.0
        %536 = vmatpush1.msra.mxu0 0.0
        %537 = vmatprep.subr.mxu0 0.0
        %538 = vmatpush1.msra.mxu0 0.0
        %539 = vmatprep.subr.mxu0 0.0
        %540 = vmatpush1.msra.mxu0 0.0
        %541 = vmatprep.subr.mxu0 0.0
        %542 = vmatpush1.msra.mxu0 0.0
        %543 = vmatprep.subr.mxu0 0.0
        %544 = vmatpush1.msra.mxu0 0.0
        %545 = vmatprep.subr.mxu0 0.0
        %546 = vmatpush1.msra.mxu0 0.0
        %547 = vmatprep.subr.mxu0 0.0
        %548 = vmatpush1.msra.mxu0 0.0
        %549 = vmatprep.subr.mxu0 0.0
        %550 = vmatpush1.msra.mxu0 0.0
        %551 = vmatprep.subr.mxu0 0.0
        %552 = vmatpush1.msra.mxu0 0.0
        %553 = vmatprep.subr.mxu0 0.0
        %554 = vmatpush1.msra.mxu0 0.0
        %555 = vmatprep.subr.mxu0 0.0
        %556 = vmatpush1.msra.mxu0 0.0
        %557 = vmatprep.subr.mxu0 0.0
        %558 = vmatpush1.msra.mxu0 0.0
        %559 = vmatprep.subr.mxu0 0.0
        %560 = vmatpush1.msra.mxu0 0.0
        %561 = vmatprep.subr.mxu0 0.0
        %562 = vmatpush1.msra.mxu0 0.0
        %563 = vmatprep.subr.mxu0 0.0
        %564 = vmatpush1.msra.mxu0 0.0
        %565 = vmatprep.subr.mxu0 0.0
        %566 = vmatpush1.msra.mxu0 0.0
        %567 = vmatprep.subr.mxu0 0.0
        %568 = vmatpush1.msra.mxu0 0.0
        %569 = vmatprep.subr.mxu0 0.0
        %570 = vmatpush1.msra.mxu0 0.0
        %571 = vmatprep.subr.mxu0 0.0
        %572 = vmatpush1.msra.mxu0 0.0
        %573 = vmatprep.subr.mxu0 0.0
        %574 = vmatpush1.msra.mxu0 0.0
        %575 = vmatprep.subr.mxu0 0.0
        %576 = vmatpush1.msra.mxu0 0.0
        %577 = vmatprep.mubr.f32.mxu0 0.0
        %v578 = vand.u32 %v197, 4294901760
        %v579 = vsub.f32 %v197, %v578
        %v580 = vand.u32 %v579, 4294901760
        %581 = vmatmul.mubr.f32.gmra.mrb[0].mxu0 %v580
        %v582 = vpop.f32.mrb[0].mxu0
        %v583 = vadd.f32 %v487, %v582
        %v584 = vpop.f32.mrb[0].mxu0
        %585 = vmatprep.mubr.f32.mxu0 0.0
        %v586 = vand.u32 %v200, 4294901760
        %v587 = vsub.f32 %v200, %v586
        %v588 = vand.u32 %v587, 4294901760
        %589 = vmatmul.mubr.f32.gmra.mrb[0].mxu0 %v588
        %v590 = vpop.f32.mrb[0].mxu0
        %v591 = vadd.f32 %v494, %v590
        %v592 = vpop.f32.mrb[0].mxu0
        %593 = vmatprep.mubr.f32.mxu0 0.0
        %v594 = vand.u32 %v203, 4294901760
        %v595 = vsub.f32 %v203, %v594
        %v596 = vand.u32 %v595, 4294901760
        %597 = vmatmul.mubr.f32.gmra.mrb[0].mxu0 %v596
        %v598 = vpop.f32.mrb[0].mxu0
        %v599 = vadd.f32 %v501, %v598
        %v600 = vpop.f32.mrb[0].mxu0
        %601 = vmatprep.mubr.f32.mxu0 0.0
        %v602 = vand.u32 %v206, 4294901760
        %v603 = vsub.f32 %v206, %v602
        %v604 = vand.u32 %v603, 4294901760
        %605 = vmatmul.mubr.f32.gmra.mrb[0].mxu0 %v604
        %v606 = vpop.f32.mrb[0].mxu0
        %v607 = vadd.f32 %v508, %v606
        %v608 = vpop.f32.mrb[0].mxu0
        %609 = vdwg.mxu0
        %610 = vmatprep.subr.mxu0 0.0
        %v611 = vand.u32 %v189, 4294901760
        %v612 = vsub.f32 %v189, %v611
        %v613 = vand.u32 %v612, 4294901760
        %614 = vmatpush1.msra.mxu0 %v613
        %615 = vmatprep.subr.mxu0 0.0
        %v616 = vand.u32 %v190, 4294901760
        %v617 = vsub.f32 %v190, %v616
        %v618 = vand.u32 %v617, 4294901760
        %619 = vmatpush1.msra.mxu0 %v618
        %620 = vmatprep.subr.mxu0 0.0
        %621 = vmatpush1.msra.mxu0 0.0
        %622 = vmatprep.subr.mxu0 0.0
        %623 = vmatpush1.msra.mxu0 0.0
        %624 = vmatprep.subr.mxu0 0.0
        %625 = vmatpush1.msra.mxu0 0.0
        %626 = vmatprep.subr.mxu0 0.0
        %627 = vmatpush1.msra.mxu0 0.0
        %628 = vmatprep.subr.mxu0 0.0
        %629 = vmatpush1.msra.mxu0 0.0
        %630 = vmatprep.subr.mxu0 0.0
        %631 = vmatpush1.msra.mxu0 0.0
        %632 = vmatprep.subr.mxu0 0.0
        %633 = vmatpush1.msra.mxu0 0.0
        %634 = vmatprep.subr.mxu0 0.0
        %635 = vmatpush1.msra.mxu0 0.0
        %636 = vmatprep.subr.mxu0 0.0
        %637 = vmatpush1.msra.mxu0 0.0
        %638 = vmatprep.subr.mxu0 0.0
        %639 = vmatpush1.msra.mxu0 0.0
        %640 = vmatprep.subr.mxu0 0.0
        %641 = vmatpush1.msra.mxu0 0.0
        %642 = vmatprep.subr.mxu0 0.0
        %643 = vmatpush1.msra.mxu0 0.0
        %644 = vmatprep.subr.mxu0 0.0
        %645 = vmatpush1.msra.mxu0 0.0
        %646 = vmatprep.subr.mxu0 0.0
        %647 = vmatpush1.msra.mxu0 0.0
        %648 = vmatprep.subr.mxu0 0.0
        %649 = vmatpush1.msra.mxu0 0.0
        %650 = vmatprep.subr.mxu0 0.0
        %651 = vmatpush1.msra.mxu0 0.0
        %652 = vmatprep.subr.mxu0 0.0
        %653 = vmatpush1.msra.mxu0 0.0
        %654 = vmatprep.subr.mxu0 0.0
        %655 = vmatpush1.msra.mxu0 0.0
        %656 = vmatprep.subr.mxu0 0.0
        %657 = vmatpush1.msra.mxu0 0.0
        %658 = vmatprep.subr.mxu0 0.0
        %659 = vmatpush1.msra.mxu0 0.0
        %660 = vmatprep.subr.mxu0 0.0
        %661 = vmatpush1.msra.mxu0 0.0
        %662 = vmatprep.subr.mxu0 0.0
        %663 = vmatpush1.msra.mxu0 0.0
        %664 = vmatprep.subr.mxu0 0.0
        %665 = vmatpush1.msra.mxu0 0.0
        %666 = vmatprep.subr.mxu0 0.0
        %667 = vmatpush1.msra.mxu0 0.0
        %668 = vmatprep.subr.mxu0 0.0
        %669 = vmatpush1.msra.mxu0 0.0
        %670 = vmatprep.subr.mxu0 0.0
        %671 = vmatpush1.msra.mxu0 0.0
        %672 = vmatprep.subr.mxu0 0.0
        %673 = vmatpush1.msra.mxu0 0.0
        %674 = vmatprep.subr.mxu0 0.0
        %675 = vmatpush1.msra.mxu0 0.0
        %676 = vmatprep.subr.mxu0 0.0
        %677 = vmatpush1.msra.mxu0 0.0
        %678 = vmatprep.subr.mxu0 0.0
        %679 = vmatpush1.msra.mxu0 0.0
        %680 = vmatprep.mubr.f32.mxu0 0.0
        %v681 = vand.u32 %v197, 4294901760
        %682 = vmatmul.mubr.f32.gmra.mrb[0].mxu0 %v681
        %v683 = vpop.f32.mrb[0].mxu0
        %v684 = vadd.f32 %v583, %v683
        %v685 = vpop.f32.mrb[0].mxu0
        %686 = vmatprep.mubr.f32.mxu0 0.0
        %v687 = vand.u32 %v200, 4294901760
        %688 = vmatmul.mubr.f32.gmra.mrb[0].mxu0 %v687
        %v689 = vpop.f32.mrb[0].mxu0
        %v690 = vadd.f32 %v591, %v689
        %v691 = vpop.f32.mrb[0].mxu0
        %692 = vmatprep.mubr.f32.mxu0 0.0
        %v693 = vand.u32 %v203, 4294901760
        %694 = vmatmul.mubr.f32.gmra.mrb[0].mxu0 %v693
        %v695 = vpop.f32.mrb[0].mxu0
        %v696 = vadd.f32 %v599, %v695
        %v697 = vpop.f32.mrb[0].mxu0
        %698 = vmatprep.mubr.f32.mxu0 0.0
        %v699 = vand.u32 %v206, 4294901760
        %700 = vmatmul.mubr.f32.gmra.mrb[0].mxu0 %v699
        %v701 = vpop.f32.mrb[0].mxu0
        %v702 = vadd.f32 %v607, %v701
        %v703 = vpop.f32.mrb[0].mxu0
        %704 = vdwg.mxu0
        %705 = vmatprep.subr.mxu0 0.0
        %v706 = vand.u32 %v189, 4294901760
        %707 = vmatpush1.msra.mxu0 %v706
        %708 = vmatprep.subr.mxu0 0.0
        %v709 = vand.u32 %v190, 4294901760
        %710 = vmatpush1.msra.mxu0 %v709
        %711 = vmatprep.subr.mxu0 0.0
        %712 = vmatpush1.msra.mxu0 0.0
        %713 = vmatprep.subr.mxu0 0.0
        %714 = vmatpush1.msra.mxu0 0.0
        %715 = vmatprep.subr.mxu0 0.0
        %716 = vmatpush1.msra.mxu0 0.0
        %717 = vmatprep.subr.mxu0 0.0
        %718 = vmatpush1.msra.mxu0 0.0
        %719 = vmatprep.subr.mxu0 0.0
        %720 = vmatpush1.msra.mxu0 0.0
        %721 = vmatprep.subr.mxu0 0.0
        %722 = vmatpush1.msra.mxu0 0.0
        %723 = vmatprep.subr.mxu0 0.0
        %724 = vmatpush1.msra.mxu0 0.0
        %725 = vmatprep.subr.mxu0 0.0
        %726 = vmatpush1.msra.mxu0 0.0
        %727 = vmatprep.subr.mxu0 0.0
        %728 = vmatpush1.msra.mxu0 0.0
        %729 = vmatprep.subr.mxu0 0.0
        %730 = vmatpush1.msra.mxu0 0.0
        %731 = vmatprep.subr.mxu0 0.0
        %732 = vmatpush1.msra.mxu0 0.0
        %733 = vmatprep.subr.mxu0 0.0
        %734 = vmatpush1.msra.mxu0 0.0
        %735 = vmatprep.subr.mxu0 0.0
        %736 = vmatpush1.msra.mxu0 0.0
        %737 = vmatprep.subr.mxu0 0.0
        %738 = vmatpush1.msra.mxu0 0.0
        %739 = vmatprep.subr.mxu0 0.0
        %740 = vmatpush1.msra.mxu0 0.0
        %741 = vmatprep.subr.mxu0 0.0
        %742 = vmatpush1.msra.mxu0 0.0
        %743 = vmatprep.subr.mxu0 0.0
        %744 = vmatpush1.msra.mxu0 0.0
        %745 = vmatprep.subr.mxu0 0.0
        %746 = vmatpush1.msra.mxu0 0.0
        %747 = vmatprep.subr.mxu0 0.0
        %748 = vmatpush1.msra.mxu0 0.0
        %749 = vmatprep.subr.mxu0 0.0
        %750 = vmatpush1.msra.mxu0 0.0
        %751 = vmatprep.subr.mxu0 0.0
        %752 = vmatpush1.msra.mxu0 0.0
        %753 = vmatprep.subr.mxu0 0.0
        %754 = vmatpush1.msra.mxu0 0.0
        %755 = vmatprep.subr.mxu0 0.0
        %756 = vmatpush1.msra.mxu0 0.0
        %757 = vmatprep.subr.mxu0 0.0
        %758 = vmatpush1.msra.mxu0 0.0
        %759 = vmatprep.subr.mxu0 0.0
        %760 = vmatpush1.msra.mxu0 0.0
        %761 = vmatprep.subr.mxu0 0.0
        %762 = vmatpush1.msra.mxu0 0.0
        %763 = vmatprep.subr.mxu0 0.0
        %764 = vmatpush1.msra.mxu0 0.0
        %765 = vmatprep.subr.mxu0 0.0
        %766 = vmatpush1.msra.mxu0 0.0
        %767 = vmatprep.subr.mxu0 0.0
        %768 = vmatpush1.msra.mxu0 0.0
        %769 = vmatprep.subr.mxu0 0.0
        %770 = vmatpush1.msra.mxu0 0.0
        %771 = vmatprep.mubr.f32.mxu0 0.0
        %v772 = vand.u32 %v197, 4294901760
        %773 = vmatmul.mubr.f32.gmra.mrb[0].mxu0 %v772
        %v774 = vpop.f32.mrb[0].mxu0
        %v775 = vadd.f32 %v684, %v774
        %v776 = vpop.f32.mrb[0].mxu0
        %777 = vmatprep.mubr.f32.mxu0 0.0
        %v778 = vand.u32 %v200, 4294901760
        %779 = vmatmul.mubr.f32.gmra.mrb[0].mxu0 %v778
        %v780 = vpop.f32.mrb[0].mxu0
        %v781 = vadd.f32 %v690, %v780
        %v782 = vpop.f32.mrb[0].mxu0
        %783 = vmatprep.mubr.f32.mxu0 0.0
        %v784 = vand.u32 %v203, 4294901760
        %785 = vmatmul.mubr.f32.gmra.mrb[0].mxu0 %v784
        %v786 = vpop.f32.mrb[0].mxu0
        %v787 = vadd.f32 %v696, %v786
        %v788 = vpop.f32.mrb[0].mxu0
        %789 = vmatprep.mubr.f32.mxu0 0.0
        %v790 = vand.u32 %v206, 4294901760
        %791 = vmatmul.mubr.f32.gmra.mrb[0].mxu0 %v790
        %v792 = vpop.f32.mrb[0].mxu0
        %v793 = vadd.f32 %v702, %v792
        %v794 = vpop.f32.mrb[0].mxu0
        %795 = vdwg.mxu0
        %v796 = vld [vmem:[%s2] sm:$0xff]
        %v797 = vld [vmem:[%s2 + $0x8] sm:$0xff]
        %v799 = vsel %vm195, %v775, 0
        %v802 = vsel %vm195, %v781, 0
        %v805 = vsel %vm195, %v787, 0
        %v808 = vsel %vm195, %v793, 0
        %810 = vmatprep.subr.mxu0 0.0
        %v811 = vand.u32 %v796, 4294901760
        %812 = vmatpush1.msra.mxu0 %v811
        %813 = vmatprep.subr.mxu0 0.0
        %v814 = vand.u32 %v797, 4294901760
        %815 = vmatpush1.msra.mxu0 %v814
        %816 = vmatprep.subr.mxu0 0.0
        %817 = vmatpush1.msra.mxu0 0.0
        %818 = vmatprep.subr.mxu0 0.0
        %819 = vmatpush1.msra.mxu0 0.0
        %820 = vmatprep.subr.mxu0 0.0
        %821 = vmatpush1.msra.mxu0 0.0
        %822 = vmatprep.subr.mxu0 0.0
        %823 = vmatpush1.msra.mxu0 0.0
        %824 = vmatprep.subr.mxu0 0.0
        %825 = vmatpush1.msra.mxu0 0.0
        %826 = vmatprep.subr.mxu0 0.0
        %827 = vmatpush1.msra.mxu0 0.0
        %828 = vmatprep.subr.mxu0 0.0
        %829 = vmatpush1.msra.mxu0 0.0
        %830 = vmatprep.subr.mxu0 0.0
        %831 = vmatpush1.msra.mxu0 0.0
        %832 = vmatprep.subr.mxu0 0.0
        %833 = vmatpush1.msra.mxu0 0.0
        %834 = vmatprep.subr.mxu0 0.0
        %835 = vmatpush1.msra.mxu0 0.0
        %836 = vmatprep.subr.mxu0 0.0
        %837 = vmatpush1.msra.mxu0 0.0
        %838 = vmatprep.subr.mxu0 0.0
        %839 = vmatpush1.msra.mxu0 0.0
        %840 = vmatprep.subr.mxu0 0.0
        %841 = vmatpush1.msra.mxu0 0.0
        %842 = vmatprep.subr.mxu0 0.0
        %843 = vmatpush1.msra.mxu0 0.0
        %844 = vmatprep.subr.mxu0 0.0
        %845 = vmatpush1.msra.mxu0 0.0
        %846 = vmatprep.subr.mxu0 0.0
        %847 = vmatpush1.msra.mxu0 0.0
        %848 = vmatprep.subr.mxu0 0.0
        %849 = vmatpush1.msra.mxu0 0.0
        %850 = vmatprep.subr.mxu0 0.0
        %851 = vmatpush1.msra.mxu0 0.0
        %852 = vmatprep.subr.mxu0 0.0
        %853 = vmatpush1.msra.mxu0 0.0
        %854 = vmatprep.subr.mxu0 0.0
        %855 = vmatpush1.msra.mxu0 0.0
        %856 = vmatprep.subr.mxu0 0.0
        %857 = vmatpush1.msra.mxu0 0.0
        %858 = vmatprep.subr.mxu0 0.0
        %859 = vmatpush1.msra.mxu0 0.0
        %860 = vmatprep.subr.mxu0 0.0
        %861 = vmatpush1.msra.mxu0 0.0
        %862 = vmatprep.subr.mxu0 0.0
        %863 = vmatpush1.msra.mxu0 0.0
        %864 = vmatprep.subr.mxu0 0.0
        %865 = vmatpush1.msra.mxu0 0.0
        %866 = vmatprep.subr.mxu0 0.0
        %867 = vmatpush1.msra.mxu0 0.0
        %868 = vmatprep.subr.mxu0 0.0
        %869 = vmatpush1.msra.mxu0 0.0
        %870 = vmatprep.subr.mxu0 0.0
        %871 = vmatpush1.msra.mxu0 0.0
        %872 = vmatprep.subr.mxu0 0.0
        %873 = vmatpush1.msra.mxu0 0.0
        %874 = vmatprep.subr.mxu0 0.0
        %875 = vmatpush1.msra.mxu0 0.0
        %876 = vmatprep.mubr.f32.mxu0 0.0
        %v877 = vand.u32 %v799, 4294901760
        %v878 = vsub.f32 %v799, %v877
        %v879 = vand.u32 %v878, 4294901760
        %v880 = vsub.f32 %v878, %v879
        %v881 = vand.u32 %v880, 4294901760
        %882 = vmatmul.mubr.f32.gmra.mrb[0].mxu0 %v881
        %v883 = vpop.f32.mrb[0].mxu0
        %v884 = vadd.f32 0.0, %v883
        %v885 = vpop.f32.mrb[0].mxu0
        %886 = vmatprep.mubr.f32.mxu0 0.0
        %v887 = vand.u32 %v802, 4294901760
        %v888 = vsub.f32 %v802, %v887
        %v889 = vand.u32 %v888, 4294901760
        %v890 = vsub.f32 %v888, %v889
        %v891 = vand.u32 %v890, 4294901760
        %892 = vmatmul.mubr.f32.gmra.mrb[0].mxu0 %v891
        %v893 = vpop.f32.mrb[0].mxu0
        %v894 = vadd.f32 0.0, %v893
        %v895 = vpop.f32.mrb[0].mxu0
        %896 = vmatprep.mubr.f32.mxu0 0.0
        %v897 = vand.u32 %v805, 4294901760
        %v898 = vsub.f32 %v805, %v897
        %v899 = vand.u32 %v898, 4294901760
        %v900 = vsub.f32 %v898, %v899
        %v901 = vand.u32 %v900, 4294901760
        %902 = vmatmul.mubr.f32.gmra.mrb[0].mxu0 %v901
        %v903 = vpop.f32.mrb[0].mxu0
        %v904 = vadd.f32 0.0, %v903
        %v905 = vpop.f32.mrb[0].mxu0
        %906 = vmatprep.mubr.f32.mxu0 0.0
        %v907 = vand.u32 %v808, 4294901760
        %v908 = vsub.f32 %v808, %v907
        %v909 = vand.u32 %v908, 4294901760
        %v910 = vsub.f32 %v908, %v909
        %v911 = vand.u32 %v910, 4294901760
        %912 = vmatmul.mubr.f32.gmra.mrb[0].mxu0 %v911
        %v913 = vpop.f32.mrb[0].mxu0
        %v914 = vadd.f32 0.0, %v913
        %v915 = vpop.f32.mrb[0].mxu0
        %916 = vdwg.mxu0
        %917 = vmatprep.subr.mxu0 0.0
        %v918 = vand.u32 %v796, 4294901760
        %v919 = vsub.f32 %v796, %v918
        %v920 = vand.u32 %v919, 4294901760
        %v921 = vsub.f32 %v919, %v920
        %v922 = vand.u32 %v921, 4294901760
        %923 = vmatpush1.msra.mxu0 %v922
        %924 = vmatprep.subr.mxu0 0.0
        %v925 = vand.u32 %v797, 4294901760
        %v926 = vsub.f32 %v797, %v925
        %v927 = vand.u32 %v926, 4294901760
        %v928 = vsub.f32 %v926, %v927
        %v929 = vand.u32 %v928, 4294901760
        %930 = vmatpush1.msra.mxu0 %v929
        %931 = vmatprep.subr.mxu0 0.0
        %932 = vmatpush1.msra.mxu0 0.0
        %933 = vmatprep.subr.mxu0 0.0
        %934 = vmatpush1.msra.mxu0 0.0
        %935 = vmatprep.subr.mxu0 0.0
        %936 = vmatpush1.msra.mxu0 0.0
        %937 = vmatprep.subr.mxu0 0.0
        %938 = vmatpush1.msra.mxu0 0.0
        %939 = vmatprep.subr.mxu0 0.0
        %940 = vmatpush1.msra.mxu0 0.0
        %941 = vmatprep.subr.mxu0 0.0
        %942 = vmatpush1.msra.mxu0 0.0
        %943 = vmatprep.subr.mxu0 0.0
        %944 = vmatpush1.msra.mxu0 0.0
        %945 = vmatprep.subr.mxu0 0.0
        %946 = vmatpush1.msra.mxu0 0.0
        %947 = vmatprep.subr.mxu0 0.0
        %948 = vmatpush1.msra.mxu0 0.0
        %949 = vmatprep.subr.mxu0 0.0
        %950 = vmatpush1.msra.mxu0 0.0
        %951 = vmatprep.subr.mxu0 0.0
        %952 = vmatpush1.msra.mxu0 0.0
        %953 = vmatprep.subr.mxu0 0.0
        %954 = vmatpush1.msra.mxu0 0.0
        %955 = vmatprep.subr.mxu0 0.0
        %956 = vmatpush1.msra.mxu0 0.0
        %957 = vmatprep.subr.mxu0 0.0
        %958 = vmatpush1.msra.mxu0 0.0
        %959 = vmatprep.subr.mxu0 0.0
        %960 = vmatpush1.msra.mxu0 0.0
        %961 = vmatprep.subr.mxu0 0.0
        %962 = vmatpush1.msra.mxu0 0.0
        %963 = vmatprep.subr.mxu0 0.0
        %964 = vmatpush1.msra.mxu0 0.0
        %965 = vmatprep.subr.mxu0 0.0
        %966 = vmatpush1.msra.mxu0 0.0
        %967 = vmatprep.subr.mxu0 0.0
        %968 = vmatpush1.msra.mxu0 0.0
        %969 = vmatprep.subr.mxu0 0.0
        %970 = vmatpush1.msra.mxu0 0.0
        %971 = vmatprep.subr.mxu0 0.0
        %972 = vmatpush1.msra.mxu0 0.0
        %973 = vmatprep.subr.mxu0 0.0
        %974 = vmatpush1.msra.mxu0 0.0
        %975 = vmatprep.subr.mxu0 0.0
        %976 = vmatpush1.msra.mxu0 0.0
        %977 = vmatprep.subr.mxu0 0.0
        %978 = vmatpush1.msra.mxu0 0.0
        %979 = vmatprep.subr.mxu0 0.0
        %980 = vmatpush1.msra.mxu0 0.0
        %981 = vmatprep.subr.mxu0 0.0
        %982 = vmatpush1.msra.mxu0 0.0
        %983 = vmatprep.subr.mxu0 0.0
        %984 = vmatpush1.msra.mxu0 0.0
        %985 = vmatprep.subr.mxu0 0.0
        %986 = vmatpush1.msra.mxu0 0.0
        %987 = vmatprep.subr.mxu0 0.0
        %988 = vmatpush1.msra.mxu0 0.0
        %989 = vmatprep.subr.mxu0 0.0
        %990 = vmatpush1.msra.mxu0 0.0
        %991 = vmatprep.mubr.f32.mxu0 0.0
        %v992 = vand.u32 %v799, 4294901760
        %993 = vmatmul.mubr.f32.gmra.mrb[0].mxu0 %v992
        %v994 = vpop.f32.mrb[0].mxu0
        %v995 = vadd.f32 %v884, %v994
        %v996 = vpop.f32.mrb[0].mxu0
        %997 = vmatprep.mubr.f32.mxu0 0.0
        %v998 = vand.u32 %v802, 4294901760
        %999 = vmatmul.mubr.f32.gmra.mrb[0].mxu0 %v998
        %v1000 = vpop.f32.mrb[0].mxu0
        %v1001 = vadd.f32 %v894, %v1000
        %v1002 = vpop.f32.mrb[0].mxu0
        %1003 = vmatprep.mubr.f32.mxu0 0.0
        %v1004 = vand.u32 %v805, 4294901760
        %1005 = vmatmul.mubr.f32.gmra.mrb[0].mxu0 %v1004
        %v1006 = vpop.f32.mrb[0].mxu0
        %v1007 = vadd.f32 %v904, %v1006
        %v1008 = vpop.f32.mrb[0].mxu0
        %1009 = vmatprep.mubr.f32.mxu0 0.0
        %v1010 = vand.u32 %v808, 4294901760
        %1011 = vmatmul.mubr.f32.gmra.mrb[0].mxu0 %v1010
        %v1012 = vpop.f32.mrb[0].mxu0
        %v1013 = vadd.f32 %v914, %v1012
        %v1014 = vpop.f32.mrb[0].mxu0
        %1015 = vdwg.mxu0
        %1016 = vmatprep.subr.mxu0 0.0
        %v1017 = vand.u32 %v796, 4294901760
        %v1018 = vsub.f32 %v796, %v1017
        %1019 = vmatpush1.msra.mxu0 %v1018
        %1020 = vmatprep.subr.mxu0 0.0
        %v1021 = vand.u32 %v797, 4294901760
        %v1022 = vsub.f32 %v797, %v1021
        %1023 = vmatpush1.msra.mxu0 %v1022
        %1024 = vmatprep.subr.mxu0 0.0
        %1025 = vmatpush1.msra.mxu0 0.0
        %1026 = vmatprep.subr.mxu0 0.0
        %1027 = vmatpush1.msra.mxu0 0.0
        %1028 = vmatprep.subr.mxu0 0.0
        %1029 = vmatpush1.msra.mxu0 0.0
        %1030 = vmatprep.subr.mxu0 0.0
        %1031 = vmatpush1.msra.mxu0 0.0
        %1032 = vmatprep.subr.mxu0 0.0
        %1033 = vmatpush1.msra.mxu0 0.0
        %1034 = vmatprep.subr.mxu0 0.0
        %1035 = vmatpush1.msra.mxu0 0.0
        %1036 = vmatprep.subr.mxu0 0.0
        %1037 = vmatpush1.msra.mxu0 0.0
        %1038 = vmatprep.subr.mxu0 0.0
        %1039 = vmatpush1.msra.mxu0 0.0
        %1040 = vmatprep.subr.mxu0 0.0
        %1041 = vmatpush1.msra.mxu0 0.0
        %1042 = vmatprep.subr.mxu0 0.0
        %1043 = vmatpush1.msra.mxu0 0.0
        %1044 = vmatprep.subr.mxu0 0.0
        %1045 = vmatpush1.msra.mxu0 0.0
        %1046 = vmatprep.subr.mxu0 0.0
        %1047 = vmatpush1.msra.mxu0 0.0
        %1048 = vmatprep.subr.mxu0 0.0
        %1049 = vmatpush1.msra.mxu0 0.0
        %1050 = vmatprep.subr.mxu0 0.0
        %1051 = vmatpush1.msra.mxu0 0.0
        %1052 = vmatprep.subr.mxu0 0.0
        %1053 = vmatpush1.msra.mxu0 0.0
        %1054 = vmatprep.subr.mxu0 0.0
        %1055 = vmatpush1.msra.mxu0 0.0
        %1056 = vmatprep.subr.mxu0 0.0
        %1057 = vmatpush1.msra.mxu0 0.0
        %1058 = vmatprep.subr.mxu0 0.0
        %1059 = vmatpush1.msra.mxu0 0.0
        %1060 = vmatprep.subr.mxu0 0.0
        %1061 = vmatpush1.msra.mxu0 0.0
        %1062 = vmatprep.subr.mxu0 0.0
        %1063 = vmatpush1.msra.mxu0 0.0
        %1064 = vmatprep.subr.mxu0 0.0
        %1065 = vmatpush1.msra.mxu0 0.0
        %1066 = vmatprep.subr.mxu0 0.0
        %1067 = vmatpush1.msra.mxu0 0.0
        %1068 = vmatprep.subr.mxu0 0.0
        %1069 = vmatpush1.msra.mxu0 0.0
        %1070 = vmatprep.subr.mxu0 0.0
        %1071 = vmatpush1.msra.mxu0 0.0
        %1072 = vmatprep.subr.mxu0 0.0
        %1073 = vmatpush1.msra.mxu0 0.0
        %1074 = vmatprep.subr.mxu0 0.0
        %1075 = vmatpush1.msra.mxu0 0.0
        %1076 = vmatprep.subr.mxu0 0.0
        %1077 = vmatpush1.msra.mxu0 0.0
        %1078 = vmatprep.subr.mxu0 0.0
        %1079 = vmatpush1.msra.mxu0 0.0
        %1080 = vmatprep.subr.mxu0 0.0
        %1081 = vmatpush1.msra.mxu0 0.0
        %1082 = vmatprep.subr.mxu0 0.0
        %1083 = vmatpush1.msra.mxu0 0.0
        %1084 = vmatprep.mubr.f32.mxu0 0.0
        %v1085 = vand.u32 %v799, 4294901760
        %v1086 = vsub.f32 %v799, %v1085
        %1087 = vmatmul.mubr.f32.gmra.mrb[0].mxu0 %v1086
        %v1088 = vpop.f32.mrb[0].mxu0
        %v1089 = vadd.f32 %v995, %v1088
        %v1090 = vpop.f32.mrb[0].mxu0
        %1091 = vmatprep.mubr.f32.mxu0 0.0
        %v1092 = vand.u32 %v802, 4294901760
        %v1093 = vsub.f32 %v802, %v1092
        %1094 = vmatmul.mubr.f32.gmra.mrb[0].mxu0 %v1093
        %v1095 = vpop.f32.mrb[0].mxu0
        %v1096 = vadd.f32 %v1001, %v1095
        %v1097 = vpop.f32.mrb[0].mxu0
        %1098 = vmatprep.mubr.f32.mxu0 0.0
        %v1099 = vand.u32 %v805, 4294901760
        %v1100 = vsub.f32 %v805, %v1099
        %1101 = vmatmul.mubr.f32.gmra.mrb[0].mxu0 %v1100
        %v1102 = vpop.f32.mrb[0].mxu0
        %v1103 = vadd.f32 %v1007, %v1102
        %v1104 = vpop.f32.mrb[0].mxu0
        %1105 = vmatprep.mubr.f32.mxu0 0.0
        %v1106 = vand.u32 %v808, 4294901760
        %v1107 = vsub.f32 %v808, %v1106
        %1108 = vmatmul.mubr.f32.gmra.mrb[0].mxu0 %v1107
        %v1109 = vpop.f32.mrb[0].mxu0
        %v1110 = vadd.f32 %v1013, %v1109
        %v1111 = vpop.f32.mrb[0].mxu0
        %1112 = vdwg.mxu0
        %1113 = vmatprep.subr.mxu0 0.0
        %v1114 = vand.u32 %v796, 4294901760
        %1115 = vmatpush1.msra.mxu0 %v1114
        %1116 = vmatprep.subr.mxu0 0.0
        %v1117 = vand.u32 %v797, 4294901760
        %1118 = vmatpush1.msra.mxu0 %v1117
        %1119 = vmatprep.subr.mxu0 0.0
        %1120 = vmatpush1.msra.mxu0 0.0
        %1121 = vmatprep.subr.mxu0 0.0
        %1122 = vmatpush1.msra.mxu0 0.0
        %1123 = vmatprep.subr.mxu0 0.0
        %1124 = vmatpush1.msra.mxu0 0.0
        %1125 = vmatprep.subr.mxu0 0.0
        %1126 = vmatpush1.msra.mxu0 0.0
        %1127 = vmatprep.subr.mxu0 0.0
        %1128 = vmatpush1.msra.mxu0 0.0
        %1129 = vmatprep.subr.mxu0 0.0
        %1130 = vmatpush1.msra.mxu0 0.0
        %1131 = vmatprep.subr.mxu0 0.0
        %1132 = vmatpush1.msra.mxu0 0.0
        %1133 = vmatprep.subr.mxu0 0.0
        %1134 = vmatpush1.msra.mxu0 0.0
        %1135 = vmatprep.subr.mxu0 0.0
        %1136 = vmatpush1.msra.mxu0 0.0
        %1137 = vmatprep.subr.mxu0 0.0
        %1138 = vmatpush1.msra.mxu0 0.0
        %1139 = vmatprep.subr.mxu0 0.0
        %1140 = vmatpush1.msra.mxu0 0.0
        %1141 = vmatprep.subr.mxu0 0.0
        %1142 = vmatpush1.msra.mxu0 0.0
        %1143 = vmatprep.subr.mxu0 0.0
        %1144 = vmatpush1.msra.mxu0 0.0
        %1145 = vmatprep.subr.mxu0 0.0
        %1146 = vmatpush1.msra.mxu0 0.0
        %1147 = vmatprep.subr.mxu0 0.0
        %1148 = vmatpush1.msra.mxu0 0.0
        %1149 = vmatprep.subr.mxu0 0.0
        %1150 = vmatpush1.msra.mxu0 0.0
        %1151 = vmatprep.subr.mxu0 0.0
        %1152 = vmatpush1.msra.mxu0 0.0
        %1153 = vmatprep.subr.mxu0 0.0
        %1154 = vmatpush1.msra.mxu0 0.0
        %1155 = vmatprep.subr.mxu0 0.0
        %1156 = vmatpush1.msra.mxu0 0.0
        %1157 = vmatprep.subr.mxu0 0.0
        %1158 = vmatpush1.msra.mxu0 0.0
        %1159 = vmatprep.subr.mxu0 0.0
        %1160 = vmatpush1.msra.mxu0 0.0
        %1161 = vmatprep.subr.mxu0 0.0
        %1162 = vmatpush1.msra.mxu0 0.0
        %1163 = vmatprep.subr.mxu0 0.0
        %1164 = vmatpush1.msra.mxu0 0.0
        %1165 = vmatprep.subr.mxu0 0.0
        %1166 = vmatpush1.msra.mxu0 0.0
        %1167 = vmatprep.subr.mxu0 0.0
        %1168 = vmatpush1.msra.mxu0 0.0
        %1169 = vmatprep.subr.mxu0 0.0
        %1170 = vmatpush1.msra.mxu0 0.0
        %1171 = vmatprep.subr.mxu0 0.0
        %1172 = vmatpush1.msra.mxu0 0.0
        %1173 = vmatprep.subr.mxu0 0.0
        %1174 = vmatpush1.msra.mxu0 0.0
        %1175 = vmatprep.subr.mxu0 0.0
        %1176 = vmatpush1.msra.mxu0 0.0
        %1177 = vmatprep.subr.mxu0 0.0
        %1178 = vmatpush1.msra.mxu0 0.0
        %1179 = vmatprep.mubr.f32.mxu0 0.0
        %v1180 = vand.u32 %v799, 4294901760
        %v1181 = vsub.f32 %v799, %v1180
        %v1182 = vand.u32 %v1181, 4294901760
        %1183 = vmatmul.mubr.f32.gmra.mrb[0].mxu0 %v1182
        %v1184 = vpop.f32.mrb[0].mxu0
        %v1185 = vadd.f32 %v1089, %v1184
        %v1186 = vpop.f32.mrb[0].mxu0
        %1187 = vmatprep.mubr.f32.mxu0 0.0
        %v1188 = vand.u32 %v802, 4294901760
        %v1189 = vsub.f32 %v802, %v1188
        %v1190 = vand.u32 %v1189, 4294901760
        %1191 = vmatmul.mubr.f32.gmra.mrb[0].mxu0 %v1190
        %v1192 = vpop.f32.mrb[0].mxu0
        %v1193 = vadd.f32 %v1096, %v1192
        %v1194 = vpop.f32.mrb[0].mxu0
        %1195 = vmatprep.mubr.f32.mxu0 0.0
        %v1196 = vand.u32 %v805, 4294901760
        %v1197 = vsub.f32 %v805, %v1196
        %v1198 = vand.u32 %v1197, 4294901760
        %1199 = vmatmul.mubr.f32.gmra.mrb[0].mxu0 %v1198
        %v1200 = vpop.f32.mrb[0].mxu0
        %v1201 = vadd.f32 %v1103, %v1200
        %v1202 = vpop.f32.mrb[0].mxu0
        %1203 = vmatprep.mubr.f32.mxu0 0.0
        %v1204 = vand.u32 %v808, 4294901760
        %v1205 = vsub.f32 %v808, %v1204
        %v1206 = vand.u32 %v1205, 4294901760
        %1207 = vmatmul.mubr.f32.gmra.mrb[0].mxu0 %v1206
        %v1208 = vpop.f32.mrb[0].mxu0
        %v1209 = vadd.f32 %v1110, %v1208
        %v1210 = vpop.f32.mrb[0].mxu0
        %1211 = vdwg.mxu0
        %1212 = vmatprep.subr.mxu0 0.0
        %v1213 = vand.u32 %v796, 4294901760
        %v1214 = vsub.f32 %v796, %v1213
        %v1215 = vand.u32 %v1214, 4294901760
        %1216 = vmatpush1.msra.mxu0 %v1215
        %1217 = vmatprep.subr.mxu0 0.0
        %v1218 = vand.u32 %v797, 4294901760
        %v1219 = vsub.f32 %v797, %v1218
        %v1220 = vand.u32 %v1219, 4294901760
        %1221 = vmatpush1.msra.mxu0 %v1220
        %1222 = vmatprep.subr.mxu0 0.0
        %1223 = vmatpush1.msra.mxu0 0.0
        %1224 = vmatprep.subr.mxu0 0.0
        %1225 = vmatpush1.msra.mxu0 0.0
        %1226 = vmatprep.subr.mxu0 0.0
        %1227 = vmatpush1.msra.mxu0 0.0
        %1228 = vmatprep.subr.mxu0 0.0
        %1229 = vmatpush1.msra.mxu0 0.0
        %1230 = vmatprep.subr.mxu0 0.0
        %1231 = vmatpush1.msra.mxu0 0.0
        %1232 = vmatprep.subr.mxu0 0.0
        %1233 = vmatpush1.msra.mxu0 0.0
        %1234 = vmatprep.subr.mxu0 0.0
        %1235 = vmatpush1.msra.mxu0 0.0
        %1236 = vmatprep.subr.mxu0 0.0
        %1237 = vmatpush1.msra.mxu0 0.0
        %1238 = vmatprep.subr.mxu0 0.0
        %1239 = vmatpush1.msra.mxu0 0.0
        %1240 = vmatprep.subr.mxu0 0.0
        %1241 = vmatpush1.msra.mxu0 0.0
        %1242 = vmatprep.subr.mxu0 0.0
        %1243 = vmatpush1.msra.mxu0 0.0
        %1244 = vmatprep.subr.mxu0 0.0
        %1245 = vmatpush1.msra.mxu0 0.0
        %1246 = vmatprep.subr.mxu0 0.0
        %1247 = vmatpush1.msra.mxu0 0.0
        %1248 = vmatprep.subr.mxu0 0.0
        %1249 = vmatpush1.msra.mxu0 0.0
        %1250 = vmatprep.subr.mxu0 0.0
        %1251 = vmatpush1.msra.mxu0 0.0
        %1252 = vmatprep.subr.mxu0 0.0
        %1253 = vmatpush1.msra.mxu0 0.0
        %1254 = vmatprep.subr.mxu0 0.0
        %1255 = vmatpush1.msra.mxu0 0.0
        %1256 = vmatprep.subr.mxu0 0.0
        %1257 = vmatpush1.msra.mxu0 0.0
        %1258 = vmatprep.subr.mxu0 0.0
        %1259 = vmatpush1.msra.mxu0 0.0
        %1260 = vmatprep.subr.mxu0 0.0
        %1261 = vmatpush1.msra.mxu0 0.0
        %1262 = vmatprep.subr.mxu0 0.0
        %1263 = vmatpush1.msra.mxu0 0.0
        %1264 = vmatprep.subr.mxu0 0.0
        %1265 = vmatpush1.msra.mxu0 0.0
        %1266 = vmatprep.subr.mxu0 0.0
        %1267 = vmatpush1.msra.mxu0 0.0
        %1268 = vmatprep.subr.mxu0 0.0
        %1269 = vmatpush1.msra.mxu0 0.0
        %1270 = vmatprep.subr.mxu0 0.0
        %1271 = vmatpush1.msra.mxu0 0.0
        %1272 = vmatprep.subr.mxu0 0.0
        %1273 = vmatpush1.msra.mxu0 0.0
        %1274 = vmatprep.subr.mxu0 0.0
        %1275 = vmatpush1.msra.mxu0 0.0
        %1276 = vmatprep.subr.mxu0 0.0
        %1277 = vmatpush1.msra.mxu0 0.0
        %1278 = vmatprep.subr.mxu0 0.0
        %1279 = vmatpush1.msra.mxu0 0.0
        %1280 = vmatprep.subr.mxu0 0.0
        %1281 = vmatpush1.msra.mxu0 0.0
        %1282 = vmatprep.mubr.f32.mxu0 0.0
        %v1283 = vand.u32 %v799, 4294901760
        %1284 = vmatmul.mubr.f32.gmra.mrb[0].mxu0 %v1283
        %v1285 = vpop.f32.mrb[0].mxu0
        %v1286 = vadd.f32 %v1185, %v1285
        %v1287 = vpop.f32.mrb[0].mxu0
        %1288 = vmatprep.mubr.f32.mxu0 0.0
        %v1289 = vand.u32 %v802, 4294901760
        %1290 = vmatmul.mubr.f32.gmra.mrb[0].mxu0 %v1289
        %v1291 = vpop.f32.mrb[0].mxu0
        %v1292 = vadd.f32 %v1193, %v1291
        %v1293 = vpop.f32.mrb[0].mxu0
        %1294 = vmatprep.mubr.f32.mxu0 0.0
        %v1295 = vand.u32 %v805, 4294901760
        %1296 = vmatmul.mubr.f32.gmra.mrb[0].mxu0 %v1295
        %v1297 = vpop.f32.mrb[0].mxu0
        %v1298 = vadd.f32 %v1201, %v1297
        %v1299 = vpop.f32.mrb[0].mxu0
        %1300 = vmatprep.mubr.f32.mxu0 0.0
        %v1301 = vand.u32 %v808, 4294901760
        %1302 = vmatmul.mubr.f32.gmra.mrb[0].mxu0 %v1301
        %v1303 = vpop.f32.mrb[0].mxu0
        %v1304 = vadd.f32 %v1209, %v1303
        %v1305 = vpop.f32.mrb[0].mxu0
        %1306 = vdwg.mxu0
        %1307 = vmatprep.subr.mxu0 0.0
        %v1308 = vand.u32 %v796, 4294901760
        %1309 = vmatpush1.msra.mxu0 %v1308
        %1310 = vmatprep.subr.mxu0 0.0
        %v1311 = vand.u32 %v797, 4294901760
        %1312 = vmatpush1.msra.mxu0 %v1311
        %1313 = vmatprep.subr.mxu0 0.0
        %1314 = vmatpush1.msra.mxu0 0.0
        %1315 = vmatprep.subr.mxu0 0.0
        %1316 = vmatpush1.msra.mxu0 0.0
        %1317 = vmatprep.subr.mxu0 0.0
        %1318 = vmatpush1.msra.mxu0 0.0
        %1319 = vmatprep.subr.mxu0 0.0
        %1320 = vmatpush1.msra.mxu0 0.0
        %1321 = vmatprep.subr.mxu0 0.0
        %1322 = vmatpush1.msra.mxu0 0.0
        %1323 = vmatprep.subr.mxu0 0.0
        %1324 = vmatpush1.msra.mxu0 0.0
        %1325 = vmatprep.subr.mxu0 0.0
        %1326 = vmatpush1.msra.mxu0 0.0
        %1327 = vmatprep.subr.mxu0 0.0
        %1328 = vmatpush1.msra.mxu0 0.0
        %1329 = vmatprep.subr.mxu0 0.0
        %1330 = vmatpush1.msra.mxu0 0.0
        %1331 = vmatprep.subr.mxu0 0.0
        %1332 = vmatpush1.msra.mxu0 0.0
        %1333 = vmatprep.subr.mxu0 0.0
        %1334 = vmatpush1.msra.mxu0 0.0
        %1335 = vmatprep.subr.mxu0 0.0
        %1336 = vmatpush1.msra.mxu0 0.0
        %1337 = vmatprep.subr.mxu0 0.0
        %1338 = vmatpush1.msra.mxu0 0.0
        %1339 = vmatprep.subr.mxu0 0.0
        %1340 = vmatpush1.msra.mxu0 0.0
        %1341 = vmatprep.subr.mxu0 0.0
        %1342 = vmatpush1.msra.mxu0 0.0
        %1343 = vmatprep.subr.mxu0 0.0
        %1344 = vmatpush1.msra.mxu0 0.0
        %1345 = vmatprep.subr.mxu0 0.0
        %1346 = vmatpush1.msra.mxu0 0.0
        %1347 = vmatprep.subr.mxu0 0.0
        %1348 = vmatpush1.msra.mxu0 0.0
        %1349 = vmatprep.subr.mxu0 0.0
        %1350 = vmatpush1.msra.mxu0 0.0
        %1351 = vmatprep.subr.mxu0 0.0
        %1352 = vmatpush1.msra.mxu0 0.0
        %1353 = vmatprep.subr.mxu0 0.0
        %1354 = vmatpush1.msra.mxu0 0.0
        %1355 = vmatprep.subr.mxu0 0.0
        %1356 = vmatpush1.msra.mxu0 0.0
        %1357 = vmatprep.subr.mxu0 0.0
        %1358 = vmatpush1.msra.mxu0 0.0
        %1359 = vmatprep.subr.mxu0 0.0
        %1360 = vmatpush1.msra.mxu0 0.0
        %1361 = vmatprep.subr.mxu0 0.0
        %1362 = vmatpush1.msra.mxu0 0.0
        %1363 = vmatprep.subr.mxu0 0.0
        %1364 = vmatpush1.msra.mxu0 0.0
        %1365 = vmatprep.subr.mxu0 0.0
        %1366 = vmatpush1.msra.mxu0 0.0
        %1367 = vmatprep.subr.mxu0 0.0
        %1368 = vmatpush1.msra.mxu0 0.0
        %1369 = vmatprep.subr.mxu0 0.0
        %1370 = vmatpush1.msra.mxu0 0.0
        %1371 = vmatprep.subr.mxu0 0.0
        %1372 = vmatpush1.msra.mxu0 0.0
        %1373 = vmatprep.mubr.f32.mxu0 0.0
        %v1374 = vand.u32 %v799, 4294901760
        %1375 = vmatmul.mubr.f32.gmra.mrb[0].mxu0 %v1374
        %v1376 = vpop.f32.mrb[0].mxu0
        %v1377 = vadd.f32 %v1286, %v1376
        %v1378 = vpop.f32.mrb[0].mxu0
        %1379 = vmatprep.mubr.f32.mxu0 0.0
        %v1380 = vand.u32 %v802, 4294901760
        %1381 = vmatmul.mubr.f32.gmra.mrb[0].mxu0 %v1380
        %v1382 = vpop.f32.mrb[0].mxu0
        %v1383 = vadd.f32 %v1292, %v1382
        %v1384 = vpop.f32.mrb[0].mxu0
        %1385 = vmatprep.mubr.f32.mxu0 0.0
        %v1386 = vand.u32 %v805, 4294901760
        %1387 = vmatmul.mubr.f32.gmra.mrb[0].mxu0 %v1386
        %v1388 = vpop.f32.mrb[0].mxu0
        %v1389 = vadd.f32 %v1298, %v1388
        %v1390 = vpop.f32.mrb[0].mxu0
        %1391 = vmatprep.mubr.f32.mxu0 0.0
        %v1392 = vand.u32 %v808, 4294901760
        %1393 = vmatmul.mubr.f32.gmra.mrb[0].mxu0 %v1392
        %v1394 = vpop.f32.mrb[0].mxu0
        %v1395 = vadd.f32 %v1304, %v1394
        %v1396 = vpop.f32.mrb[0].mxu0
        %1397 = vdwg.mxu0
        %vm1398 = vcmask 261120
        %1399 = vst.msk [vmem:[%s188] sm:$0xff] %vm1398, %v1377
        %1400 = vst.msk [vmem:[%s188 + $0x8] sm:$0xff] %vm1398, %v1383
        %1401 = vst.msk [vmem:[%s188 + $0x10] sm:$0xff] %vm1398, %v1389
        %1402 = vst.msk [vmem:[%s188 + $0x18] sm:$0xff] %vm1398, %v1395
        %s1403 = sand.u32 %s96, 1
        %s1404 = scalar_lea.sflag [#allocation4], %s1403
        %s1405 = sand.u32 %s96, 1
        %s1406 = smul.addr %s1405, 32
        %s1407 = scalar_lea.vmem [#allocation5], %s1406
        // Predicated region
        $region37: #{tpu_custom_call.1} parent=31 // pred_check
          %p1408 = pneg %p106
        $region38: #{tpu_custom_call.1} parent=31 // pred_check_branch
          %1410 = sbr.rel (%p1408) target = $region40
        $region39: #{tpu_custom_call.1} parent=31 // pred_region
          %s1412 = ssub.s32 512, 512
          %1413 = vsyncadd %s1404, %s1412
          %s1414 = smul.addr %s20, 4
          %s1415 = smul.addr %s1414, 128
          %s1416 = scalar_lea.hbm %s3, %s1415
          %s1417 = sshll.u32 %s1407, 4
          %s1418 = int_to_ptr.vmem [resolvable:$true] %s1417
          %1423 = dma.vmem_to_hbm [thread:$0]  %s1418, 512, %s1416, %s1404, 128, 128, 8
        $region40: #{tpu_custom_call.1} parent=31 // pred_fallthru
          _
      $region32: #{tpu_custom_call.1} parent=5 // pred_fallthru
        _
      %p1424 = scmp.le.s32.totalorder 2, %s15
      // Predicated region
      $region41: #{tpu_custom_call.1} parent=5 // pred_check
        %p1425 = pneg %p1424
      $region42: #{tpu_custom_call.1} parent=5 // pred_check_branch
        %1427 = sbr.rel (%p1425) target = $region44
      $region43: #{tpu_custom_call.1} parent=5 // pred_region
        %s1428 = ssub.s32 %s15, 2
        // Predicated region
        $region45: #{tpu_custom_call.1} parent=43 // pred_check
          %p1429 = pneg %p112
        $region46: #{tpu_custom_call.1} parent=43 // pred_check_branch
          %1431 = sbr.rel (%p1429) target = $region48
        $region47: #{tpu_custom_call.1} parent=43 // pred_region
          %s1432 = sand.u32 %s97, 1
          %s1433 = scalar_lea.sflag [#allocation4], %s1432
          %s1434 = sand.u32 %s97, 1
          %s1435 = smul.addr %s1434, 32
          %s1436 = scalar_lea.vmem [#allocation5], %s1435
          %1437 = dma.done %s1433, 512
        $region48: #{tpu_custom_call.1} parent=43 // pred_fallthru
          _
      $region44: #{tpu_custom_call.1} parent=5 // pred_fallthru
        _
    $region6: #{tpu_custom_call.1} parent=1 // loop_footer
      %s19 = sadd.s32 1, %s15
    $region7: #{tpu_custom_call.1} parent=1 // loop_footer_branch
      %14 = sbr.rel target = $region3
    $region8: #{tpu_custom_call.1} parent=1 // loop_exit
      _
    %1438 = vsyncpa [#allocation3], 1
    %s1439 = scalar_lea.sflag [#allocation3], 1
    %1440 = vsyncpa %s1439, 1
    %1441 = vsyncpa [#allocation4], 1
    %s1442 = scalar_lea.sflag [#allocation4], 1
    %1443 = vsyncpa %s1442, 1

</llo_original>
